<compile_context>
chip_gen: v5e
topology: v5e:2x2
jax: 0.10.0
libtpu: 0.0.40
codegen_flags: <defaults>
</compile_context>

<pallas_src>
import functools
import math

import jax
import jax.numpy as jnp
from jax.experimental import pallas as pl
from jax.experimental.pallas import tpu as pltpu


# ----------------------------- tiling helpers --------------------------------

_TM_CANDIDATES = (256, 128, 64, 32, 16, 8)   # rows per tile (sublane aligned)
_TNK_CANDIDATES = (512, 256, 128)            # cols / contraction tile (lane/MXU aligned)


def _tile(dim, candidates):
    """Largest candidate that evenly divides `dim`; else the full dim (always a legal block)."""
    for t in candidates:
        if t <= dim and dim % t == 0:
            return t
    return dim


# ----------------------------- Pallas kernels --------------------------------


def _matmul_kernel(*refs, activation, has_ln, has_residual, ln_eps):
    """Tiled matmul with fused (optional) input-LayerNorm and bias/act/residual epilogue.

    Ref order: x, w, b, [ln_g, ln_b], [residual], out, acc_scratch.
    Grid: (M/tm, N/tn, K/tk); K is the accumulation ("arbitrary") axis.
    """
    it = iter(refs)
    x_ref = next(it)
    w_ref = next(it)
    b_ref = next(it)
    g_ref = next(it) if has_ln else None
    gb_ref = next(it) if has_ln else None
    r_ref = next(it) if has_residual else None
    o_ref = next(it)
    acc_ref = next(it)

    k = pl.program_id(2)

    @pl.when(k == 0)
    def _():
        acc_ref[...] = jnp.zeros_like(acc_ref)

    x = x_ref[...]
    if has_ln:
        # LN fused into the consuming matmul (only used when tk == K, i.e. the
        # full feature row is resident in the tile).
        mu = jnp.mean(x, axis=-1, keepdims=True)
        var = jnp.mean(jnp.square(x - mu), axis=-1, keepdims=True)
        x = (x - mu) * jax.lax.rsqrt(var + ln_eps) * g_ref[...] + gb_ref[...]

    acc_ref[...] += jnp.dot(x.astype(jnp.bfloat16), w_ref[...],
                            preferred_element_type=jnp.float32)

    @pl.when(k == pl.num_programs(2) - 1)
    def _():
        y = acc_ref[...] + b_ref[...]          # epilogue in f32 (works on v5e too)
        if activation == "relu":
            y = jnp.maximum(y, 0.0)
        elif activation == "tanh":
            y = jnp.tanh(y)
        if has_residual:
            y = y + r_ref[...]
        o_ref[...] = y


def linear(x, w, b, activation=None, residual=None, ln=None, ln_eps=1e-5):
    """y = act(LN?(x) @ w + b) [+ residual].  x:(M,K) f32, w:(K,N) bf16, b:(N,) f32."""
    M, K = x.shape
    N = w.shape[1]
    tm = _tile(M, _TM_CANDIDATES)
    tn = _tile(N, _TNK_CANDIDATES)
    tk = K if ln is not None else _tile(K, _TNK_CANDIDATES)  # LN needs full rows
    grid = (M // tm, N // tn, K // tk)

    in_specs = [
        pl.BlockSpec((tm, tk), lambda i, j, k: (i, k)),
        pl.BlockSpec((tk, tn), lambda i, j, k: (k, j)),
        pl.BlockSpec((1, tn), lambda i, j, k: (0, j)),
    ]
    args = [x, w, b.reshape(1, N)]
    if ln is not None:
        g, gb = ln
        in_specs += [pl.BlockSpec((1, K), lambda i, j, k: (0, 0)),
                     pl.BlockSpec((1, K), lambda i, j, k: (0, 0))]
        args += [g.reshape(1, K), gb.reshape(1, K)]
    if residual is not None:
        in_specs.append(pl.BlockSpec((tm, tn), lambda i, j, k: (i, j)))
        args.append(residual)

    kernel = functools.partial(
        _matmul_kernel, activation=activation,
        has_ln=ln is not None, has_residual=residual is not None, ln_eps=ln_eps)

    return pl.pallas_call(
        kernel,
        out_shape=jax.ShapeDtypeStruct((M, N), jnp.float32),
        grid=grid,
        in_specs=in_specs,
        out_specs=pl.BlockSpec((tm, tn), lambda i, j, k: (i, j)),
        scratch_shapes=[pltpu.VMEM((tm, tn), jnp.float32)],
        compiler_params=pltpu.CompilerParams(
            dimension_semantics=("parallel", "parallel", "arbitrary")),
    )(*args)


def _layernorm_kernel(x_ref, g_ref, b_ref, o_ref, *, eps):
    x = x_ref[...]
    mu = jnp.mean(x, axis=-1, keepdims=True)
    var = jnp.mean(jnp.square(x - mu), axis=-1, keepdims=True)
    o_ref[...] = (x - mu) * jax.lax.rsqrt(var + eps) * g_ref[...] + b_ref[...]


def layer_norm(x, g, b, eps=1e-5):
    """Standalone LayerNorm, tiled over M.  Used only where no matmul consumes it."""
    M, D = x.shape
    tm = _tile(M, (512,) + _TM_CANDIDATES)
    return pl.pallas_call(
        functools.partial(_layernorm_kernel, eps=eps),
        out_shape=jax.ShapeDtypeStruct((M, D), jnp.float32),
        grid=(M // tm,),
        in_specs=[
            pl.BlockSpec((tm, D), lambda i: (i, 0)),
            pl.BlockSpec((1, D), lambda i: (0, 0)),
            pl.BlockSpec((1, D), lambda i: (0, 0)),
        ],
        out_specs=pl.BlockSpec((tm, D), lambda i: (i, 0)),
        compiler_params=pltpu.CompilerParams(dimension_semantics=("parallel",)),
    )(x, g.reshape(1, D), b.reshape(1, D))


def _attention_kernel(qkv_ref, bias_ref, o_ref, *, h, dk, scale):
    """One batch element: qkv (S, 3*d_model) f32, additive key mask bias (1, S)."""
    qkv = qkv_ref[0]          # (S, 3*d_model)
    bias = bias_ref[0]        # (1, S): 0 = keep, -1e9 = padded key
    d_model = h * dk
    heads = []
    for hh in range(h):       # static unroll over heads, slices stay in VMEM/vregs
        q = qkv[:, hh * dk:(hh + 1) * dk].astype(jnp.bfloat16)
        kk = qkv[:, d_model + hh * dk:d_model + (hh + 1) * dk].astype(jnp.bfloat16)
        v = qkv[:, 2 * d_model + hh * dk:2 * d_model + (hh + 1) * dk].astype(jnp.bfloat16)
        s = jnp.dot(q, kk.T, preferred_element_type=jnp.float32) * scale + bias
        s = s - jnp.max(s, axis=-1, keepdims=True)          # f32 softmax (mask-safe)
        p = jnp.exp(s)
        inv = pl.reciprocal(jnp.sum(p, axis=-1, keepdims=True), approx=True)
        p = (p * inv).astype(jnp.bfloat16)
        heads.append(jnp.dot(p, v, preferred_element_type=jnp.float32))
    # Single lane-dense (S, d_model) store instead of per-head partial stores.
    o_ref[0] = jnp.concatenate(heads, axis=-1)


def attention(qkv, mask_bias, h):
    """qkv: (B, S, 3*d_model) f32; mask_bias: (B, 1, S) f32 -> (B, S, d_model) f32."""
    B, S, three_d = qkv.shape
    d_model = three_d // 3
    dk = d_model // h
    scale = 1.0 / math.sqrt(dk)
    return pl.pallas_call(
        functools.partial(_attention_kernel, h=h, dk=dk, scale=scale),
        out_shape=jax.ShapeDtypeStruct((B, S, d_model), jnp.float32),
        grid=(B,),
        in_specs=[
            pl.BlockSpec((1, S, three_d), lambda b: (b, 0, 0)),
            pl.BlockSpec((1, 1, S), lambda b: (b, 0, 0)),
        ],
        out_specs=pl.BlockSpec((1, S, d_model), lambda b: (b, 0, 0)),
        compiler_params=pltpu.CompilerParams(dimension_semantics=("parallel",)),
    )(qkv, mask_bias)


# ----------------------------- parameter setup --------------------------------


def xavier_uniform(key, shape, dtype=jnp.float32):
    fan_in, fan_out = shape[0], shape[-1]
    limit = math.sqrt(6.0 / (fan_in + fan_out))
    return jax.random.uniform(key, shape, jnp.float32, -limit, limit).astype(dtype)


def init_bert_params(key, vocab_size, max_len, n_layers, d_model, d_ff, h):
    keys = iter(jax.random.split(key, 16 + 4 * n_layers))
    nk = lambda: next(keys)
    z = lambda *s: jnp.zeros(s, jnp.float32)
    o = lambda *s: jnp.ones(s, jnp.float32)
    bf = jnp.bfloat16

    params = {
        "token_emb": xavier_uniform(nk(), (vocab_size, d_model)),
        "segment_emb": xavier_uniform(nk(), (2, d_model)),
        "pos_emb": xavier_uniform(nk(), (max_len, d_model)),
        "enc_ln_g": o(d_model), "enc_ln_b": z(d_model),
        # MaskLM head: Linear -> ReLU -> LayerNorm(d_ff) -> Linear(vocab)
        "mlm_w1": xavier_uniform(nk(), (d_model, d_ff), bf), "mlm_b1": z(d_ff),
        "mlm_ln_g": o(d_ff), "mlm_ln_b": z(d_ff),
        "mlm_w2": xavier_uniform(nk(), (d_ff, vocab_size), bf), "mlm_b2": z(vocab_size),
        # NSP head: Linear -> Tanh -> Linear(2)
        "nsp_w1": xavier_uniform(nk(), (d_model, d_model), bf), "nsp_b1": z(d_model),
        "nsp_wo": xavier_uniform(nk(), (d_model, 2), bf), "nsp_bo": z(2),
        "layers": [],
    }
    for _ in range(n_layers):
        params["layers"].append({
            "ln1_g": o(d_model), "ln1_b": z(d_model),
            "wqkv": xavier_uniform(nk(), (d_model, 3 * d_model), bf),
            "bqkv": z(3 * d_model),
            "wo": xavier_uniform(nk(), (d_model, d_model), bf), "bo": z(d_model),
            "ln2_g": o(d_model), "ln2_b": z(d_model),
            "w1": xavier_uniform(nk(), (d_model, d_ff), bf), "b1": z(d_ff),
            "w2": xavier_uniform(nk(), (d_ff, d_model), bf), "b2": z(d_model),
        })
    return params


# ------------------------------- forward pass ---------------------------------


def bert_forward(params, tokens, segments, valid_lens, pred_positions, *, h):
    B, S = tokens.shape
    d_model = params["token_emb"].shape[1]

    # Embedding gathers are glue (plain JAX); all heavy compute is in kernels.
    x = (jnp.take(params["token_emb"], tokens, axis=0)
         + jnp.take(params["segment_emb"], segments, axis=0)
         + params["pos_emb"][:S][None, :, :])

    # Additive key-padding mask bias: 0 for valid keys, -1e9 for padded keys.
    keep = (jnp.arange(S)[None, :] < valid_lens[:, None]).astype(jnp.float32)
    mask_bias = ((keep - 1.0) * 1e9)[:, None, :]           # (B, 1, S) f32

    x2 = x.reshape(B * S, d_model).astype(jnp.float32)
    for layer in params["layers"]:
        # --- self-attention sublayer: x + Wo(attn(QKV(LN(x)))) ---
        qkv = linear(x2, layer["wqkv"], layer["bqkv"],
                     ln=(layer["ln1_g"], layer["ln1_b"]))          # fused LN + QKV
        a = attention(qkv.reshape(B, S, 3 * d_model), mask_bias, h)
        x2 = linear(a.reshape(B * S, d_model), layer["wo"], layer["bo"],
                    residual=x2)                                   # fused residual
        # --- position-wise feed-forward sublayer: x + W2(relu(W1(LN(x)))) ---
        hid = linear(x2, layer["w1"], layer["b1"], activation="relu",
                     ln=(layer["ln2_g"], layer["ln2_b"]))          # fused LN + ReLU
        x2 = linear(hid, layer["w2"], layer["b2"], residual=x2)    # fused residual
    x2 = layer_norm(x2, params["enc_ln_g"], params["enc_ln_b"])
    encoded = x2.reshape(B, S, d_model)

    # ---- MaskLM head: gather predicted positions, then MLP ----
    P = pred_positions.shape[1]
    batch_idx = jnp.repeat(jnp.arange(B), P)
    masked_x = encoded[batch_idx, pred_positions.reshape(-1)]      # (B*P, d_model)
    m1 = linear(masked_x, params["mlm_w1"], params["mlm_b1"], activation="relu")
    mlm_y = linear(m1, params["mlm_w2"], params["mlm_b2"],
                   ln=(params["mlm_ln_g"], params["mlm_ln_b"]))    # LN fused into vocab proj
    mlm_y = mlm_y.reshape(B, P, -1)

    # ---- NSP head on the [CLS] (position 0) token ----
    cls = encoded[:, 0, :]                                         # (B, d_model)
    n1 = linear(cls, params["nsp_w1"], params["nsp_b1"], activation="tanh")
    nsp_y = linear(n1, params["nsp_wo"], params["nsp_bo"])         # (B, 2)

    return encoded, mlm_y, nsp_y


# ----------------------------------- main --------------------------------------


if __name__ == "__main__":
    # Small shapes consistent with the module (lane-dense d_model = 128).
    vocab_size = 256
    max_len = 64
    n_layers = 2     # reference default 12, scaled down
    d_model = 128    # reference default 768, scaled down
    d_ff = 512
    h = 4
    B, S, P = 2, 8, 4

    root = jax.random.PRNGKey(0)
    k_params, k_tok, k_seg, k_pred = jax.random.split(root, 4)

    params = init_bert_params(k_params, vocab_size, max_len, n_layers, d_model, d_ff, h)

    tokens = jax.random.randint(k_tok, (B, S), 0, vocab_size, dtype=jnp.int32)
    segments = jax.random.randint(k_seg, (B, S), 0, 2, dtype=jnp.int32)
    valid_lens = jnp.array([S, S - 3], dtype=jnp.int32)
    pred_positions = jax.random.randint(k_pred, (B, P), 0, S, dtype=jnp.int32)

    fwd = jax.jit(functools.partial(bert_forward, h=h))
    encoded, mlm_y, nsp_y = fwd(params, tokens, segments, valid_lens, pred_positions)
    jax.block_until_ready((encoded, mlm_y, nsp_y))

    assert encoded.shape == (B, S, d_model)
    assert mlm_y.shape == (B, P, vocab_size)
    assert nsp_y.shape == (B, 2)
    assert bool(jnp.all(jnp.isfinite(encoded)))
    assert bool(jnp.all(jnp.isfinite(mlm_y)))
    assert bool(jnp.all(jnp.isfinite(nsp_y)))
    print("KERNEL_OK")
</pallas_src>

<mosaic_0001>
module attributes {stable_mosaic.version = 11 : i64} {
  func.func @_matmul_kernel(%arg0: i32, %arg1: i32, %arg2: i32, %arg3: memref<16x128xf32, #tpu.memory_space<vmem>>, %arg4: memref<128x128xbf16, #tpu.memory_space<vmem>>, %arg5: memref<1x128xf32, #tpu.memory_space<vmem>>, %arg6: memref<16x128xf32, #tpu.memory_space<vmem>>, %arg7: memref<16x128xf32, #tpu.memory_space<vmem>>, %arg8: memref<16x128xf32, #tpu.memory_space<vmem>>) attributes {dimension_semantics = [#tpu.dimension_semantics<parallel>, #tpu.dimension_semantics<parallel>, #tpu.dimension_semantics<arbitrary>], iteration_bounds = array<i64: 1, 1, 1>, scalar_prefetch = 0 : i64, scratch_operands = 1 : i64, tpu.core_type = #tpu.core_type<tc>, window_params = [{transform_indices = @transform_0, window_bounds = array<i64: 16, 128>}, {transform_indices = @transform_1, window_bounds = array<i64: 128, 128>}, {transform_indices = @transform_2, window_bounds = array<i64: 1, 128>}, {transform_indices = @transform_3, window_bounds = array<i64: 16, 128>}, {transform_indices = @transform_4, window_bounds = array<i64: 16, 128>}]} {
    %c0_i32 = arith.constant 0 : i32
    %0 = arith.cmpi eq, %arg2, %c0_i32 : i32
    %1 = arith.extui %0 : i1 to i32
    %c0_i32_0 = arith.constant 0 : i32
    %2 = arith.cmpi ne, %1, %c0_i32_0 : i32
    scf.if %2 {
      %cst_10 = arith.constant 0.000000e+00 : f32
      %13 = vector.broadcast %cst_10 : f32 to vector<16x128xf32>
      %c0_11 = arith.constant 0 : index
      %c0_12 = arith.constant 0 : index
      %14 = vector.load %arg8[%c0_11, %c0_12] : memref<16x128xf32, #tpu.memory_space<vmem>>, vector<16x128xf32>
      tpu.vector_store %arg8[%c0_11, %c0_12], %13 {strides = array<i32>} : memref<16x128xf32, #tpu.memory_space<vmem>>, vector<16x128xf32>,
    } else {
    }
    %c0 = arith.constant 0 : index
    %c0_1 = arith.constant 0 : index
    %3 = vector.load %arg3[%c0, %c0_1] : memref<16x128xf32, #tpu.memory_space<vmem>>, vector<16x128xf32>
    %c0_2 = arith.constant 0 : index
    %c0_3 = arith.constant 0 : index
    %4 = vector.load %arg8[%c0_2, %c0_3] : memref<16x128xf32, #tpu.memory_space<vmem>>, vector<16x128xf32>
    %5 = arith.truncf %3 : vector<16x128xf32> to vector<16x128xbf16>
    %c0_4 = arith.constant 0 : index
    %c0_5 = arith.constant 0 : index
    %6 = vector.load %arg4[%c0_4, %c0_5] : memref<128x128xbf16, #tpu.memory_space<vmem>>, vector<128x128xbf16>
    %cst = arith.constant dense<0.000000e+00> : vector<16x128xf32>
    %7 = tpu.matmul %5, %6, %cst {dimension_numbers = #tpu.dot_dimension_numbers<[1], [0], [0], [1], [0, 0, 1, 1], [], []>} : vector<16x128xbf16>, vector<128x128xbf16>, vector<16x128xf32> -> vector<16x128xf32>
    %8 = arith.addf %4, %7 : vector<16x128xf32>
    %c0_6 = arith.constant 0 : index
    %c0_7 = arith.constant 0 : index
    %9 = vector.load %arg8[%c0_6, %c0_7] : memref<16x128xf32, #tpu.memory_space<vmem>>, vector<16x128xf32>
    tpu.vector_store %arg8[%c0_6, %c0_7], %8 {strides = array<i32>} : memref<16x128xf32, #tpu.memory_space<vmem>>, vector<16x128xf32>,
    %c0_i32_8 = arith.constant 0 : i32
    %10 = arith.cmpi eq, %arg2, %c0_i32_8 : i32
    %11 = arith.extui %10 : i1 to i32
    %c0_i32_9 = arith.constant 0 : i32
    %12 = arith.cmpi ne, %11, %c0_i32_9 : i32
    scf.if %12 {
      %c0_10 = arith.constant 0 : index
      %c0_11 = arith.constant 0 : index
      %13 = vector.load %arg8[%c0_10, %c0_11] : memref<16x128xf32, #tpu.memory_space<vmem>>, vector<16x128xf32>
      %c0_12 = arith.constant 0 : index
      %c0_13 = arith.constant 0 : index
      %14 = vector.load %arg5[%c0_12, %c0_13] : memref<1x128xf32, #tpu.memory_space<vmem>>, vector<1x128xf32>
      %15 = vector.broadcast %14 : vector<1x128xf32> to vector<16x128xf32>
      %16 = arith.addf %13, %15 : vector<16x128xf32>
      %c0_14 = arith.constant 0 : index
      %c0_15 = arith.constant 0 : index
      %17 = vector.load %arg6[%c0_14, %c0_15] : memref<16x128xf32, #tpu.memory_space<vmem>>, vector<16x128xf32>
      %18 = arith.addf %16, %17 : vector<16x128xf32>
      %c0_16 = arith.constant 0 : index
      %c0_17 = arith.constant 0 : index
      %19 = vector.load %arg7[%c0_16, %c0_17] : memref<16x128xf32, #tpu.memory_space<vmem>>, vector<16x128xf32>
      tpu.vector_store %arg7[%c0_16, %c0_17], %18 {strides = array<i32>} : memref<16x128xf32, #tpu.memory_space<vmem>>, vector<16x128xf32>,
    } else {
    }
    return
  }
  func.func @transform_0(%arg0: i32, %arg1: i32, %arg2: i32) -> (i32, i32) {
    %c0_i32 = arith.constant 0 : i32
    return %arg0, %arg2 : i32, i32
  }
  func.func @transform_1(%arg0: i32, %arg1: i32, %arg2: i32) -> (i32, i32) {
    %c0_i32 = arith.constant 0 : i32
    return %arg2, %arg1 : i32, i32
  }
  func.func @transform_2(%arg0: i32, %arg1: i32, %arg2: i32) -> (i32, i32) {
    %c0_i32 = arith.constant 0 : i32
    %c0_i32_0 = arith.constant 0 : i32
    return %c0_i32, %arg1 : i32, i32
  }
  func.func @transform_3(%arg0: i32, %arg1: i32, %arg2: i32) -> (i32, i32) {
    %c0_i32 = arith.constant 0 : i32
    return %arg0, %arg1 : i32, i32
  }
  func.func @transform_4(%arg0: i32, %arg1: i32, %arg2: i32) -> (i32, i32) {
    %c0_i32 = arith.constant 0 : i32
    return %arg0, %arg1 : i32, i32
  }
}

module attributes {stable_mosaic.version = 11 : i64} {
  func.func @_matmul_kernel(%arg0: i32, %arg1: i32, %arg2: i32, %arg3: memref<16x128xf32, #tpu.memory_space<vmem>>, %arg4: memref<128x128xbf16, #tpu.memory_space<vmem>>, %arg5: memref<1x128xf32, #tpu.memory_space<vmem>>, %arg6: memref<1x128xf32, #tpu.memory_space<vmem>>, %arg7: memref<1x128xf32, #tpu.memory_space<vmem>>, %arg8: memref<16x128xf32, #tpu.memory_space<vmem>>, %arg9: memref<16x128xf32, #tpu.memory_space<vmem>>) attributes {dimension_semantics = [#tpu.dimension_semantics<parallel>, #tpu.dimension_semantics<parallel>, #tpu.dimension_semantics<arbitrary>], iteration_bounds = array<i64: 1, 3, 1>, scalar_prefetch = 0 : i64, scratch_operands = 1 : i64, tpu.core_type = #tpu.core_type<tc>, window_params = [{transform_indices = @transform_0, window_bounds = array<i64: 16, 128>}, {transform_indices = @transform_1, window_bounds = array<i64: 128, 128>}, {transform_indices = @transform_2, window_bounds = array<i64: 1, 128>}, {pipeline_mode = #tpu.pipeline_mode<synchronous>, transform_indices = @transform_3, window_bounds = array<i64: 1, 128>}, {pipeline_mode = #tpu.pipeline_mode<synchronous>, transform_indices = @transform_4, window_bounds = array<i64: 1, 128>}, {transform_indices = @transform_5, window_bounds = array<i64: 16, 128>}]} {
    %c0_i32 = arith.constant 0 : i32
    %0 = arith.cmpi eq, %arg2, %c0_i32 : i32
    %1 = arith.extui %0 : i1 to i32
    %c0_i32_0 = arith.constant 0 : i32
    %2 = arith.cmpi ne, %1, %c0_i32_0 : i32
    scf.if %2 {
      %cst_19 = arith.constant 0.000000e+00 : f32
      %37 = vector.broadcast %cst_19 : f32 to vector<16x128xf32>
      %c0_20 = arith.constant 0 : index
      %c0_21 = arith.constant 0 : index
      %38 = vector.load %arg9[%c0_20, %c0_21] : memref<16x128xf32, #tpu.memory_space<vmem>>, vector<16x128xf32>
      tpu.vector_store %arg9[%c0_20, %c0_21], %37 {strides = array<i32>} : memref<16x128xf32, #tpu.memory_space<vmem>>, vector<16x128xf32>,
    } else {
    }
    %c0 = arith.constant 0 : index
    %c0_1 = arith.constant 0 : index
    %3 = vector.load %arg3[%c0, %c0_1] : memref<16x128xf32, #tpu.memory_space<vmem>>, vector<16x128xf32>
    %cst = arith.constant dense<0.000000e+00> : vector<16xf32>
    %4 = vector.multi_reduction <add>, %3, %cst [1] : vector<16x128xf32> to vector<16xf32>
    %5 = vector.shape_cast %4 : vector<16xf32> to vector<16x1xf32>
    %cst_2 = arith.constant 1.280000e+02 : f32
    %6 = vector.broadcast %cst_2 : f32 to vector<16x1xf32>
    %7 = arith.divf %5, %6 : vector<16x1xf32>
    %8 = vector.broadcast %7 : vector<16x1xf32> to vector<16x128xf32>
    %9 = arith.subf %3, %8 : vector<16x128xf32>
    %10 = arith.mulf %9, %9 : vector<16x128xf32>
    %cst_3 = arith.constant dense<0.000000e+00> : vector<16xf32>
    %11 = vector.multi_reduction <add>, %10, %cst_3 [1] : vector<16x128xf32> to vector<16xf32>
    %12 = vector.shape_cast %11 : vector<16xf32> to vector<16x1xf32>
    %cst_4 = arith.constant 1.280000e+02 : f32
    %13 = vector.broadcast %cst_4 : f32 to vector<16x1xf32>
    %14 = arith.divf %12, %13 : vector<16x1xf32>
    %15 = vector.broadcast %7 : vector<16x1xf32> to vector<16x128xf32>
    %16 = arith.subf %3, %15 : vector<16x128xf32>
    %cst_5 = arith.constant 9.99999974E-6 : f32
    %17 = vector.broadcast %cst_5 : f32 to vector<16x1xf32>
    %18 = arith.addf %14, %17 : vector<16x1xf32>
    %19 = math.rsqrt %18 : vector<16x1xf32>
    %20 = vector.broadcast %19 : vector<16x1xf32> to vector<16x128xf32>
    %21 = arith.mulf %16, %20 : vector<16x128xf32>
    %c0_6 = arith.constant 0 : index
    %c0_7 = arith.constant 0 : index
    %22 = vector.load %arg6[%c0_6, %c0_7] : memref<1x128xf32, #tpu.memory_space<vmem>>, vector<1x128xf32>
    %23 = vector.broadcast %22 : vector<1x128xf32> to vector<16x128xf32>
    %24 = arith.mulf %21, %23 : vector<16x128xf32>
    %c0_8 = arith.constant 0 : index
    %c0_9 = arith.constant 0 : index
    %25 = vector.load %arg7[%c0_8, %c0_9] : memref<1x128xf32, #tpu.memory_space<vmem>>, vector<1x128xf32>
    %26 = vector.broadcast %25 : vector<1x128xf32> to vector<16x128xf32>
    %27 = arith.addf %24, %26 : vector<16x128xf32>
    %c0_10 = arith.constant 0 : index
    %c0_11 = arith.constant 0 : index
    %28 = vector.load %arg9[%c0_10, %c0_11] : memref<16x128xf32, #tpu.memory_space<vmem>>, vector<16x128xf32>
    %29 = arith.truncf %27 : vector<16x128xf32> to vector<16x128xbf16>
    %c0_12 = arith.constant 0 : index
    %c0_13 = arith.constant 0 : index
    %30 = vector.load %arg4[%c0_12, %c0_13] : memref<128x128xbf16, #tpu.memory_space<vmem>>, vector<128x128xbf16>
    %cst_14 = arith.constant dense<0.000000e+00> : vector<16x128xf32>
    %31 = tpu.matmul %29, %30, %cst_14 {dimension_numbers = #tpu.dot_dimension_numbers<[1], [0], [0], [1], [0, 0, 1, 1], [], []>} : vector<16x128xbf16>, vector<128x128xbf16>, vector<16x128xf32> -> vector<16x128xf32>
    %32 = arith.addf %28, %31 : vector<16x128xf32>
    %c0_15 = arith.constant 0 : index
    %c0_16 = arith.constant 0 : index
    %33 = vector.load %arg9[%c0_15, %c0_16] : memref<16x128xf32, #tpu.memory_space<vmem>>, vector<16x128xf32>
    tpu.vector_store %arg9[%c0_15, %c0_16], %32 {strides = array<i32>} : memref<16x128xf32, #tpu.memory_space<vmem>>, vector<16x128xf32>,
    %c0_i32_17 = arith.constant 0 : i32
    %34 = arith.cmpi eq, %arg2, %c0_i32_17 : i32
    %35 = arith.extui %34 : i1 to i32
    %c0_i32_18 = arith.constant 0 : i32
    %36 = arith.cmpi ne, %35, %c0_i32_18 : i32
    scf.if %36 {
      %c0_19 = arith.constant 0 : index
      %c0_20 = arith.constant 0 : index
      %37 = vector.load %arg9[%c0_19, %c0_20] : memref<16x128xf32, #tpu.memory_space<vmem>>, vector<16x128xf32>
      %c0_21 = arith.constant 0 : index
      %c0_22 = arith.constant 0 : index
      %38 = vector.load %arg5[%c0_21, %c0_22] : memref<1x128xf32, #tpu.memory_space<vmem>>, vector<1x128xf32>
      %39 = vector.broadcast %38 : vector<1x128xf32> to vector<16x128xf32>
      %40 = arith.addf %37, %39 : vector<16x128xf32>
      %c0_23 = arith.constant 0 : index
      %c0_24 = arith.constant 0 : index
      %41 = vector.load %arg8[%c0_23, %c0_24] : memref<16x128xf32, #tpu.memory_space<vmem>>, vector<16x128xf32>
      tpu.vector_store %arg8[%c0_23, %c0_24], %40 {strides = array<i32>} : memref<16x128xf32, #tpu.memory_space<vmem>>, vector<16x128xf32>,
    } else {
    }
    return
  }
  func.func @transform_0(%arg0: i32, %arg1: i32, %arg2: i32) -> (i32, i32) {
    %c0_i32 = arith.constant 0 : i32
    return %arg0, %arg2 : i32, i32
  }
  func.func @transform_1(%arg0: i32, %arg1: i32, %arg2: i32) -> (i32, i32) {
    %c0_i32 = arith.constant 0 : i32
    return %arg2, %arg1 : i32, i32
  }
  func.func @transform_2(%arg0: i32, %arg1: i32, %arg2: i32) -> (i32, i32) {
    %c0_i32 = arith.constant 0 : i32
    %c0_i32_0 = arith.constant 0 : i32
    return %c0_i32, %arg1 : i32, i32
  }
  func.func @transform_3(%arg0: i32, %arg1: i32, %arg2: i32) -> (i32, i32) {
    %c0_i32 = arith.constant 0 : i32
    %c0_i32_0 = arith.constant 0 : i32
    %c0_i32_1 = arith.constant 0 : i32
    return %c0_i32, %c0_i32_0 : i32, i32
  }
  func.func @transform_4(%arg0: i32, %arg1: i32, %arg2: i32) -> (i32, i32) {
    %c0_i32 = arith.constant 0 : i32
    %c0_i32_0 = arith.constant 0 : i32
    %c0_i32_1 = arith.constant 0 : i32
    return %c0_i32, %c0_i32_0 : i32, i32
  }
  func.func @transform_5(%arg0: i32, %arg1: i32, %arg2: i32) -> (i32, i32) {
    %c0_i32 = arith.constant 0 : i32
    return %arg0, %arg1 : i32, i32
  }
}

module attributes {stable_mosaic.version = 11 : i64} {
  func.func @_matmul_kernel(%arg0: i32, %arg1: i32, %arg2: i32, %arg3: memref<16x128xf32, #tpu.memory_space<vmem>>, %arg4: memref<128x512xbf16, #tpu.memory_space<vmem>>, %arg5: memref<1x512xf32, #tpu.memory_space<vmem>>, %arg6: memref<1x128xf32, #tpu.memory_space<vmem>>, %arg7: memref<1x128xf32, #tpu.memory_space<vmem>>, %arg8: memref<16x512xf32, #tpu.memory_space<vmem>>, %arg9: memref<16x512xf32, #tpu.memory_space<vmem>>) attributes {dimension_semantics = [#tpu.dimension_semantics<parallel>, #tpu.dimension_semantics<parallel>, #tpu.dimension_semantics<arbitrary>], iteration_bounds = array<i64: 1, 1, 1>, scalar_prefetch = 0 : i64, scratch_operands = 1 : i64, tpu.core_type = #tpu.core_type<tc>, window_params = [{transform_indices = @transform_0, window_bounds = array<i64: 16, 128>}, {transform_indices = @transform_1, window_bounds = array<i64: 128, 512>}, {transform_indices = @transform_2, window_bounds = array<i64: 1, 512>}, {pipeline_mode = #tpu.pipeline_mode<synchronous>, transform_indices = @transform_3, window_bounds = array<i64: 1, 128>}, {pipeline_mode = #tpu.pipeline_mode<synchronous>, transform_indices = @transform_4, window_bounds = array<i64: 1, 128>}, {transform_indices = @transform_5, window_bounds = array<i64: 16, 512>}]} {
    %c0_i32 = arith.constant 0 : i32
    %0 = arith.cmpi eq, %arg2, %c0_i32 : i32
    %1 = arith.extui %0 : i1 to i32
    %c0_i32_0 = arith.constant 0 : i32
    %2 = arith.cmpi ne, %1, %c0_i32_0 : i32
    scf.if %2 {
      %cst_19 = arith.constant 0.000000e+00 : f32
      %37 = vector.broadcast %cst_19 : f32 to vector<16x512xf32>
      %c0_20 = arith.constant 0 : index
      %c0_21 = arith.constant 0 : index
      %38 = vector.load %arg9[%c0_20, %c0_21] : memref<16x512xf32, #tpu.memory_space<vmem>>, vector<16x512xf32>
      tpu.vector_store %arg9[%c0_20, %c0_21], %37 {strides = array<i32>} : memref<16x512xf32, #tpu.memory_space<vmem>>, vector<16x512xf32>,
    } else {
    }
    %c0 = arith.constant 0 : index
    %c0_1 = arith.constant 0 : index
    %3 = vector.load %arg3[%c0, %c0_1] : memref<16x128xf32, #tpu.memory_space<vmem>>, vector<16x128xf32>
    %cst = arith.constant dense<0.000000e+00> : vector<16xf32>
    %4 = vector.multi_reduction <add>, %3, %cst [1] : vector<16x128xf32> to vector<16xf32>
    %5 = vector.shape_cast %4 : vector<16xf32> to vector<16x1xf32>
    %cst_2 = arith.constant 1.280000e+02 : f32
    %6 = vector.broadcast %cst_2 : f32 to vector<16x1xf32>
    %7 = arith.divf %5, %6 : vector<16x1xf32>
    %8 = vector.broadcast %7 : vector<16x1xf32> to vector<16x128xf32>
    %9 = arith.subf %3, %8 : vector<16x128xf32>
    %10 = arith.mulf %9, %9 : vector<16x128xf32>
    %cst_3 = arith.constant dense<0.000000e+00> : vector<16xf32>
    %11 = vector.multi_reduction <add>, %10, %cst_3 [1] : vector<16x128xf32> to vector<16xf32>
    %12 = vector.shape_cast %11 : vector<16xf32> to vector<16x1xf32>
    %cst_4 = arith.constant 1.280000e+02 : f32
    %13 = vector.broadcast %cst_4 : f32 to vector<16x1xf32>
    %14 = arith.divf %12, %13 : vector<16x1xf32>
    %15 = vector.broadcast %7 : vector<16x1xf32> to vector<16x128xf32>
    %16 = arith.subf %3, %15 : vector<16x128xf32>
    %cst_5 = arith.constant 9.99999974E-6 : f32
    %17 = vector.broadcast %cst_5 : f32 to vector<16x1xf32>
    %18 = arith.addf %14, %17 : vector<16x1xf32>
    %19 = math.rsqrt %18 : vector<16x1xf32>
    %20 = vector.broadcast %19 : vector<16x1xf32> to vector<16x128xf32>
    %21 = arith.mulf %16, %20 : vector<16x128xf32>
    %c0_6 = arith.constant 0 : index
    %c0_7 = arith.constant 0 : index
    %22 = vector.load %arg6[%c0_6, %c0_7] : memref<1x128xf32, #tpu.memory_space<vmem>>, vector<1x128xf32>
    %23 = vector.broadcast %22 : vector<1x128xf32> to vector<16x128xf32>
    %24 = arith.mulf %21, %23 : vector<16x128xf32>
    %c0_8 = arith.constant 0 : index
    %c0_9 = arith.constant 0 : index
    %25 = vector.load %arg7[%c0_8, %c0_9] : memref<1x128xf32, #tpu.memory_space<vmem>>, vector<1x128xf32>
    %26 = vector.broadcast %25 : vector<1x128xf32> to vector<16x128xf32>
    %27 = arith.addf %24, %26 : vector<16x128xf32>
    %c0_10 = arith.constant 0 : index
    %c0_11 = arith.constant 0 : index
    %28 = vector.load %arg9[%c0_10, %c0_11] : memref<16x512xf32, #tpu.memory_space<vmem>>, vector<16x512xf32>
    %29 = arith.truncf %27 : vector<16x128xf32> to vector<16x128xbf16>
    %c0_12 = arith.constant 0 : index
    %c0_13 = arith.constant 0 : index
    %30 = vector.load %arg4[%c0_12, %c0_13] : memref<128x512xbf16, #tpu.memory_space<vmem>>, vector<128x512xbf16>
    %cst_14 = arith.constant dense<0.000000e+00> : vector<16x512xf32>
    %31 = tpu.matmul %29, %30, %cst_14 {dimension_numbers = #tpu.dot_dimension_numbers<[1], [0], [0], [1], [0, 0, 1, 1], [], []>} : vector<16x128xbf16>, vector<128x512xbf16>, vector<16x512xf32> -> vector<16x512xf32>
    %32 = arith.addf %28, %31 : vector<16x512xf32>
    %c0_15 = arith.constant 0 : index
    %c0_16 = arith.constant 0 : index
    %33 = vector.load %arg9[%c0_15, %c0_16] : memref<16x512xf32, #tpu.memory_space<vmem>>, vector<16x512xf32>
    tpu.vector_store %arg9[%c0_15, %c0_16], %32 {strides = array<i32>} : memref<16x512xf32, #tpu.memory_space<vmem>>, vector<16x512xf32>,
    %c0_i32_17 = arith.constant 0 : i32
    %34 = arith.cmpi eq, %arg2, %c0_i32_17 : i32
    %35 = arith.extui %34 : i1 to i32
    %c0_i32_18 = arith.constant 0 : i32
    %36 = arith.cmpi ne, %35, %c0_i32_18 : i32
    scf.if %36 {
      %c0_19 = arith.constant 0 : index
      %c0_20 = arith.constant 0 : index
      %37 = vector.load %arg9[%c0_19, %c0_20] : memref<16x512xf32, #tpu.memory_space<vmem>>, vector<16x512xf32>
      %c0_21 = arith.constant 0 : index
      %c0_22 = arith.constant 0 : index
      %38 = vector.load %arg5[%c0_21, %c0_22] : memref<1x512xf32, #tpu.memory_space<vmem>>, vector<1x512xf32>
      %39 = vector.broadcast %38 : vector<1x512xf32> to vector<16x512xf32>
      %40 = arith.addf %37, %39 : vector<16x512xf32>
      %cst_23 = arith.constant 0.000000e+00 : f32
      %41 = vector.broadcast %cst_23 : f32 to vector<16x512xf32>
      %42 = arith.maximumf %40, %41 : vector<16x512xf32>
      %c0_24 = arith.constant 0 : index
      %c0_25 = arith.constant 0 : index
      %43 = vector.load %arg8[%c0_24, %c0_25] : memref<16x512xf32, #tpu.memory_space<vmem>>, vector<16x512xf32>
      tpu.vector_store %arg8[%c0_24, %c0_25], %42 {strides = array<i32>} : memref<16x512xf32, #tpu.memory_space<vmem>>, vector<16x512xf32>,
    } else {
    }
    return
  }
  func.func @transform_0(%arg0: i32, %arg1: i32, %arg2: i32) -> (i32, i32) {
    %c0_i32 = arith.constant 0 : i32
    return %arg0, %arg2 : i32, i32
  }
  func.func @transform_1(%arg0: i32, %arg1: i32, %arg2: i32) -> (i32, i32) {
    %c0_i32 = arith.constant 0 : i32
    return %arg2, %arg1 : i32, i32
  }
  func.func @transform_2(%arg0: i32, %arg1: i32, %arg2: i32) -> (i32, i32) {
    %c0_i32 = arith.constant 0 : i32
    %c0_i32_0 = arith.constant 0 : i32
    return %c0_i32, %arg1 : i32, i32
  }
  func.func @transform_3(%arg0: i32, %arg1: i32, %arg2: i32) -> (i32, i32) {
    %c0_i32 = arith.constant 0 : i32
    %c0_i32_0 = arith.constant 0 : i32
    %c0_i32_1 = arith.constant 0 : i32
    return %c0_i32, %c0_i32_0 : i32, i32
  }
  func.func @transform_4(%arg0: i32, %arg1: i32, %arg2: i32) -> (i32, i32) {
    %c0_i32 = arith.constant 0 : i32
    %c0_i32_0 = arith.constant 0 : i32
    %c0_i32_1 = arith.constant 0 : i32
    return %c0_i32, %c0_i32_0 : i32, i32
  }
  func.func @transform_5(%arg0: i32, %arg1: i32, %arg2: i32) -> (i32, i32) {
    %c0_i32 = arith.constant 0 : i32
    return %arg0, %arg1 : i32, i32
  }
}

module attributes {stable_mosaic.version = 11 : i64} {
  func.func @_attention_kernel(%arg0: i32, %arg1: memref<1x8x384xf32, #tpu.memory_space<vmem>>, %arg2: memref<1x1x8xf32, #tpu.memory_space<vmem>>, %arg3: memref<1x8x128xf32, #tpu.memory_space<vmem>>) attributes {dimension_semantics = [#tpu.dimension_semantics<parallel>], iteration_bounds = array<i64: 2>, scalar_prefetch = 0 : i64, scratch_operands = 0 : i64, tpu.core_type = #tpu.core_type<tc>, window_params = [{transform_indices = @transform_0, window_bounds = array<i64: 1, 8, 384>}, {transform_indices = @transform_1, window_bounds = array<i64: 1, 1, 8>}, {transform_indices = @transform_2, window_bounds = array<i64: 1, 8, 128>}]} {
    %c0 = arith.constant 0 : index
    %c0_0 = arith.constant 0 : index
    %c0_1 = arith.constant 0 : index
    %0 = vector.load %arg1[%c0, %c0_0, %c0_1] : memref<1x8x384xf32, #tpu.memory_space<vmem>>, vector<1x8x384xf32>
    %1 = vector.shape_cast %0 : vector<1x8x384xf32> to vector<8x384xf32>
    %c0_2 = arith.constant 0 : index
    %c0_3 = arith.constant 0 : index
    %c0_4 = arith.constant 0 : index
    %2 = vector.load %arg2[%c0_2, %c0_3, %c0_4] : memref<1x1x8xf32, #tpu.memory_space<vmem>>, vector<1x1x8xf32>
    %3 = vector.shape_cast %2 : vector<1x1x8xf32> to vector<1x8xf32>
    %4 = vector.extract_strided_slice %1 {offsets = [0, 0], sizes = [8, 32], strides = [1, 1]} : vector<8x384xf32> to vector<8x32xf32>
    %5 = arith.truncf %4 : vector<8x32xf32> to vector<8x32xbf16>
    %6 = vector.extract_strided_slice %1 {offsets = [0, 128], sizes = [8, 32], strides = [1, 1]} : vector<8x384xf32> to vector<8x32xf32>
    %7 = arith.truncf %6 : vector<8x32xf32> to vector<8x32xbf16>
    %8 = vector.extract_strided_slice %1 {offsets = [0, 256], sizes = [8, 32], strides = [1, 1]} : vector<8x384xf32> to vector<8x32xf32>
    %9 = arith.truncf %8 : vector<8x32xf32> to vector<8x32xbf16>
    %10 = tpu.transpose %7, [1, 0] : vector<8x32xbf16> -> vector<32x8xbf16>
    %cst = arith.constant dense<0.000000e+00> : vector<8x8xf32>
    %11 = tpu.matmul %5, %10, %cst {dimension_numbers = #tpu.dot_dimension_numbers<[1], [0], [0], [1], [0, 0, 1, 1], [], []>} : vector<8x32xbf16>, vector<32x8xbf16>, vector<8x8xf32> -> vector<8x8xf32>
    %cst_5 = arith.constant 0.176776692 : f32
    %12 = vector.broadcast %cst_5 : f32 to vector<8x8xf32>
    %13 = arith.mulf %11, %12 : vector<8x8xf32>
    %14 = vector.broadcast %3 : vector<1x8xf32> to vector<8x8xf32>
    %15 = arith.addf %13, %14 : vector<8x8xf32>
    %cst_6 = arith.constant dense<0xFF800000> : vector<8xf32>
    %16 = vector.multi_reduction <maximumf>, %15, %cst_6 [1] : vector<8x8xf32> to vector<8xf32>
    %17 = vector.shape_cast %16 : vector<8xf32> to vector<8x1xf32>
    %18 = vector.broadcast %17 : vector<8x1xf32> to vector<8x8xf32>
    %19 = arith.subf %15, %18 : vector<8x8xf32>
    %20 = math.exp %19 : vector<8x8xf32>
    %cst_7 = arith.constant dense<0.000000e+00> : vector<8xf32>
    %21 = vector.multi_reduction <add>, %20, %cst_7 [1] : vector<8x8xf32> to vector<8xf32>
    %22 = vector.shape_cast %21 : vector<8xf32> to vector<8x1xf32>
    %23 = tpu.reciprocal %22 {approx = true} : vector<8x1xf32> -> vector<8x1xf32>
    %24 = vector.broadcast %23 : vector<8x1xf32> to vector<8x8xf32>
    %25 = arith.mulf %20, %24 : vector<8x8xf32>
    %26 = arith.truncf %25 : vector<8x8xf32> to vector<8x8xbf16>
    %cst_8 = arith.constant dense<0.000000e+00> : vector<8x32xf32>
    %27 = tpu.matmul %26, %9, %cst_8 {dimension_numbers = #tpu.dot_dimension_numbers<[1], [0], [0], [1], [0, 0, 1, 1], [], []>} : vector<8x8xbf16>, vector<8x32xbf16>, vector<8x32xf32> -> vector<8x32xf32>
    %28 = vector.extract_strided_slice %1 {offsets = [0, 32], sizes = [8, 32], strides = [1, 1]} : vector<8x384xf32> to vector<8x32xf32>
    %29 = arith.truncf %28 : vector<8x32xf32> to vector<8x32xbf16>
    %30 = vector.extract_strided_slice %1 {offsets = [0, 160], sizes = [8, 32], strides = [1, 1]} : vector<8x384xf32> to vector<8x32xf32>
    %31 = arith.truncf %30 : vector<8x32xf32> to vector<8x32xbf16>
    %32 = vector.extract_strided_slice %1 {offsets = [0, 288], sizes = [8, 32], strides = [1, 1]} : vector<8x384xf32> to vector<8x32xf32>
    %33 = arith.truncf %32 : vector<8x32xf32> to vector<8x32xbf16>
    %34 = tpu.transpose %31, [1, 0] : vector<8x32xbf16> -> vector<32x8xbf16>
    %cst_9 = arith.constant dense<0.000000e+00> : vector<8x8xf32>
    %35 = tpu.matmul %29, %34, %cst_9 {dimension_numbers = #tpu.dot_dimension_numbers<[1], [0], [0], [1], [0, 0, 1, 1], [], []>} : vector<8x32xbf16>, vector<32x8xbf16>, vector<8x8xf32> -> vector<8x8xf32>
    %cst_10 = arith.constant 0.176776692 : f32
    %36 = vector.broadcast %cst_10 : f32 to vector<8x8xf32>
    %37 = arith.mulf %35, %36 : vector<8x8xf32>
    %38 = vector.broadcast %3 : vector<1x8xf32> to vector<8x8xf32>
    %39 = arith.addf %37, %38 : vector<8x8xf32>
    %cst_11 = arith.constant dense<0xFF800000> : vector<8xf32>
    %40 = vector.multi_reduction <maximumf>, %39, %cst_11 [1] : vector<8x8xf32> to vector<8xf32>
    %41 = vector.shape_cast %40 : vector<8xf32> to vector<8x1xf32>
    %42 = vector.broadcast %41 : vector<8x1xf32> to vector<8x8xf32>
    %43 = arith.subf %39, %42 : vector<8x8xf32>
    %44 = math.exp %43 : vector<8x8xf32>
    %cst_12 = arith.constant dense<0.000000e+00> : vector<8xf32>
    %45 = vector.multi_reduction <add>, %44, %cst_12 [1] : vector<8x8xf32> to vector<8xf32>
    %46 = vector.shape_cast %45 : vector<8xf32> to vector<8x1xf32>
    %47 = tpu.reciprocal %46 {approx = true} : vector<8x1xf32> -> vector<8x1xf32>
    %48 = vector.broadcast %47 : vector<8x1xf32> to vector<8x8xf32>
    %49 = arith.mulf %44, %48 : vector<8x8xf32>
    %50 = arith.truncf %49 : vector<8x8xf32> to vector<8x8xbf16>
    %cst_13 = arith.constant dense<0.000000e+00> : vector<8x32xf32>
    %51 = tpu.matmul %50, %33, %cst_13 {dimension_numbers = #tpu.dot_dimension_numbers<[1], [0], [0], [1], [0, 0, 1, 1], [], []>} : vector<8x8xbf16>, vector<8x32xbf16>, vector<8x32xf32> -> vector<8x32xf32>
    %52 = vector.extract_strided_slice %1 {offsets = [0, 64], sizes = [8, 32], strides = [1, 1]} : vector<8x384xf32> to vector<8x32xf32>
    %53 = arith.truncf %52 : vector<8x32xf32> to vector<8x32xbf16>
    %54 = vector.extract_strided_slice %1 {offsets = [0, 192], sizes = [8, 32], strides = [1, 1]} : vector<8x384xf32> to vector<8x32xf32>
    %55 = arith.truncf %54 : vector<8x32xf32> to vector<8x32xbf16>
    %56 = vector.extract_strided_slice %1 {offsets = [0, 320], sizes = [8, 32], strides = [1, 1]} : vector<8x384xf32> to vector<8x32xf32>
    %57 = arith.truncf %56 : vector<8x32xf32> to vector<8x32xbf16>
    %58 = tpu.transpose %55, [1, 0] : vector<8x32xbf16> -> vector<32x8xbf16>
    %cst_14 = arith.constant dense<0.000000e+00> : vector<8x8xf32>
    %59 = tpu.matmul %53, %58, %cst_14 {dimension_numbers = #tpu.dot_dimension_numbers<[1], [0], [0], [1], [0, 0, 1, 1], [], []>} : vector<8x32xbf16>, vector<32x8xbf16>, vector<8x8xf32> -> vector<8x8xf32>
    %cst_15 = arith.constant 0.176776692 : f32
    %60 = vector.broadcast %cst_15 : f32 to vector<8x8xf32>
    %61 = arith.mulf %59, %60 : vector<8x8xf32>
    %62 = vector.broadcast %3 : vector<1x8xf32> to vector<8x8xf32>
    %63 = arith.addf %61, %62 : vector<8x8xf32>
    %cst_16 = arith.constant dense<0xFF800000> : vector<8xf32>
    %64 = vector.multi_reduction <maximumf>, %63, %cst_16 [1] : vector<8x8xf32> to vector<8xf32>
    %65 = vector.shape_cast %64 : vector<8xf32> to vector<8x1xf32>
    %66 = vector.broadcast %65 : vector<8x1xf32> to vector<8x8xf32>
    %67 = arith.subf %63, %66 : vector<8x8xf32>
    %68 = math.exp %67 : vector<8x8xf32>
    %cst_17 = arith.constant dense<0.000000e+00> : vector<8xf32>
    %69 = vector.multi_reduction <add>, %68, %cst_17 [1] : vector<8x8xf32> to vector<8xf32>
    %70 = vector.shape_cast %69 : vector<8xf32> to vector<8x1xf32>
    %71 = tpu.reciprocal %70 {approx = true} : vector<8x1xf32> -> vector<8x1xf32>
    %72 = vector.broadcast %71 : vector<8x1xf32> to vector<8x8xf32>
    %73 = arith.mulf %68, %72 : vector<8x8xf32>
    %74 = arith.truncf %73 : vector<8x8xf32> to vector<8x8xbf16>
    %cst_18 = arith.constant dense<0.000000e+00> : vector<8x32xf32>
    %75 = tpu.matmul %74, %57, %cst_18 {dimension_numbers = #tpu.dot_dimension_numbers<[1], [0], [0], [1], [0, 0, 1, 1], [], []>} : vector<8x8xbf16>, vector<8x32xbf16>, vector<8x32xf32> -> vector<8x32xf32>
    %76 = vector.extract_strided_slice %1 {offsets = [0, 96], sizes = [8, 32], strides = [1, 1]} : vector<8x384xf32> to vector<8x32xf32>
    %77 = arith.truncf %76 : vector<8x32xf32> to vector<8x32xbf16>
    %78 = vector.extract_strided_slice %1 {offsets = [0, 224], sizes = [8, 32], strides = [1, 1]} : vector<8x384xf32> to vector<8x32xf32>
    %79 = arith.truncf %78 : vector<8x32xf32> to vector<8x32xbf16>
    %80 = vector.extract_strided_slice %1 {offsets = [0, 352], sizes = [8, 32], strides = [1, 1]} : vector<8x384xf32> to vector<8x32xf32>
    %81 = arith.truncf %80 : vector<8x32xf32> to vector<8x32xbf16>
    %82 = tpu.transpose %79, [1, 0] : vector<8x32xbf16> -> vector<32x8xbf16>
    %cst_19 = arith.constant dense<0.000000e+00> : vector<8x8xf32>
    %83 = tpu.matmul %77, %82, %cst_19 {dimension_numbers = #tpu.dot_dimension_numbers<[1], [0], [0], [1], [0, 0, 1, 1], [], []>} : vector<8x32xbf16>, vector<32x8xbf16>, vector<8x8xf32> -> vector<8x8xf32>
    %cst_20 = arith.constant 0.176776692 : f32
    %84 = vector.broadcast %cst_20 : f32 to vector<8x8xf32>
    %85 = arith.mulf %83, %84 : vector<8x8xf32>
    %86 = vector.broadcast %3 : vector<1x8xf32> to vector<8x8xf32>
    %87 = arith.addf %85, %86 : vector<8x8xf32>
    %cst_21 = arith.constant dense<0xFF800000> : vector<8xf32>
    %88 = vector.multi_reduction <maximumf>, %87, %cst_21 [1] : vector<8x8xf32> to vector<8xf32>
    %89 = vector.shape_cast %88 : vector<8xf32> to vector<8x1xf32>
    %90 = vector.broadcast %89 : vector<8x1xf32> to vector<8x8xf32>
    %91 = arith.subf %87, %90 : vector<8x8xf32>
    %92 = math.exp %91 : vector<8x8xf32>
    %cst_22 = arith.constant dense<0.000000e+00> : vector<8xf32>
    %93 = vector.multi_reduction <add>, %92, %cst_22 [1] : vector<8x8xf32> to vector<8xf32>
    %94 = vector.shape_cast %93 : vector<8xf32> to vector<8x1xf32>
    %95 = tpu.reciprocal %94 {approx = true} : vector<8x1xf32> -> vector<8x1xf32>
    %96 = vector.broadcast %95 : vector<8x1xf32> to vector<8x8xf32>
    %97 = arith.mulf %92, %96 : vector<8x8xf32>
    %98 = arith.truncf %97 : vector<8x8xf32> to vector<8x8xbf16>
    %cst_23 = arith.constant dense<0.000000e+00> : vector<8x32xf32>
    %99 = tpu.matmul %98, %81, %cst_23 {dimension_numbers = #tpu.dot_dimension_numbers<[1], [0], [0], [1], [0, 0, 1, 1], [], []>} : vector<8x8xbf16>, vector<8x32xbf16>, vector<8x32xf32> -> vector<8x32xf32>
    %100 = tpu.concatenate %27, %51, %75, %99 in 1 : vector<8x32xf32>, vector<8x32xf32>, vector<8x32xf32>, vector<8x32xf32> -> vector<8x128xf32>
    %c0_24 = arith.constant 0 : index
    %c0_25 = arith.constant 0 : index
    %c0_26 = arith.constant 0 : index
    %101 = vector.load %arg3[%c0_24, %c0_25, %c0_26] : memref<1x8x128xf32, #tpu.memory_space<vmem>>, vector<1x8x128xf32>
    %102 = vector.shape_cast %101 : vector<1x8x128xf32> to vector<8x128xf32>
    %103 = vector.shape_cast %100 : vector<8x128xf32> to vector<1x8x128xf32>
    tpu.vector_store %arg3[%c0_24, %c0_25, %c0_26], %103 {strides = array<i32>} : memref<1x8x128xf32, #tpu.memory_space<vmem>>, vector<1x8x128xf32>,
    return
  }
  func.func @transform_0(%arg0: i32) -> (i32, i32, i32) {
    %c0_i32 = arith.constant 0 : i32
    %c0_i32_0 = arith.constant 0 : i32
    %c0_i32_1 = arith.constant 0 : i32
    return %arg0, %c0_i32, %c0_i32_0 : i32, i32, i32
  }
  func.func @transform_1(%arg0: i32) -> (i32, i32, i32) {
    %c0_i32 = arith.constant 0 : i32
    %c0_i32_0 = arith.constant 0 : i32
    %c0_i32_1 = arith.constant 0 : i32
    return %arg0, %c0_i32, %c0_i32_0 : i32, i32, i32
  }
  func.func @transform_2(%arg0: i32) -> (i32, i32, i32) {
    %c0_i32 = arith.constant 0 : i32
    %c0_i32_0 = arith.constant 0 : i32
    %c0_i32_1 = arith.constant 0 : i32
    return %arg0, %c0_i32, %c0_i32_0 : i32, i32, i32
  }
}

module attributes {stable_mosaic.version = 11 : i64} {
  func.func @_matmul_kernel(%arg0: i32, %arg1: i32, %arg2: i32, %arg3: memref<16x512xf32, #tpu.memory_space<vmem>>, %arg4: memref<512x128xbf16, #tpu.memory_space<vmem>>, %arg5: memref<1x128xf32, #tpu.memory_space<vmem>>, %arg6: memref<16x128xf32, #tpu.memory_space<vmem>>, %arg7: memref<16x128xf32, #tpu.memory_space<vmem>>, %arg8: memref<16x128xf32, #tpu.memory_space<vmem>>) attributes {dimension_semantics = [#tpu.dimension_semantics<parallel>, #tpu.dimension_semantics<parallel>, #tpu.dimension_semantics<arbitrary>], iteration_bounds = array<i64: 1, 1, 1>, scalar_prefetch = 0 : i64, scratch_operands = 1 : i64, tpu.core_type = #tpu.core_type<tc>, window_params = [{transform_indices = @transform_0, window_bounds = array<i64: 16, 512>}, {transform_indices = @transform_1, window_bounds = array<i64: 512, 128>}, {transform_indices = @transform_2, window_bounds = array<i64: 1, 128>}, {transform_indices = @transform_3, window_bounds = array<i64: 16, 128>}, {transform_indices = @transform_4, window_bounds = array<i64: 16, 128>}]} {
    %c0_i32 = arith.constant 0 : i32
    %0 = arith.cmpi eq, %arg2, %c0_i32 : i32
    %1 = arith.extui %0 : i1 to i32
    %c0_i32_0 = arith.constant 0 : i32
    %2 = arith.cmpi ne, %1, %c0_i32_0 : i32
    scf.if %2 {
      %cst_10 = arith.constant 0.000000e+00 : f32
      %13 = vector.broadcast %cst_10 : f32 to vector<16x128xf32>
      %c0_11 = arith.constant 0 : index
      %c0_12 = arith.constant 0 : index
      %14 = vector.load %arg8[%c0_11, %c0_12] : memref<16x128xf32, #tpu.memory_space<vmem>>, vector<16x128xf32>
      tpu.vector_store %arg8[%c0_11, %c0_12], %13 {strides = array<i32>} : memref<16x128xf32, #tpu.memory_space<vmem>>, vector<16x128xf32>,
    } else {
    }
    %c0 = arith.constant 0 : index
    %c0_1 = arith.constant 0 : index
    %3 = vector.load %arg3[%c0, %c0_1] : memref<16x512xf32, #tpu.memory_space<vmem>>, vector<16x512xf32>
    %c0_2 = arith.constant 0 : index
    %c0_3 = arith.constant 0 : index
    %4 = vector.load %arg8[%c0_2, %c0_3] : memref<16x128xf32, #tpu.memory_space<vmem>>, vector<16x128xf32>
    %5 = arith.truncf %3 : vector<16x512xf32> to vector<16x512xbf16>
    %c0_4 = arith.constant 0 : index
    %c0_5 = arith.constant 0 : index
    %6 = vector.load %arg4[%c0_4, %c0_5] : memref<512x128xbf16, #tpu.memory_space<vmem>>, vector<512x128xbf16>
    %cst = arith.constant dense<0.000000e+00> : vector<16x128xf32>
    %7 = tpu.matmul %5, %6, %cst {dimension_numbers = #tpu.dot_dimension_numbers<[1], [0], [0], [1], [0, 0, 1, 1], [], []>} : vector<16x512xbf16>, vector<512x128xbf16>, vector<16x128xf32> -> vector<16x128xf32>
    %8 = arith.addf %4, %7 : vector<16x128xf32>
    %c0_6 = arith.constant 0 : index
    %c0_7 = arith.constant 0 : index
    %9 = vector.load %arg8[%c0_6, %c0_7] : memref<16x128xf32, #tpu.memory_space<vmem>>, vector<16x128xf32>
    tpu.vector_store %arg8[%c0_6, %c0_7], %8 {strides = array<i32>} : memref<16x128xf32, #tpu.memory_space<vmem>>, vector<16x128xf32>,
    %c0_i32_8 = arith.constant 0 : i32
    %10 = arith.cmpi eq, %arg2, %c0_i32_8 : i32
    %11 = arith.extui %10 : i1 to i32
    %c0_i32_9 = arith.constant 0 : i32
    %12 = arith.cmpi ne, %11, %c0_i32_9 : i32
    scf.if %12 {
      %c0_10 = arith.constant 0 : index
      %c0_11 = arith.constant 0 : index
      %13 = vector.load %arg8[%c0_10, %c0_11] : memref<16x128xf32, #tpu.memory_space<vmem>>, vector<16x128xf32>
      %c0_12 = arith.constant 0 : index
      %c0_13 = arith.constant 0 : index
      %14 = vector.load %arg5[%c0_12, %c0_13] : memref<1x128xf32, #tpu.memory_space<vmem>>, vector<1x128xf32>
      %15 = vector.broadcast %14 : vector<1x128xf32> to vector<16x128xf32>
      %16 = arith.addf %13, %15 : vector<16x128xf32>
      %c0_14 = arith.constant 0 : index
      %c0_15 = arith.constant 0 : index
      %17 = vector.load %arg6[%c0_14, %c0_15] : memref<16x128xf32, #tpu.memory_space<vmem>>, vector<16x128xf32>
      %18 = arith.addf %16, %17 : vector<16x128xf32>
      %c0_16 = arith.constant 0 : index
      %c0_17 = arith.constant 0 : index
      %19 = vector.load %arg7[%c0_16, %c0_17] : memref<16x128xf32, #tpu.memory_space<vmem>>, vector<16x128xf32>
      tpu.vector_store %arg7[%c0_16, %c0_17], %18 {strides = array<i32>} : memref<16x128xf32, #tpu.memory_space<vmem>>, vector<16x128xf32>,
    } else {
    }
    return
  }
  func.func @transform_0(%arg0: i32, %arg1: i32, %arg2: i32) -> (i32, i32) {
    %c0_i32 = arith.constant 0 : i32
    return %arg0, %arg2 : i32, i32
  }
  func.func @transform_1(%arg0: i32, %arg1: i32, %arg2: i32) -> (i32, i32) {
    %c0_i32 = arith.constant 0 : i32
    return %arg2, %arg1 : i32, i32
  }
  func.func @transform_2(%arg0: i32, %arg1: i32, %arg2: i32) -> (i32, i32) {
    %c0_i32 = arith.constant 0 : i32
    %c0_i32_0 = arith.constant 0 : i32
    return %c0_i32, %arg1 : i32, i32
  }
  func.func @transform_3(%arg0: i32, %arg1: i32, %arg2: i32) -> (i32, i32) {
    %c0_i32 = arith.constant 0 : i32
    return %arg0, %arg1 : i32, i32
  }
  func.func @transform_4(%arg0: i32, %arg1: i32, %arg2: i32) -> (i32, i32) {
    %c0_i32 = arith.constant 0 : i32
    return %arg0, %arg1 : i32, i32
  }
}

module attributes {stable_mosaic.version = 11 : i64} {
  func.func @_matmul_kernel(%arg0: i32, %arg1: i32, %arg2: i32, %arg3: memref<8x128xf32, #tpu.memory_space<vmem>>, %arg4: memref<128x512xbf16, #tpu.memory_space<vmem>>, %arg5: memref<1x512xf32, #tpu.memory_space<vmem>>, %arg6: memref<8x512xf32, #tpu.memory_space<vmem>>, %arg7: memref<8x512xf32, #tpu.memory_space<vmem>>) attributes {dimension_semantics = [#tpu.dimension_semantics<parallel>, #tpu.dimension_semantics<parallel>, #tpu.dimension_semantics<arbitrary>], iteration_bounds = array<i64: 1, 1, 1>, scalar_prefetch = 0 : i64, scratch_operands = 1 : i64, tpu.core_type = #tpu.core_type<tc>, window_params = [{transform_indices = @transform_0, window_bounds = array<i64: 8, 128>}, {transform_indices = @transform_1, window_bounds = array<i64: 128, 512>}, {transform_indices = @transform_2, window_bounds = array<i64: 1, 512>}, {transform_indices = @transform_3, window_bounds = array<i64: 8, 512>}]} {
    %c0_i32 = arith.constant 0 : i32
    %0 = arith.cmpi eq, %arg2, %c0_i32 : i32
    %1 = arith.extui %0 : i1 to i32
    %c0_i32_0 = arith.constant 0 : i32
    %2 = arith.cmpi ne, %1, %c0_i32_0 : i32
    scf.if %2 {
      %cst_10 = arith.constant 0.000000e+00 : f32
      %13 = vector.broadcast %cst_10 : f32 to vector<8x512xf32>
      %c0_11 = arith.constant 0 : index
      %c0_12 = arith.constant 0 : index
      %14 = vector.load %arg7[%c0_11, %c0_12] : memref<8x512xf32, #tpu.memory_space<vmem>>, vector<8x512xf32>
      tpu.vector_store %arg7[%c0_11, %c0_12], %13 {strides = array<i32>} : memref<8x512xf32, #tpu.memory_space<vmem>>, vector<8x512xf32>,
    } else {
    }
    %c0 = arith.constant 0 : index
    %c0_1 = arith.constant 0 : index
    %3 = vector.load %arg3[%c0, %c0_1] : memref<8x128xf32, #tpu.memory_space<vmem>>, vector<8x128xf32>
    %c0_2 = arith.constant 0 : index
    %c0_3 = arith.constant 0 : index
    %4 = vector.load %arg7[%c0_2, %c0_3] : memref<8x512xf32, #tpu.memory_space<vmem>>, vector<8x512xf32>
    %5 = arith.truncf %3 : vector<8x128xf32> to vector<8x128xbf16>
    %c0_4 = arith.constant 0 : index
    %c0_5 = arith.constant 0 : index
    %6 = vector.load %arg4[%c0_4, %c0_5] : memref<128x512xbf16, #tpu.memory_space<vmem>>, vector<128x512xbf16>
    %cst = arith.constant dense<0.000000e+00> : vector<8x512xf32>
    %7 = tpu.matmul %5, %6, %cst {dimension_numbers = #tpu.dot_dimension_numbers<[1], [0], [0], [1], [0, 0, 1, 1], [], []>} : vector<8x128xbf16>, vector<128x512xbf16>, vector<8x512xf32> -> vector<8x512xf32>
    %8 = arith.addf %4, %7 : vector<8x512xf32>
    %c0_6 = arith.constant 0 : index
    %c0_7 = arith.constant 0 : index
    %9 = vector.load %arg7[%c0_6, %c0_7] : memref<8x512xf32, #tpu.memory_space<vmem>>, vector<8x512xf32>
    tpu.vector_store %arg7[%c0_6, %c0_7], %8 {strides = array<i32>} : memref<8x512xf32, #tpu.memory_space<vmem>>, vector<8x512xf32>,
    %c0_i32_8 = arith.constant 0 : i32
    %10 = arith.cmpi eq, %arg2, %c0_i32_8 : i32
    %11 = arith.extui %10 : i1 to i32
    %c0_i32_9 = arith.constant 0 : i32
    %12 = arith.cmpi ne, %11, %c0_i32_9 : i32
    scf.if %12 {
      %c0_10 = arith.constant 0 : index
      %c0_11 = arith.constant 0 : index
      %13 = vector.load %arg7[%c0_10, %c0_11] : memref<8x512xf32, #tpu.memory_space<vmem>>, vector<8x512xf32>
      %c0_12 = arith.constant 0 : index
      %c0_13 = arith.constant 0 : index
      %14 = vector.load %arg5[%c0_12, %c0_13] : memref<1x512xf32, #tpu.memory_space<vmem>>, vector<1x512xf32>
      %15 = vector.broadcast %14 : vector<1x512xf32> to vector<8x512xf32>
      %16 = arith.addf %13, %15 : vector<8x512xf32>
      %cst_14 = arith.constant 0.000000e+00 : f32
      %17 = vector.broadcast %cst_14 : f32 to vector<8x512xf32>
      %18 = arith.maximumf %16, %17 : vector<8x512xf32>
      %c0_15 = arith.constant 0 : index
      %c0_16 = arith.constant 0 : index
      %19 = vector.load %arg6[%c0_15, %c0_16] : memref<8x512xf32, #tpu.memory_space<vmem>>, vector<8x512xf32>
      tpu.vector_store %arg6[%c0_15, %c0_16], %18 {strides = array<i32>} : memref<8x512xf32, #tpu.memory_space<vmem>>, vector<8x512xf32>,
    } else {
    }
    return
  }
  func.func @transform_0(%arg0: i32, %arg1: i32, %arg2: i32) -> (i32, i32) {
    %c0_i32 = arith.constant 0 : i32
    return %arg0, %arg2 : i32, i32
  }
  func.func @transform_1(%arg0: i32, %arg1: i32, %arg2: i32) -> (i32, i32) {
    %c0_i32 = arith.constant 0 : i32
    return %arg2, %arg1 : i32, i32
  }
  func.func @transform_2(%arg0: i32, %arg1: i32, %arg2: i32) -> (i32, i32) {
    %c0_i32 = arith.constant 0 : i32
    %c0_i32_0 = arith.constant 0 : i32
    return %c0_i32, %arg1 : i32, i32
  }
  func.func @transform_3(%arg0: i32, %arg1: i32, %arg2: i32) -> (i32, i32) {
    %c0_i32 = arith.constant 0 : i32
    return %arg0, %arg1 : i32, i32
  }
}

module attributes {stable_mosaic.version = 11 : i64} {
  func.func @_layernorm_kernel(%arg0: i32, %arg1: memref<16x128xf32, #tpu.memory_space<vmem>>, %arg2: memref<1x128xf32, #tpu.memory_space<vmem>>, %arg3: memref<1x128xf32, #tpu.memory_space<vmem>>, %arg4: memref<16x128xf32, #tpu.memory_space<vmem>>) attributes {dimension_semantics = [#tpu.dimension_semantics<parallel>], iteration_bounds = array<i64: 1>, scalar_prefetch = 0 : i64, scratch_operands = 0 : i64, tpu.core_type = #tpu.core_type<tc>, window_params = [{transform_indices = @transform_0, window_bounds = array<i64: 16, 128>}, {pipeline_mode = #tpu.pipeline_mode<synchronous>, transform_indices = @transform_1, window_bounds = array<i64: 1, 128>}, {pipeline_mode = #tpu.pipeline_mode<synchronous>, transform_indices = @transform_2, window_bounds = array<i64: 1, 128>}, {transform_indices = @transform_3, window_bounds = array<i64: 16, 128>}]} {
    %c0 = arith.constant 0 : index
    %c0_0 = arith.constant 0 : index
    %0 = vector.load %arg1[%c0, %c0_0] : memref<16x128xf32, #tpu.memory_space<vmem>>, vector<16x128xf32>
    %cst = arith.constant dense<0.000000e+00> : vector<16xf32>
    %1 = vector.multi_reduction <add>, %0, %cst [1] : vector<16x128xf32> to vector<16xf32>
    %2 = vector.shape_cast %1 : vector<16xf32> to vector<16x1xf32>
    %cst_1 = arith.constant 1.280000e+02 : f32
    %3 = vector.broadcast %cst_1 : f32 to vector<16x1xf32>
    %4 = arith.divf %2, %3 : vector<16x1xf32>
    %5 = vector.broadcast %4 : vector<16x1xf32> to vector<16x128xf32>
    %6 = arith.subf %0, %5 : vector<16x128xf32>
    %7 = arith.mulf %6, %6 : vector<16x128xf32>
    %cst_2 = arith.constant dense<0.000000e+00> : vector<16xf32>
    %8 = vector.multi_reduction <add>, %7, %cst_2 [1] : vector<16x128xf32> to vector<16xf32>
    %9 = vector.shape_cast %8 : vector<16xf32> to vector<16x1xf32>
    %cst_3 = arith.constant 1.280000e+02 : f32
    %10 = vector.broadcast %cst_3 : f32 to vector<16x1xf32>
    %11 = arith.divf %9, %10 : vector<16x1xf32>
    %12 = vector.broadcast %4 : vector<16x1xf32> to vector<16x128xf32>
    %13 = arith.subf %0, %12 : vector<16x128xf32>
    %cst_4 = arith.constant 9.99999974E-6 : f32
    %14 = vector.broadcast %cst_4 : f32 to vector<16x1xf32>
    %15 = arith.addf %11, %14 : vector<16x1xf32>
    %16 = math.rsqrt %15 : vector<16x1xf32>
    %17 = vector.broadcast %16 : vector<16x1xf32> to vector<16x128xf32>
    %18 = arith.mulf %13, %17 : vector<16x128xf32>
    %c0_5 = arith.constant 0 : index
    %c0_6 = arith.constant 0 : index
    %19 = vector.load %arg2[%c0_5, %c0_6] : memref<1x128xf32, #tpu.memory_space<vmem>>, vector<1x128xf32>
    %20 = vector.broadcast %19 : vector<1x128xf32> to vector<16x128xf32>
    %21 = arith.mulf %18, %20 : vector<16x128xf32>
    %c0_7 = arith.constant 0 : index
    %c0_8 = arith.constant 0 : index
    %22 = vector.load %arg3[%c0_7, %c0_8] : memref<1x128xf32, #tpu.memory_space<vmem>>, vector<1x128xf32>
    %23 = vector.broadcast %22 : vector<1x128xf32> to vector<16x128xf32>
    %24 = arith.addf %21, %23 : vector<16x128xf32>
    %c0_9 = arith.constant 0 : index
    %c0_10 = arith.constant 0 : index
    %25 = vector.load %arg4[%c0_9, %c0_10] : memref<16x128xf32, #tpu.memory_space<vmem>>, vector<16x128xf32>
    tpu.vector_store %arg4[%c0_9, %c0_10], %24 {strides = array<i32>} : memref<16x128xf32, #tpu.memory_space<vmem>>, vector<16x128xf32>,
    return
  }
  func.func @transform_0(%arg0: i32) -> (i32, i32) {
    %c0_i32 = arith.constant 0 : i32
    %c0_i32_0 = arith.constant 0 : i32
    return %arg0, %c0_i32 : i32, i32
  }
  func.func @transform_1(%arg0: i32) -> (i32, i32) {
    %c0_i32 = arith.constant 0 : i32
    %c0_i32_0 = arith.constant 0 : i32
    %c0_i32_1 = arith.constant 0 : i32
    return %c0_i32, %c0_i32_0 : i32, i32
  }
  func.func @transform_2(%arg0: i32) -> (i32, i32) {
    %c0_i32 = arith.constant 0 : i32
    %c0_i32_0 = arith.constant 0 : i32
    %c0_i32_1 = arith.constant 0 : i32
    return %c0_i32, %c0_i32_0 : i32, i32
  }
  func.func @transform_3(%arg0: i32) -> (i32, i32) {
    %c0_i32 = arith.constant 0 : i32
    %c0_i32_0 = arith.constant 0 : i32
    return %arg0, %c0_i32 : i32, i32
  }
}

module attributes {stable_mosaic.version = 11 : i64} {
  func.func @_matmul_kernel(%arg0: i32, %arg1: i32, %arg2: i32, %arg3: memref<8x512xf32, #tpu.memory_space<vmem>>, %arg4: memref<512x256xbf16, #tpu.memory_space<vmem>>, %arg5: memref<1x256xf32, #tpu.memory_space<vmem>>, %arg6: memref<1x512xf32, #tpu.memory_space<vmem>>, %arg7: memref<1x512xf32, #tpu.memory_space<vmem>>, %arg8: memref<8x256xf32, #tpu.memory_space<vmem>>, %arg9: memref<8x256xf32, #tpu.memory_space<vmem>>) attributes {dimension_semantics = [#tpu.dimension_semantics<parallel>, #tpu.dimension_semantics<parallel>, #tpu.dimension_semantics<arbitrary>], iteration_bounds = array<i64: 1, 1, 1>, scalar_prefetch = 0 : i64, scratch_operands = 1 : i64, tpu.core_type = #tpu.core_type<tc>, window_params = [{transform_indices = @transform_0, window_bounds = array<i64: 8, 512>}, {transform_indices = @transform_1, window_bounds = array<i64: 512, 256>}, {transform_indices = @transform_2, window_bounds = array<i64: 1, 256>}, {pipeline_mode = #tpu.pipeline_mode<synchronous>, transform_indices = @transform_3, window_bounds = array<i64: 1, 512>}, {pipeline_mode = #tpu.pipeline_mode<synchronous>, transform_indices = @transform_4, window_bounds = array<i64: 1, 512>}, {transform_indices = @transform_5, window_bounds = array<i64: 8, 256>}]} {
    %c0_i32 = arith.constant 0 : i32
    %0 = arith.cmpi eq, %arg2, %c0_i32 : i32
    %1 = arith.extui %0 : i1 to i32
    %c0_i32_0 = arith.constant 0 : i32
    %2 = arith.cmpi ne, %1, %c0_i32_0 : i32
    scf.if %2 {
      %cst_19 = arith.constant 0.000000e+00 : f32
      %37 = vector.broadcast %cst_19 : f32 to vector<8x256xf32>
      %c0_20 = arith.constant 0 : index
      %c0_21 = arith.constant 0 : index
      %38 = vector.load %arg9[%c0_20, %c0_21] : memref<8x256xf32, #tpu.memory_space<vmem>>, vector<8x256xf32>
      tpu.vector_store %arg9[%c0_20, %c0_21], %37 {strides = array<i32>} : memref<8x256xf32, #tpu.memory_space<vmem>>, vector<8x256xf32>,
    } else {
    }
    %c0 = arith.constant 0 : index
    %c0_1 = arith.constant 0 : index
    %3 = vector.load %arg3[%c0, %c0_1] : memref<8x512xf32, #tpu.memory_space<vmem>>, vector<8x512xf32>
    %cst = arith.constant dense<0.000000e+00> : vector<8xf32>
    %4 = vector.multi_reduction <add>, %3, %cst [1] : vector<8x512xf32> to vector<8xf32>
    %5 = vector.shape_cast %4 : vector<8xf32> to vector<8x1xf32>
    %cst_2 = arith.constant 5.120000e+02 : f32
    %6 = vector.broadcast %cst_2 : f32 to vector<8x1xf32>
    %7 = arith.divf %5, %6 : vector<8x1xf32>
    %8 = vector.broadcast %7 : vector<8x1xf32> to vector<8x512xf32>
    %9 = arith.subf %3, %8 : vector<8x512xf32>
    %10 = arith.mulf %9, %9 : vector<8x512xf32>
    %cst_3 = arith.constant dense<0.000000e+00> : vector<8xf32>
    %11 = vector.multi_reduction <add>, %10, %cst_3 [1] : vector<8x512xf32> to vector<8xf32>
    %12 = vector.shape_cast %11 : vector<8xf32> to vector<8x1xf32>
    %cst_4 = arith.constant 5.120000e+02 : f32
    %13 = vector.broadcast %cst_4 : f32 to vector<8x1xf32>
    %14 = arith.divf %12, %13 : vector<8x1xf32>
    %15 = vector.broadcast %7 : vector<8x1xf32> to vector<8x512xf32>
    %16 = arith.subf %3, %15 : vector<8x512xf32>
    %cst_5 = arith.constant 9.99999974E-6 : f32
    %17 = vector.broadcast %cst_5 : f32 to vector<8x1xf32>
    %18 = arith.addf %14, %17 : vector<8x1xf32>
    %19 = math.rsqrt %18 : vector<8x1xf32>
    %20 = vector.broadcast %19 : vector<8x1xf32> to vector<8x512xf32>
    %21 = arith.mulf %16, %20 : vector<8x512xf32>
    %c0_6 = arith.constant 0 : index
    %c0_7 = arith.constant 0 : index
    %22 = vector.load %arg6[%c0_6, %c0_7] : memref<1x512xf32, #tpu.memory_space<vmem>>, vector<1x512xf32>
    %23 = vector.broadcast %22 : vector<1x512xf32> to vector<8x512xf32>
    %24 = arith.mulf %21, %23 : vector<8x512xf32>
    %c0_8 = arith.constant 0 : index
    %c0_9 = arith.constant 0 : index
    %25 = vector.load %arg7[%c0_8, %c0_9] : memref<1x512xf32, #tpu.memory_space<vmem>>, vector<1x512xf32>
    %26 = vector.broadcast %25 : vector<1x512xf32> to vector<8x512xf32>
    %27 = arith.addf %24, %26 : vector<8x512xf32>
    %c0_10 = arith.constant 0 : index
    %c0_11 = arith.constant 0 : index
    %28 = vector.load %arg9[%c0_10, %c0_11] : memref<8x256xf32, #tpu.memory_space<vmem>>, vector<8x256xf32>
    %29 = arith.truncf %27 : vector<8x512xf32> to vector<8x512xbf16>
    %c0_12 = arith.constant 0 : index
    %c0_13 = arith.constant 0 : index
    %30 = vector.load %arg4[%c0_12, %c0_13] : memref<512x256xbf16, #tpu.memory_space<vmem>>, vector<512x256xbf16>
    %cst_14 = arith.constant dense<0.000000e+00> : vector<8x256xf32>
    %31 = tpu.matmul %29, %30, %cst_14 {dimension_numbers = #tpu.dot_dimension_numbers<[1], [0], [0], [1], [0, 0, 1, 1], [], []>} : vector<8x512xbf16>, vector<512x256xbf16>, vector<8x256xf32> -> vector<8x256xf32>
    %32 = arith.addf %28, %31 : vector<8x256xf32>
    %c0_15 = arith.constant 0 : index
    %c0_16 = arith.constant 0 : index
    %33 = vector.load %arg9[%c0_15, %c0_16] : memref<8x256xf32, #tpu.memory_space<vmem>>, vector<8x256xf32>
    tpu.vector_store %arg9[%c0_15, %c0_16], %32 {strides = array<i32>} : memref<8x256xf32, #tpu.memory_space<vmem>>, vector<8x256xf32>,
    %c0_i32_17 = arith.constant 0 : i32
    %34 = arith.cmpi eq, %arg2, %c0_i32_17 : i32
    %35 = arith.extui %34 : i1 to i32
    %c0_i32_18 = arith.constant 0 : i32
    %36 = arith.cmpi ne, %35, %c0_i32_18 : i32
    scf.if %36 {
      %c0_19 = arith.constant 0 : index
      %c0_20 = arith.constant 0 : index
      %37 = vector.load %arg9[%c0_19, %c0_20] : memref<8x256xf32, #tpu.memory_space<vmem>>, vector<8x256xf32>
      %c0_21 = arith.constant 0 : index
      %c0_22 = arith.constant 0 : index
      %38 = vector.load %arg5[%c0_21, %c0_22] : memref<1x256xf32, #tpu.memory_space<vmem>>, vector<1x256xf32>
      %39 = vector.broadcast %38 : vector<1x256xf32> to vector<8x256xf32>
      %40 = arith.addf %37, %39 : vector<8x256xf32>
      %c0_23 = arith.constant 0 : index
      %c0_24 = arith.constant 0 : index
      %41 = vector.load %arg8[%c0_23, %c0_24] : memref<8x256xf32, #tpu.memory_space<vmem>>, vector<8x256xf32>
      tpu.vector_store %arg8[%c0_23, %c0_24], %40 {strides = array<i32>} : memref<8x256xf32, #tpu.memory_space<vmem>>, vector<8x256xf32>,
    } else {
    }
    return
  }
  func.func @transform_0(%arg0: i32, %arg1: i32, %arg2: i32) -> (i32, i32) {
    %c0_i32 = arith.constant 0 : i32
    return %arg0, %arg2 : i32, i32
  }
  func.func @transform_1(%arg0: i32, %arg1: i32, %arg2: i32) -> (i32, i32) {
    %c0_i32 = arith.constant 0 : i32
    return %arg2, %arg1 : i32, i32
  }
  func.func @transform_2(%arg0: i32, %arg1: i32, %arg2: i32) -> (i32, i32) {
    %c0_i32 = arith.constant 0 : i32
    %c0_i32_0 = arith.constant 0 : i32
    return %c0_i32, %arg1 : i32, i32
  }
  func.func @transform_3(%arg0: i32, %arg1: i32, %arg2: i32) -> (i32, i32) {
    %c0_i32 = arith.constant 0 : i32
    %c0_i32_0 = arith.constant 0 : i32
    %c0_i32_1 = arith.constant 0 : i32
    return %c0_i32, %c0_i32_0 : i32, i32
  }
  func.func @transform_4(%arg0: i32, %arg1: i32, %arg2: i32) -> (i32, i32) {
    %c0_i32 = arith.constant 0 : i32
    %c0_i32_0 = arith.constant 0 : i32
    %c0_i32_1 = arith.constant 0 : i32
    return %c0_i32, %c0_i32_0 : i32, i32
  }
  func.func @transform_5(%arg0: i32, %arg1: i32, %arg2: i32) -> (i32, i32) {
    %c0_i32 = arith.constant 0 : i32
    return %arg0, %arg1 : i32, i32
  }
}

module attributes {stable_mosaic.version = 11 : i64} {
  func.func @_matmul_kernel(%arg0: i32, %arg1: i32, %arg2: i32, %arg3: memref<2x128xf32, #tpu.memory_space<vmem>>, %arg4: memref<128x128xbf16, #tpu.memory_space<vmem>>, %arg5: memref<1x128xf32, #tpu.memory_space<vmem>>, %arg6: memref<2x128xf32, #tpu.memory_space<vmem>>, %arg7: memref<2x128xf32, #tpu.memory_space<vmem>>) attributes {dimension_semantics = [#tpu.dimension_semantics<parallel>, #tpu.dimension_semantics<parallel>, #tpu.dimension_semantics<arbitrary>], iteration_bounds = array<i64: 1, 1, 1>, scalar_prefetch = 0 : i64, scratch_operands = 1 : i64, tpu.core_type = #tpu.core_type<tc>, window_params = [{transform_indices = @transform_0, window_bounds = array<i64: 2, 128>}, {transform_indices = @transform_1, window_bounds = array<i64: 128, 128>}, {transform_indices = @transform_2, window_bounds = array<i64: 1, 128>}, {transform_indices = @transform_3, window_bounds = array<i64: 2, 128>}]} {
    %c0_i32 = arith.constant 0 : i32
    %0 = arith.cmpi eq, %arg2, %c0_i32 : i32
    %1 = arith.extui %0 : i1 to i32
    %c0_i32_0 = arith.constant 0 : i32
    %2 = arith.cmpi ne, %1, %c0_i32_0 : i32
    scf.if %2 {
      %cst_10 = arith.constant 0.000000e+00 : f32
      %13 = vector.broadcast %cst_10 : f32 to vector<2x128xf32>
      %c0_11 = arith.constant 0 : index
      %c0_12 = arith.constant 0 : index
      %14 = vector.load %arg7[%c0_11, %c0_12] : memref<2x128xf32, #tpu.memory_space<vmem>>, vector<2x128xf32>
      tpu.vector_store %arg7[%c0_11, %c0_12], %13 {strides = array<i32>} : memref<2x128xf32, #tpu.memory_space<vmem>>, vector<2x128xf32>,
    } else {
    }
    %c0 = arith.constant 0 : index
    %c0_1 = arith.constant 0 : index
    %3 = vector.load %arg3[%c0, %c0_1] : memref<2x128xf32, #tpu.memory_space<vmem>>, vector<2x128xf32>
    %c0_2 = arith.constant 0 : index
    %c0_3 = arith.constant 0 : index
    %4 = vector.load %arg7[%c0_2, %c0_3] : memref<2x128xf32, #tpu.memory_space<vmem>>, vector<2x128xf32>
    %5 = arith.truncf %3 : vector<2x128xf32> to vector<2x128xbf16>
    %c0_4 = arith.constant 0 : index
    %c0_5 = arith.constant 0 : index
    %6 = vector.load %arg4[%c0_4, %c0_5] : memref<128x128xbf16, #tpu.memory_space<vmem>>, vector<128x128xbf16>
    %cst = arith.constant dense<0.000000e+00> : vector<2x128xf32>
    %7 = tpu.matmul %5, %6, %cst {dimension_numbers = #tpu.dot_dimension_numbers<[1], [0], [0], [1], [0, 0, 1, 1], [], []>} : vector<2x128xbf16>, vector<128x128xbf16>, vector<2x128xf32> -> vector<2x128xf32>
    %8 = arith.addf %4, %7 : vector<2x128xf32>
    %c0_6 = arith.constant 0 : index
    %c0_7 = arith.constant 0 : index
    %9 = vector.load %arg7[%c0_6, %c0_7] : memref<2x128xf32, #tpu.memory_space<vmem>>, vector<2x128xf32>
    tpu.vector_store %arg7[%c0_6, %c0_7], %8 {strides = array<i32>} : memref<2x128xf32, #tpu.memory_space<vmem>>, vector<2x128xf32>,
    %c0_i32_8 = arith.constant 0 : i32
    %10 = arith.cmpi eq, %arg2, %c0_i32_8 : i32
    %11 = arith.extui %10 : i1 to i32
    %c0_i32_9 = arith.constant 0 : i32
    %12 = arith.cmpi ne, %11, %c0_i32_9 : i32
    scf.if %12 {
      %c0_10 = arith.constant 0 : index
      %c0_11 = arith.constant 0 : index
      %13 = vector.load %arg7[%c0_10, %c0_11] : memref<2x128xf32, #tpu.memory_space<vmem>>, vector<2x128xf32>
      %c0_12 = arith.constant 0 : index
      %c0_13 = arith.constant 0 : index
      %14 = vector.load %arg5[%c0_12, %c0_13] : memref<1x128xf32, #tpu.memory_space<vmem>>, vector<1x128xf32>
      %15 = vector.broadcast %14 : vector<1x128xf32> to vector<2x128xf32>
      %16 = arith.addf %13, %15 : vector<2x128xf32>
      %17 = math.tanh %16 : vector<2x128xf32>
      %c0_14 = arith.constant 0 : index
      %c0_15 = arith.constant 0 : index
      %18 = vector.load %arg6[%c0_14, %c0_15] : memref<2x128xf32, #tpu.memory_space<vmem>>, vector<2x128xf32>
      tpu.vector_store %arg6[%c0_14, %c0_15], %17 {strides = array<i32>} : memref<2x128xf32, #tpu.memory_space<vmem>>, vector<2x128xf32>,
    } else {
    }
    return
  }
  func.func @transform_0(%arg0: i32, %arg1: i32, %arg2: i32) -> (i32, i32) {
    %c0_i32 = arith.constant 0 : i32
    return %arg0, %arg2 : i32, i32
  }
  func.func @transform_1(%arg0: i32, %arg1: i32, %arg2: i32) -> (i32, i32) {
    %c0_i32 = arith.constant 0 : i32
    return %arg2, %arg1 : i32, i32
  }
  func.func @transform_2(%arg0: i32, %arg1: i32, %arg2: i32) -> (i32, i32) {
    %c0_i32 = arith.constant 0 : i32
    %c0_i32_0 = arith.constant 0 : i32
    return %c0_i32, %arg1 : i32, i32
  }
  func.func @transform_3(%arg0: i32, %arg1: i32, %arg2: i32) -> (i32, i32) {
    %c0_i32 = arith.constant 0 : i32
    return %arg0, %arg1 : i32, i32
  }
}

module attributes {stable_mosaic.version = 11 : i64} {
  func.func @_matmul_kernel(%arg0: i32, %arg1: i32, %arg2: i32, %arg3: memref<2x128xf32, #tpu.memory_space<vmem>>, %arg4: memref<128x2xbf16, #tpu.memory_space<vmem>>, %arg5: memref<1x2xf32, #tpu.memory_space<vmem>>, %arg6: memref<2x2xf32, #tpu.memory_space<vmem>>, %arg7: memref<2x2xf32, #tpu.memory_space<vmem>>) attributes {dimension_semantics = [#tpu.dimension_semantics<parallel>, #tpu.dimension_semantics<parallel>, #tpu.dimension_semantics<arbitrary>], iteration_bounds = array<i64: 1, 1, 1>, scalar_prefetch = 0 : i64, scratch_operands = 1 : i64, tpu.core_type = #tpu.core_type<tc>, window_params = [{transform_indices = @transform_0, window_bounds = array<i64: 2, 128>}, {transform_indices = @transform_1, window_bounds = array<i64: 128, 2>}, {transform_indices = @transform_2, window_bounds = array<i64: 1, 2>}, {transform_indices = @transform_3, window_bounds = array<i64: 2, 2>}]} {
    %c0_i32 = arith.constant 0 : i32
    %0 = arith.cmpi eq, %arg2, %c0_i32 : i32
    %1 = arith.extui %0 : i1 to i32
    %c0_i32_0 = arith.constant 0 : i32
    %2 = arith.cmpi ne, %1, %c0_i32_0 : i32
    scf.if %2 {
      %cst_10 = arith.constant 0.000000e+00 : f32
      %13 = vector.broadcast %cst_10 : f32 to vector<2x2xf32>
      %c0_11 = arith.constant 0 : index
      %c0_12 = arith.constant 0 : index
      %14 = vector.load %arg7[%c0_11, %c0_12] : memref<2x2xf32, #tpu.memory_space<vmem>>, vector<2x2xf32>
      tpu.vector_store %arg7[%c0_11, %c0_12], %13 {strides = array<i32>} : memref<2x2xf32, #tpu.memory_space<vmem>>, vector<2x2xf32>,
    } else {
    }
    %c0 = arith.constant 0 : index
    %c0_1 = arith.constant 0 : index
    %3 = vector.load %arg3[%c0, %c0_1] : memref<2x128xf32, #tpu.memory_space<vmem>>, vector<2x128xf32>
    %c0_2 = arith.constant 0 : index
    %c0_3 = arith.constant 0 : index
    %4 = vector.load %arg7[%c0_2, %c0_3] : memref<2x2xf32, #tpu.memory_space<vmem>>, vector<2x2xf32>
    %5 = arith.truncf %3 : vector<2x128xf32> to vector<2x128xbf16>
    %c0_4 = arith.constant 0 : index
    %c0_5 = arith.constant 0 : index
    %6 = vector.load %arg4[%c0_4, %c0_5] : memref<128x2xbf16, #tpu.memory_space<vmem>>, vector<128x2xbf16>
    %cst = arith.constant dense<0.000000e+00> : vector<2x2xf32>
    %7 = tpu.matmul %5, %6, %cst {dimension_numbers = #tpu.dot_dimension_numbers<[1], [0], [0], [1], [0, 0, 1, 1], [], []>} : vector<2x128xbf16>, vector<128x2xbf16>, vector<2x2xf32> -> vector<2x2xf32>
    %8 = arith.addf %4, %7 : vector<2x2xf32>
    %c0_6 = arith.constant 0 : index
    %c0_7 = arith.constant 0 : index
    %9 = vector.load %arg7[%c0_6, %c0_7] : memref<2x2xf32, #tpu.memory_space<vmem>>, vector<2x2xf32>
    tpu.vector_store %arg7[%c0_6, %c0_7], %8 {strides = array<i32>} : memref<2x2xf32, #tpu.memory_space<vmem>>, vector<2x2xf32>,
    %c0_i32_8 = arith.constant 0 : i32
    %10 = arith.cmpi eq, %arg2, %c0_i32_8 : i32
    %11 = arith.extui %10 : i1 to i32
    %c0_i32_9 = arith.constant 0 : i32
    %12 = arith.cmpi ne, %11, %c0_i32_9 : i32
    scf.if %12 {
      %c0_10 = arith.constant 0 : index
      %c0_11 = arith.constant 0 : index
      %13 = vector.load %arg7[%c0_10, %c0_11] : memref<2x2xf32, #tpu.memory_space<vmem>>, vector<2x2xf32>
      %c0_12 = arith.constant 0 : index
      %c0_13 = arith.constant 0 : index
      %14 = vector.load %arg5[%c0_12, %c0_13] : memref<1x2xf32, #tpu.memory_space<vmem>>, vector<1x2xf32>
      %15 = vector.broadcast %14 : vector<1x2xf32> to vector<2x2xf32>
      %16 = arith.addf %13, %15 : vector<2x2xf32>
      %c0_14 = arith.constant 0 : index
      %c0_15 = arith.constant 0 : index
      %17 = vector.load %arg6[%c0_14, %c0_15] : memref<2x2xf32, #tpu.memory_space<vmem>>, vector<2x2xf32>
      tpu.vector_store %arg6[%c0_14, %c0_15], %16 {strides = array<i32>} : memref<2x2xf32, #tpu.memory_space<vmem>>, vector<2x2xf32>,
    } else {
    }
    return
  }
  func.func @transform_0(%arg0: i32, %arg1: i32, %arg2: i32) -> (i32, i32) {
    %c0_i32 = arith.constant 0 : i32
    return %arg0, %arg2 : i32, i32
  }
  func.func @transform_1(%arg0: i32, %arg1: i32, %arg2: i32) -> (i32, i32) {
    %c0_i32 = arith.constant 0 : i32
    return %arg2, %arg1 : i32, i32
  }
  func.func @transform_2(%arg0: i32, %arg1: i32, %arg2: i32) -> (i32, i32) {
    %c0_i32 = arith.constant 0 : i32
    %c0_i32_0 = arith.constant 0 : i32
    return %c0_i32, %arg1 : i32, i32
  }
  func.func @transform_3(%arg0: i32, %arg1: i32, %arg2: i32) -> (i32, i32) {
    %c0_i32 = arith.constant 0 : i32
    return %arg0, %arg1 : i32, i32
  }
}

</mosaic_0001>

<llo_original>
// kernel: bert_forward.17
$region0: #{bert_forward.17}
  #allocation0 [shape = 'u32[]', space=smem, size = 0x4, offset = 0x4, fixed_abs, tag = 'smem constant byte address 0x4 - core index']
  #allocation1 [shape = 'u32[72,128]{1,0:T(1,128)}', space=vmem, size = 0x9000, scoped, tag = 'internal scratch']
  #allocation2 [shape = 'f32[16,128]{1,0:T(8,128)}', space=vmem, size = 0x2000, scoped, tag = 'scratch operand']
  %s0 = inlined_call_operand.vmem [shape: f32[16,128], index: 0, kind: input, shape index: {}]
  %s1 = inlined_call_operand.vmem [shape: bf16[128,128], index: 1, kind: input, shape index: {}]
  %s2 = inlined_call_operand.vmem [shape: f32[1,128], index: 2, kind: input, shape index: {}]
  %s3 = inlined_call_operand.vmem [shape: f32[16,128], index: 3, kind: input, shape index: {}]
  %s4 = inlined_call_operand.vmem [shape: f32[16,128], index: 4, kind: output, shape index: {}]
  %s5 = sld [smem:[#allocation0]]
  $region34: #{bert_forward.17} parent=0
    _
  %s7 = ssub.s32 1, %s5
  %s8 = scalar_select 0, %s7, %s5
  // Predicated region
  $region2: #{bert_forward.17} parent=0 // pred_check
    _
  $region3: #{bert_forward.17} parent=0 // pred_check_branch
    %10 = sbr.rel (0) target = $region5
  $region4: #{bert_forward.17} parent=0 // pred_region
    _
  $region5: #{bert_forward.17} parent=0 // pred_fallthru
    _
  // Predicated region
  $region6: #{bert_forward.17} parent=0 // pred_check
    _
  $region7: #{bert_forward.17} parent=0 // pred_check_branch
    %12 = sbr.rel (0) target = $region9
  $region8: #{bert_forward.17} parent=0 // pred_region
    _
  $region9: #{bert_forward.17} parent=0 // pred_fallthru
    _
  // Predicated region
  $region10: #{bert_forward.17} parent=0 // pred_check
    _
  $region11: #{bert_forward.17} parent=0 // pred_check_branch
    %14 = sbr.rel (0) target = $region13
  $region12: #{bert_forward.17} parent=0 // pred_region
    _
  $region13: #{bert_forward.17} parent=0 // pred_fallthru
    _
  // Predicated region
  $region14: #{bert_forward.17} parent=0 // pred_check
    _
  $region15: #{bert_forward.17} parent=0 // pred_check_branch
    %16 = sbr.rel (0) target = $region17
  $region16: #{bert_forward.17} parent=0 // pred_region
    _
  $region17: #{bert_forward.17} parent=0 // pred_fallthru
    _
  %p17 = scmp.eq.s32.totalorder 0, 0
  // Predicated region
  $region18: #{bert_forward.17} parent=0 // pred_check
    %p18 = pneg %p17
  $region19: #{bert_forward.17} parent=0 // pred_check_branch
    %20 = sbr.rel (%p18) target = $region21
  $region20: #{bert_forward.17} parent=0 // pred_region
    %21 = vst [vmem:[#allocation2] sm:$0xff] 0.0
    %22 = vst [vmem:[#allocation2 + $0x8] sm:$0xff] 0.0
  $region21: #{bert_forward.17} parent=0 // pred_fallthru
    _
  %v23 = vld [vmem:[%s0] sm:$0xff]
  %v24 = vld [vmem:[%s0 + $0x8] sm:$0xff]
  %v25 = vld [vmem:[#allocation2] sm:$0xff]
  %v26 = vld [vmem:[#allocation2 + $0x8] sm:$0xff]
  %v27 = vpack.c.bf16 %v24, %v23
  %v28 = vld [vmem:[%s1] sm:$0xf]
  %v29 = vld [vmem:[%s1 + $0x4] sm:$0xf]
  %v30 = vld [vmem:[%s1 + $0x8] sm:$0xf]
  %v31 = vld [vmem:[%s1 + $0xc] sm:$0xf]
  %v32 = vld [vmem:[%s1 + $0x10] sm:$0xf]
  %v33 = vld [vmem:[%s1 + $0x14] sm:$0xf]
  %v34 = vld [vmem:[%s1 + $0x18] sm:$0xf]
  %v35 = vld [vmem:[%s1 + $0x1c] sm:$0xf]
  %v36 = vld [vmem:[%s1 + $0x20] sm:$0xf]
  %v37 = vld [vmem:[%s1 + $0x24] sm:$0xf]
  %v38 = vld [vmem:[%s1 + $0x28] sm:$0xf]
  %v39 = vld [vmem:[%s1 + $0x2c] sm:$0xf]
  %v40 = vld [vmem:[%s1 + $0x30] sm:$0xf]
  %v41 = vld [vmem:[%s1 + $0x34] sm:$0xf]
  %v42 = vld [vmem:[%s1 + $0x38] sm:$0xf]
  %v43 = vld [vmem:[%s1 + $0x3c] sm:$0xf]
  %v60 = vunpack.c.l.b16 %v28
  %v61 = vunpack.c.l.b16 %v29
  %v62 = vunpack.c.l.b16 %v30
  %v63 = vunpack.c.l.b16 %v31
  %v64 = vunpack.c.l.b16 %v32
  %v65 = vunpack.c.l.b16 %v33
  %v66 = vunpack.c.l.b16 %v34
  %v67 = vunpack.c.l.b16 %v35
  %v68 = vunpack.c.l.b16 %v36
  %v69 = vunpack.c.l.b16 %v37
  %v70 = vunpack.c.l.b16 %v38
  %v71 = vunpack.c.l.b16 %v39
  %v72 = vunpack.c.l.b16 %v40
  %v73 = vunpack.c.l.b16 %v41
  %v74 = vunpack.c.l.b16 %v42
  %v75 = vunpack.c.l.b16 %v43
  %v76 = vpack.c.b16 %v61, %v60
  %v77 = vpack.c.b16 %v63, %v62
  %v78 = vpack.c.b16 %v65, %v64
  %v79 = vpack.c.b16 %v67, %v66
  %v80 = vpack.c.b16 %v69, %v68
  %v81 = vpack.c.b16 %v71, %v70
  %v82 = vpack.c.b16 %v73, %v72
  %v83 = vpack.c.b16 %v75, %v74
  %92 = vmatpush.bf16.msra.mxu0 %v83
  %93 = vmatpush.bf16.msra.mxu0 %v82
  %94 = vmatpush.bf16.msra.mxu0 %v81
  %95 = vmatpush.bf16.msra.mxu0 %v80
  %96 = vmatpush.bf16.msra.mxu0 %v79
  %97 = vmatpush.bf16.msra.mxu0 %v78
  %98 = vmatpush.bf16.msra.mxu0 %v77
  %99 = vmatpush.bf16.msra.mxu0 %v76
  %100 = vmatmul.bf16.gmra.mxu0 %v27
  %v101 = vpop.f32.mrf.mxu0
  %v102 = vadd.f32 0.0, %v101
  %v103 = vpop.f32.mrf.mxu0
  %v104 = vadd.f32 0.0, %v103
  %105 = vdwg.mxu0
  %v106 = vadd.f32 %v25, %v102
  %v107 = vadd.f32 %v26, %v104
  %108 = vst [vmem:[#allocation2] sm:$0xff] %v106
  %109 = vst [vmem:[#allocation2 + $0x8] sm:$0xff] %v107
  // Predicated region
  $region22: #{bert_forward.17} parent=0 // pred_check
    %p110 = pneg %p17
  $region23: #{bert_forward.17} parent=0 // pred_check_branch
    %112 = sbr.rel (%p110) target = $region25
  $region24: #{bert_forward.17} parent=0 // pred_region
    %v113 = vld [vmem:[#allocation2] sm:$0xff]
    %v114 = vld [vmem:[#allocation2 + $0x8] sm:$0xff]
    %v115 = vld [vmem:[%s2] sm:$0x1]
    %v117 = vperm.slane %v115, 0
    %v119 = vadd.f32 %v113, %v117
    %v120 = vadd.f32 %v114, %v117
    %v121 = vld [vmem:[%s3] sm:$0xff]
    %v122 = vld [vmem:[%s3 + $0x8] sm:$0xff]
    %v123 = vadd.f32 %v119, %v121
    %v124 = vadd.f32 %v120, %v122
    %125 = vst [vmem:[%s4] sm:$0xff] %v123
    %126 = vst [vmem:[%s4 + $0x8] sm:$0xff] %v124
  $region25: #{bert_forward.17} parent=0 // pred_fallthru
    _
  // Predicated region
  $region26: #{bert_forward.17} parent=0 // pred_check
    _
  $region27: #{bert_forward.17} parent=0 // pred_check_branch
    %128 = sbr.rel (0) target = $region29
  $region28: #{bert_forward.17} parent=0 // pred_region
    _
  $region29: #{bert_forward.17} parent=0 // pred_fallthru
    _
  // Predicated region
  $region30: #{bert_forward.17} parent=0 // pred_check
    _
  $region31: #{bert_forward.17} parent=0 // pred_check_branch
    %130 = sbr.rel (0) target = $region33
  $region32: #{bert_forward.17} parent=0 // pred_region
    _
  $region33: #{bert_forward.17} parent=0 // pred_fallthru
    _

// kernel: bert_forward.15
$region0: #{bert_forward.15}
  #allocation0 [shape = 'u32[]', space=smem, size = 0x4, offset = 0x4, fixed_abs, tag = 'smem constant byte address 0x4 - core index']
  #allocation1 [shape = 'u32[72,128]{1,0:T(1,128)}', space=vmem, size = 0x9000, scoped, tag = 'internal scratch']
  #allocation2 [shape = 'f32[16,128]{1,0:T(8,128)}', space=vmem, size = 0x2000, scoped, tag = 'scratch operand']
  %s0 = inlined_call_operand.vmem [shape: f32[16,128], index: 0, kind: input, shape index: {}]
  %s1 = inlined_call_operand.hbm [shape: bf16[128,384], index: 1, kind: input, shape index: {}]
  %s2 = inlined_call_operand.vmem [shape: f32[1,384], index: 2, kind: input, shape index: {}]
  %s3 = inlined_call_operand.vmem [shape: f32[1,128], index: 3, kind: input, shape index: {}]
  %s4 = inlined_call_operand.vmem [shape: f32[1,128], index: 4, kind: input, shape index: {}]
  %s5 = inlined_call_operand.vmem [shape: f32[16,384], index: 5, kind: output, shape index: {}]
  %s6 = sld [smem:[#allocation0]]
  $region99: #{bert_forward.15} parent=0
    _
  %s8 = ssub.s32 1, %s6
  %s9 = scalar_select 0, %s8, %s6
  $region1: #{bert_forward.15} parent=0
    #allocation3 [shape = 'u8[65536]{0}', space=vmem, size = 0x10000, scoped, tag = 'input window, operand 1']
    #allocation4 [shape = 's32[2]{0}', space=sflag, size = 0x8, scoped, tag = 'scoped memory for bert_forward.15']
    #allocation5 [shape = 'u8[16384]{0}', space=vmem, size = 0x4000, scoped, tag = 'output window, operand 0']
    %10 = vsyncpa [#allocation4], 0
    %s11 = scalar_lea.sflag [#allocation4], 1
    %12 = vsyncpa %s11, 0
    loop: start=0, step=1, limit=5
    $region2: #{bert_forward.15} parent=1 // loop_pre_header
      _
    $region3: #{bert_forward.15} parent=1 // loop_header
      %s14 = sphi 0, %s18
      %p15 = scmp.ge.s32.totalorder %s14, 5
      %s21 = sphi 0, %s40
      %s22 = sphi 0, %s36
      %s23 = sphi 0, %s32
      %s24 = sphi 0, %s21
      %s25 = sphi 0, %s22
      %s26 = sphi 0, %s23
      %s27 = sphi 0, %s24
      %s28 = sphi 0, %s25
      %s29 = sphi 0, %s26
      %s45 = sphi 0, %s47
      %s48 = sphi 0, %s45
      %s49 = sphi 0, %s48
      %s65 = sphi 0, %s49
      %s73 = sphi 0, %s75
      %s76 = sphi 0, %s73
      %s77 = sphi 0, %s76
      %s93 = sphi 0, %s77
      %s99 = sphi 0, %s101
      %s102 = sphi 0, %s99
      %s103 = sphi 0, %s102
      %s119 = sphi 0, %s103
      %s123 = sphi 0, %s123
      %s125 = sphi 0, %s123
      %s126 = sphi 0, %s125
      %s140 = sphi 0, %s126
      %s144 = sphi 0, %s144
      %s146 = sphi 0, %s144
      %s147 = sphi 0, %s146
      %s161 = sphi 0, %s147
      %s169 = sphi 0, %s171
      %s172 = sphi 0, %s169
      %s173 = sphi 0, %s172
      %s189 = sphi 0, %s173
    $region4: #{bert_forward.15} parent=1 // loop_header_branch
      %17 = sbr.rel (%p15) target = $region8
    $region5: #{bert_forward.15} parent=1 // loop_body
      %s19 = ssub.s32 %s14, 1
      %s20 = ssub.s32 %s14, 2
      %s30 = sadd.s32 1, %s23
      %p31 = scmp.ge.s32.totalorder %s30, 1
      %s32 = scalar_select %p31, 0, %s30
      %s33 = sadd.s32 1, %s22
      %s34 = scalar_select %p31, %s33, %s22
      %p35 = scmp.ge.s32.totalorder %s34, 3
      %s36 = scalar_select %p35, 0, %s34
      %s37 = sadd.s32 1, %s21
      %s38 = scalar_select %p35, %s37, %s21
      %p39 = scmp.ge.s32.totalorder %s38, 1
      %s40 = scalar_select %p39, 0, %s38
      %s41 = ssub.s32 %s21, %s40
      %s42 = ssub.s32 %s23, %s32
      %s43 = sor.u32 %s41, %s42
      %p44 = scmp.eq.s32.totalorder %s43, 0
      %s46 = sadd.s32 %s45, 1
      %s47 = scalar_select %p44, %s45, %s46
      %p50 = pneg %p44
      %p51 = scmp.eq.s32.totalorder %s14, 2
      %p52 = por %p50, %p51
      %p53 = scmp.ne.s32.totalorder %s45, %s48
      %p54 = scmp.eq.s32.totalorder %s14, 0
      %p55 = por %p53, %p54
      %p56 = scmp.ne.s32.totalorder %s45, %s48
      %p57 = scmp.eq.s32.totalorder %s19, 2
      %p58 = por %p56, %p57
      %p59 = scmp.ne.s32.totalorder %s48, %s49
      %p60 = scmp.eq.s32.totalorder %s19, 0
      %p61 = por %p59, %p60
      %p62 = scmp.ne.s32.totalorder %s48, %s49
      %p63 = scmp.eq.s32.totalorder %s20, 2
      %p64 = por %p62, %p63
      %p66 = scmp.ne.s32.totalorder %s49, %s65
      %p67 = scmp.eq.s32.totalorder %s20, 0
      %p68 = por %p66, %p67
      %s69 = ssub.s32 %s23, %s32
      %s70 = ssub.s32 %s22, %s36
      %s71 = sor.u32 %s69, %s70
      %p72 = scmp.eq.s32.totalorder %s71, 0
      %s74 = sadd.s32 %s73, 1
      %s75 = scalar_select %p72, %s73, %s74
      %p78 = pneg %p72
      %p79 = scmp.eq.s32.totalorder %s14, 2
      %p80 = por %p78, %p79
      %p81 = scmp.ne.s32.totalorder %s73, %s76
      %p82 = scmp.eq.s32.totalorder %s14, 0
      %p83 = por %p81, %p82
      %p84 = scmp.ne.s32.totalorder %s73, %s76
      %p85 = scmp.eq.s32.totalorder %s19, 2
      %p86 = por %p84, %p85
      %p87 = scmp.ne.s32.totalorder %s76, %s77
      %p88 = scmp.eq.s32.totalorder %s19, 0
      %p89 = por %p87, %p88
      %p90 = scmp.ne.s32.totalorder %s76, %s77
      %p91 = scmp.eq.s32.totalorder %s20, 2
      %p92 = por %p90, %p91
      %p94 = scmp.ne.s32.totalorder %s77, %s93
      %p95 = scmp.eq.s32.totalorder %s20, 0
      %p96 = por %p94, %p95
      %s97 = ssub.s32 %s22, %s36
      %p98 = scmp.eq.s32.totalorder %s97, 0
      %s100 = sadd.s32 %s99, 1
      %s101 = scalar_select %p98, %s99, %s100
      %p104 = pneg %p98
      %p105 = scmp.eq.s32.totalorder %s14, 2
      %p106 = por %p104, %p105
      %p107 = scmp.ne.s32.totalorder %s99, %s102
      %p108 = scmp.eq.s32.totalorder %s14, 0
      %p109 = por %p107, %p108
      %p110 = scmp.ne.s32.totalorder %s99, %s102
      %p111 = scmp.eq.s32.totalorder %s19, 2
      %p112 = por %p110, %p111
      %p113 = scmp.ne.s32.totalorder %s102, %s103
      %p114 = scmp.eq.s32.totalorder %s19, 0
      %p115 = por %p113, %p114
      %p116 = scmp.ne.s32.totalorder %s102, %s103
      %p117 = scmp.eq.s32.totalorder %s20, 2
      %p118 = por %p116, %p117
      %p120 = scmp.ne.s32.totalorder %s103, %s119
      %p121 = scmp.eq.s32.totalorder %s20, 0
      %p122 = por %p120, %p121
      %s124 = sadd.s32 %s123, 1
      %p127 = scmp.eq.s32.totalorder %s14, 2
      %p128 = scmp.ne.s32.totalorder %s123, %s125
      %p129 = scmp.eq.s32.totalorder %s14, 0
      %p130 = por %p128, %p129
      %p131 = scmp.ne.s32.totalorder %s123, %s125
      %p132 = scmp.eq.s32.totalorder %s19, 2
      %p133 = por %p131, %p132
      %p134 = scmp.ne.s32.totalorder %s125, %s126
      %p135 = scmp.eq.s32.totalorder %s19, 0
      %p136 = por %p134, %p135
      %p137 = scmp.ne.s32.totalorder %s125, %s126
      %p138 = scmp.eq.s32.totalorder %s20, 2
      %p139 = por %p137, %p138
      %p141 = scmp.ne.s32.totalorder %s126, %s140
      %p142 = scmp.eq.s32.totalorder %s20, 0
      %p143 = por %p141, %p142
      %s145 = sadd.s32 %s144, 1
      %p148 = scmp.eq.s32.totalorder %s14, 2
      %p149 = scmp.ne.s32.totalorder %s144, %s146
      %p150 = scmp.eq.s32.totalorder %s14, 0
      %p151 = por %p149, %p150
      %p152 = scmp.ne.s32.totalorder %s144, %s146
      %p153 = scmp.eq.s32.totalorder %s19, 2
      %p154 = por %p152, %p153
      %p155 = scmp.ne.s32.totalorder %s146, %s147
      %p156 = scmp.eq.s32.totalorder %s19, 0
      %p157 = por %p155, %p156
      %p158 = scmp.ne.s32.totalorder %s146, %s147
      %p159 = scmp.eq.s32.totalorder %s20, 2
      %p160 = por %p158, %p159
      %p162 = scmp.ne.s32.totalorder %s147, %s161
      %p163 = scmp.eq.s32.totalorder %s20, 0
      %p164 = por %p162, %p163
      %s165 = ssub.s32 %s21, %s40
      %s166 = ssub.s32 %s22, %s36
      %s167 = sor.u32 %s165, %s166
      %p168 = scmp.eq.s32.totalorder %s167, 0
      %s170 = sadd.s32 %s169, 1
      %s171 = scalar_select %p168, %s169, %s170
      %p174 = pneg %p168
      %p175 = scmp.eq.s32.totalorder %s14, 2
      %p176 = por %p174, %p175
      %p177 = scmp.ne.s32.totalorder %s169, %s172
      %p178 = scmp.eq.s32.totalorder %s14, 0
      %p179 = por %p177, %p178
      %p180 = scmp.ne.s32.totalorder %s169, %s172
      %p181 = scmp.eq.s32.totalorder %s19, 2
      %p182 = por %p180, %p181
      %p183 = scmp.ne.s32.totalorder %s172, %s173
      %p184 = scmp.eq.s32.totalorder %s19, 0
      %p185 = por %p183, %p184
      %p186 = scmp.ne.s32.totalorder %s172, %s173
      %p187 = scmp.eq.s32.totalorder %s20, 2
      %p188 = por %p186, %p187
      %p190 = scmp.ne.s32.totalorder %s173, %s189
      %p191 = scmp.eq.s32.totalorder %s20, 0
      %p192 = por %p190, %p191
      %p193 = scmp.le.s32.totalorder 1, %s14
      %p194 = scmp.lt.s32.totalorder %s14, 4
      %p195 = pnand %p193, %p194
      %p196 = pneg %p195
      // Predicated region
      $region9: #{bert_forward.15} parent=5 // pred_check
        _
      $region10: #{bert_forward.15} parent=5 // pred_check_branch
        %198 = sbr.rel (%p195) target = $region12
      $region11: #{bert_forward.15} parent=5 // pred_region
        %s199 = ssub.s32 %s14, 1
        // Predicated region
        $region13: #{bert_forward.15} parent=11 // pred_check
          %p200 = pneg %p61
        $region14: #{bert_forward.15} parent=11 // pred_check_branch
          %202 = sbr.rel (%p200) target = $region16
        $region15: #{bert_forward.15} parent=11 // pred_region
          %s203 = smul.u32 2, %s24
          %p204 = scmp.lt.s32.totalorder %s203, 1
          %s205 = scalar_select %p204, %s203, 1
          %p206 = scmp.lt.s32.totalorder %s26, 0
          %s207 = scalar_select %p206, %s26, 0
          %s208 = sadd.s32 %s207, %s205
          %s209 = smul.addr %s208, 8
          %s210 = scalar_lea.vmem %s0, %s209
          %s211 = smul.u32 2, %s24
        $region16: #{bert_forward.15} parent=11 // pred_fallthru
          _
        // Predicated region
        $region17: #{bert_forward.15} parent=11 // pred_check
          %p212 = pneg %p136
        $region18: #{bert_forward.15} parent=11 // pred_check_branch
          %214 = sbr.rel (%p212) target = $region20
        $region19: #{bert_forward.15} parent=11 // pred_region
          _
        $region20: #{bert_forward.15} parent=11 // pred_fallthru
          _
        // Predicated region
        $region21: #{bert_forward.15} parent=11 // pred_check
          %p215 = pneg %p157
        $region22: #{bert_forward.15} parent=11 // pred_check_branch
          %217 = sbr.rel (%p215) target = $region24
        $region23: #{bert_forward.15} parent=11 // pred_region
          _
        $region24: #{bert_forward.15} parent=11 // pred_fallthru
          _
      $region12: #{bert_forward.15} parent=5 // pred_fallthru
        _
      %p218 = scmp.lt.s32.totalorder %s14, 3
      // Predicated region
      $region25: #{bert_forward.15} parent=5 // pred_check
        %p219 = pneg %p218
      $region26: #{bert_forward.15} parent=5 // pred_check_branch
        %221 = sbr.rel (%p219) target = $region28
      $region27: #{bert_forward.15} parent=5 // pred_region
        // Predicated region
        $region29: #{bert_forward.15} parent=27 // pred_check
          %p222 = pneg %p83
        $region30: #{bert_forward.15} parent=27 // pred_check_branch
          %224 = sbr.rel (%p222) target = $region32
        $region31: #{bert_forward.15} parent=27 // pred_region
          %s225 = sand.u32 %s73, 1
          %s226 = scalar_lea.sflag [#allocation4], %s225
          %s227 = sand.u32 %s73, 1
          %s228 = smul.addr %s227, 64
          %s229 = scalar_lea.vmem [#allocation3], %s228
          %s230 = smul.u32 16, %s23
          %232 = vsyncadd %s226, 0
          %s233 = smul.addr %s230, 3
          %s234 = sadd.s32 %s22, %s233
          %s235 = smul.addr %s234, 4
          %s236 = scalar_lea.hbm %s1, %s235
          %s237 = sshll.u32 %s236, 4
          %s238 = int_to_ptr.hbm [resolvable:$true] %s237
          %s239 = sshll.u32 %s229, 4
          %s240 = int_to_ptr.vmem [resolvable:$true] %s239
          %245 = dma.hbm_to_vmem [thread:$0]  %s238, 1024, %s240, %s226, 192, 64, 4
        $region32: #{bert_forward.15} parent=27 // pred_fallthru
          _
        // Predicated region
        $region33: #{bert_forward.15} parent=27 // pred_check
          %p246 = pneg %p109
        $region34: #{bert_forward.15} parent=27 // pred_check_branch
          %248 = sbr.rel (%p246) target = $region36
        $region35: #{bert_forward.15} parent=27 // pred_region
          %p249 = scmp.lt.s32.totalorder %s22, 2
          %s250 = scalar_select %p249, %s22, 2
          %s251 = scalar_lea.vmem %s2, %s250
        $region36: #{bert_forward.15} parent=27 // pred_fallthru
          _
      $region28: #{bert_forward.15} parent=5 // pred_fallthru
        _
      %p252 = scmp.le.s32.totalorder 1, %s14
      %p253 = scmp.lt.s32.totalorder %s14, 4
      %p254 = pnand %p252, %p253
      %p255 = pneg %p254
      // Predicated region
      $region37: #{bert_forward.15} parent=5 // pred_check
        _
      $region38: #{bert_forward.15} parent=5 // pred_check_branch
        %257 = sbr.rel (%p254) target = $region40
      $region39: #{bert_forward.15} parent=5 // pred_region
        %s258 = ssub.s32 %s14, 1
        %s259 = sand.u32 %s76, 1
        %s260 = scalar_lea.sflag [#allocation4], %s259
        %s261 = sand.u32 %s76, 1
        %s262 = smul.addr %s261, 64
        %s263 = scalar_lea.vmem [#allocation3], %s262
        // Predicated region
        $region41: #{bert_forward.15} parent=39 // pred_check
          %p264 = pneg %p89
        $region42: #{bert_forward.15} parent=39 // pred_check_branch
          %266 = sbr.rel (%p264) target = $region44
        $region43: #{bert_forward.15} parent=39 // pred_region
          %268 = dma.done %s260, 1024
        $region44: #{bert_forward.15} parent=39 // pred_fallthru
          _
        %s269 = smul.u32 2, %s24
        %p270 = scmp.lt.s32.totalorder %s269, 1
        %s271 = scalar_select %p270, %s269, 1
        %p272 = scmp.lt.s32.totalorder %s26, 0
        %s273 = scalar_select %p272, %s26, 0
        %s274 = sadd.s32 %s273, %s271
        %s275 = smul.addr %s274, 8
        %s276 = scalar_lea.vmem %s0, %s275
        %p277 = pneg %p61
        %p278 = pneg %p58
        %s279 = sand.u32 %s76, 1
        %s280 = scalar_lea.sflag [#allocation4], %s279
        %s281 = sand.u32 %s76, 1
        %s282 = smul.addr %s281, 64
        %s283 = scalar_lea.vmem [#allocation3], %s282
        %p284 = pneg %p89
        %p285 = pneg %p86
        %p286 = scmp.lt.s32.totalorder %s25, 2
        %s287 = scalar_select %p286, %s25, 2
        %s288 = scalar_lea.vmem %s2, %s287
        %p289 = pneg %p115
        %p290 = pneg %p112
        %p291 = pneg %p136
        %p292 = pneg %p133
        %p293 = pneg %p157
        %p294 = pneg %p154
        %p295 = pneg %p185
        %p296 = pneg %p182
        %s297 = sand.u32 %s172, 1
        %s298 = sand.u32 %s172, 1
        %s299 = smul.addr %s298, 16
        %s300 = scalar_lea.vmem [#allocation5], %s299
        %s301 = smul.u32 2, %s24
        %p302 = scmp.lt.s32.totalorder %s301, 1
        %s303 = scalar_select %p302, %s301, 1
        %p304 = scmp.lt.s32.totalorder %s26, 0
        %s305 = scalar_select %p304, %s26, 0
        %s306 = sadd.s32 %s305, %s303
        %s307 = smul.addr %s306, 8
        %s308 = scalar_lea.vmem %s0, %s307
        %s309 = smul.u32 2, %s24
        %s310 = smul.u32 16, %s26
        %p311 = scmp.lt.s32.totalorder %s25, 2
        %s312 = scalar_select %p311, %s25, 2
        %s313 = scalar_lea.vmem %s2, %s312
        %s314 = smul.u32 2, %s24
        %p315 = scmp.eq.s32.totalorder %s26, 0
        // Predicated region
        $region45: #{bert_forward.15} parent=39 // pred_check
          %p316 = pneg %p315
        $region46: #{bert_forward.15} parent=39 // pred_check_branch
          %318 = sbr.rel (%p316) target = $region48
        $region47: #{bert_forward.15} parent=39 // pred_region
          %319 = vst [vmem:[#allocation2] sm:$0xff] 0.0
          %320 = vst [vmem:[#allocation2 + $0x8] sm:$0xff] 0.0
        $region48: #{bert_forward.15} parent=39 // pred_fallthru
          _
        %v321 = vld [vmem:[%s308] sm:$0xff]
        %v322 = vld [vmem:[%s308 + $0x8] sm:$0xff]
        %323 = vadd.xlane.f32.xlu0 %v321
        %v324 = vpop.xlane.xlu0 %323
        %325 = vadd.xlane.f32.xlu0 %v322
        %v326 = vpop.xlane.xlu0 %325
        %v327 = vrcp.pop 128.0
        %v328 = vmul.f32 128.0, %v327
        %v329 = vsub.f32 1.0, %v328
        %v330 = vmul.f32 %v327, %v329
        %v331 = vadd.f32 %v327, %v330
        %vm332 = vweird.f32 %v327
        %v333 = vsel %vm332, %v327, %v331
        %v334 = vmul.f32 %v324, %v333
        %v335 = vmul.f32 %v326, %v333
        %v336 = vsub.f32 %v321, %v334
        %v337 = vsub.f32 %v322, %v335
        %v338 = vmul.f32 %v336, %v336
        %v339 = vmul.f32 %v337, %v337
        %340 = vadd.xlane.f32.xlu0 %v338
        %v341 = vpop.xlane.xlu0 %340
        %342 = vadd.xlane.f32.xlu0 %v339
        %v343 = vpop.xlane.xlu0 %342
        %v344 = vmul.f32 %v341, %v333
        %v345 = vmul.f32 %v343, %v333
        %v346 = vadd.f32 %v344, 1e-05
        %v347 = vadd.f32 %v345, 1e-05
        %v348 = vrsqrt.pop %v346
        %v349 = vmul.f32 %v348, %v346
        %v350 = vmul.f32 %v349, %v348
        %v351 = vmul.f32 0.5, %v350
        %v352 = vsub.f32 1.5, %v351
        %v353 = vmul.f32 %v348, %v352
        %vm354 = vweird.f32 %v346
        %vm355 = vweird.f32 %v348
        %vm356 = vmor %vm354, %vm355
        %v357 = vsel %vm356, %v348, %v353
        %v358 = vrsqrt.pop %v347
        %v359 = vmul.f32 %v358, %v347
        %v360 = vmul.f32 %v359, %v358
        %v361 = vmul.f32 0.5, %v360
        %v362 = vsub.f32 1.5, %v361
        %v363 = vmul.f32 %v358, %v362
        %vm364 = vweird.f32 %v347
        %vm365 = vweird.f32 %v358
        %vm366 = vmor %vm364, %vm365
        %v367 = vsel %vm366, %v358, %v363
        %v368 = vmul.f32 %v336, %v357
        %v369 = vmul.f32 %v337, %v367
        %v370 = vld [vmem:[%s3] sm:$0x1]
        %v372 = vperm.slane %v370, 0
        %v374 = vmul.f32 %v368, %v372
        %v375 = vmul.f32 %v369, %v372
        %v376 = vld [vmem:[%s4] sm:$0x1]
        %v378 = vperm.slane %v376, 0
        %v380 = vadd.f32 %v374, %v378
        %v381 = vadd.f32 %v375, %v378
        %v382 = vld [vmem:[#allocation2] sm:$0xff]
        %v383 = vld [vmem:[#allocation2 + $0x8] sm:$0xff]
        %v384 = vpack.c.bf16 %v381, %v380
        %v385 = vld [vmem:[%s263] sm:$0xf]
        %v386 = vld [vmem:[%s263 + $0x4] sm:$0xf]
        %v387 = vld [vmem:[%s263 + $0x8] sm:$0xf]
        %v388 = vld [vmem:[%s263 + $0xc] sm:$0xf]
        %v389 = vld [vmem:[%s263 + $0x10] sm:$0xf]
        %v390 = vld [vmem:[%s263 + $0x14] sm:$0xf]
        %v391 = vld [vmem:[%s263 + $0x18] sm:$0xf]
        %v392 = vld [vmem:[%s263 + $0x1c] sm:$0xf]
        %v393 = vld [vmem:[%s263 + $0x20] sm:$0xf]
        %v394 = vld [vmem:[%s263 + $0x24] sm:$0xf]
        %v395 = vld [vmem:[%s263 + $0x28] sm:$0xf]
        %v396 = vld [vmem:[%s263 + $0x2c] sm:$0xf]
        %v397 = vld [vmem:[%s263 + $0x30] sm:$0xf]
        %v398 = vld [vmem:[%s263 + $0x34] sm:$0xf]
        %v399 = vld [vmem:[%s263 + $0x38] sm:$0xf]
        %v400 = vld [vmem:[%s263 + $0x3c] sm:$0xf]
        %v417 = vunpack.c.l.b16 %v385
        %v418 = vunpack.c.l.b16 %v386
        %v419 = vunpack.c.l.b16 %v387
        %v420 = vunpack.c.l.b16 %v388
        %v421 = vunpack.c.l.b16 %v389
        %v422 = vunpack.c.l.b16 %v390
        %v423 = vunpack.c.l.b16 %v391
        %v424 = vunpack.c.l.b16 %v392
        %v425 = vunpack.c.l.b16 %v393
        %v426 = vunpack.c.l.b16 %v394
        %v427 = vunpack.c.l.b16 %v395
        %v428 = vunpack.c.l.b16 %v396
        %v429 = vunpack.c.l.b16 %v397
        %v430 = vunpack.c.l.b16 %v398
        %v431 = vunpack.c.l.b16 %v399
        %v432 = vunpack.c.l.b16 %v400
        %v433 = vpack.c.b16 %v418, %v417
        %v434 = vpack.c.b16 %v420, %v419
        %v435 = vpack.c.b16 %v422, %v421
        %v436 = vpack.c.b16 %v424, %v423
        %v437 = vpack.c.b16 %v426, %v425
        %v438 = vpack.c.b16 %v428, %v427
        %v439 = vpack.c.b16 %v430, %v429
        %v440 = vpack.c.b16 %v432, %v431
        %449 = vmatpush.bf16.msra.mxu0 %v440
        %450 = vmatpush.bf16.msra.mxu0 %v439
        %451 = vmatpush.bf16.msra.mxu0 %v438
        %452 = vmatpush.bf16.msra.mxu0 %v437
        %453 = vmatpush.bf16.msra.mxu0 %v436
        %454 = vmatpush.bf16.msra.mxu0 %v435
        %455 = vmatpush.bf16.msra.mxu0 %v434
        %456 = vmatpush.bf16.msra.mxu0 %v433
        %457 = vmatmul.bf16.gmra.mxu0 %v384
        %v458 = vpop.f32.mrf.mxu0
        %v459 = vadd.f32 0.0, %v458
        %v460 = vpop.f32.mrf.mxu0
        %v461 = vadd.f32 0.0, %v460
        %462 = vdwg.mxu0
        %v463 = vadd.f32 %v382, %v459
        %v464 = vadd.f32 %v383, %v461
        %465 = vst [vmem:[#allocation2] sm:$0xff] %v463
        %466 = vst [vmem:[#allocation2 + $0x8] sm:$0xff] %v464
        // Predicated region
        $region49: #{bert_forward.15} parent=39 // pred_check
          %p467 = pneg %p315
        $region50: #{bert_forward.15} parent=39 // pred_check_branch
          %469 = sbr.rel (%p467) target = $region52
        $region51: #{bert_forward.15} parent=39 // pred_region
          %v470 = vld [vmem:[#allocation2] sm:$0xff]
          %v471 = vld [vmem:[#allocation2 + $0x8] sm:$0xff]
          %v472 = vld [vmem:[%s313] sm:$0x1]
          %v474 = vperm.slane %v472, 0
          %v476 = vadd.f32 %v470, %v474
          %v477 = vadd.f32 %v471, %v474
          %478 = vst [vmem:[%s300] sm:$0xff] %v476
          %479 = vst [vmem:[%s300 + $0x8] sm:$0xff] %v477
        $region52: #{bert_forward.15} parent=39 // pred_fallthru
          _
        %s480 = sand.u32 %s172, 1
        %s481 = sand.u32 %s172, 1
        %s482 = smul.addr %s481, 16
        %s483 = scalar_lea.vmem [#allocation5], %s482
        // Predicated region
        $region53: #{bert_forward.15} parent=39 // pred_check
          %p484 = pneg %p182
        $region54: #{bert_forward.15} parent=39 // pred_check_branch
          %486 = sbr.rel (%p484) target = $region56
        $region55: #{bert_forward.15} parent=39 // pred_region
          %s487 = smul.u32 2, %s24
          %s488 = smul.addr %s487, 3
          %s489 = sadd.s32 %s25, %s488
          %s490 = smul.addr %s489, 8
          %s491 = scalar_lea.vmem %s5, %s490
          // Predicated region
          $region57: #{bert_forward.15} parent=55 // pred_check
            _
          $region58: #{bert_forward.15} parent=55 // pred_check_branch
            %493 = sbr.rel (0) target = $region60
          $region59: #{bert_forward.15} parent=55 // pred_region
            // Predicated region
            $region61: #{bert_forward.15} parent=59 // pred_check
              _
            $region62: #{bert_forward.15} parent=59 // pred_check_branch
              %495 = sbr.rel (0) target = $region64
            $region63: #{bert_forward.15} parent=59 // pred_region
              // Predicated region
              $region76: #{bert_forward.15} parent=63 // pred_check
                _
              $region77: #{bert_forward.15} parent=63 // pred_check_branch
                %513 = sbr.rel (0) target = $region79
              $region78: #{bert_forward.15} parent=63 // pred_region
                loop: start=0, step=1, limit=1
                $region80: #{bert_forward.15} parent=78 // loop_pre_header
                  _
                $region81: #{bert_forward.15} parent=78 // loop_header
                  %s515 = sphi 0, %s519
                  %p516 = scmp.ge.s32.totalorder %s515, 1
                  %s520 = sphi %s483, %s483
                  %s521 = sphi %s491, %s491
                $region82: #{bert_forward.15} parent=78 // loop_header_branch
                  %518 = sbr.rel (%p516) target = $region86
                $region83: #{bert_forward.15} parent=78 // loop_body
                  %v522 = vld [vmem:[%s520] sm:$0xff]
                  %523 = vst [vmem:[%s521] sm:$0xff] %v522
                  %v524 = vld [vmem:[%s520 + $0x8] sm:$0xff]
                  %525 = vst [vmem:[%s521 + $0x18] sm:$0xff] %v524
                $region84: #{bert_forward.15} parent=78 // loop_footer
                  %s519 = sadd.s32 1, %s515
                $region85: #{bert_forward.15} parent=78 // loop_footer_branch
                  %514 = sbr.rel target = $region81
                $region86: #{bert_forward.15} parent=78 // loop_exit
                  _
              $region79: #{bert_forward.15} parent=63 // pred_fallthru
                _
              // Predicated region
              $region87: #{bert_forward.15} parent=63 // pred_check
                _
              $region88: #{bert_forward.15} parent=63 // pred_check_branch
                %527 = sbr.rel target = $region90
              $region89: #{bert_forward.15} parent=63 // pred_region
                _
              $region90: #{bert_forward.15} parent=63 // pred_fallthru
                _
            $region64: #{bert_forward.15} parent=59 // pred_fallthru
              _
            // Predicated region
            $region65: #{bert_forward.15} parent=59 // pred_check
              _
            $region66: #{bert_forward.15} parent=59 // pred_check_branch
              %497 = sbr.rel target = $region68
            $region67: #{bert_forward.15} parent=59 // pred_region
              %s499 = ssub.s32 256, 1
              loop: start=0, step=1, limit=1
              $region69: #{bert_forward.15} parent=67 // loop_pre_header
                _
              $region70: #{bert_forward.15} parent=67 // loop_header
                %s501 = sphi 0, %s505
                %p502 = scmp.ge.s32.totalorder %s501, 1
                %s506 = sphi %s483, %s483
                %s507 = sphi %s491, %s491
              $region71: #{bert_forward.15} parent=67 // loop_header_branch
                %504 = sbr.rel (%p502) target = $region75
              $region72: #{bert_forward.15} parent=67 // loop_body
                %v508 = vld [vmem:[%s506] sm:%s499]
                %509 = vst [vmem:[%s507] sm:%s499] %v508
                %v510 = vld [vmem:[%s506 + $0x8] sm:%s499]
                %511 = vst [vmem:[%s507 + $0x18] sm:%s499] %v510
              $region73: #{bert_forward.15} parent=67 // loop_footer
                %s505 = sadd.s32 1, %s501
              $region74: #{bert_forward.15} parent=67 // loop_footer_branch
                %500 = sbr.rel target = $region70
              $region75: #{bert_forward.15} parent=67 // loop_exit
                _
            $region68: #{bert_forward.15} parent=59 // pred_fallthru
              _
          $region60: #{bert_forward.15} parent=55 // pred_fallthru
            _
          %528 = vnop
        $region56: #{bert_forward.15} parent=39 // pred_fallthru
          _
      $region40: #{bert_forward.15} parent=5 // pred_fallthru
        _
      %p529 = scmp.le.s32.totalorder 2, %s14
      // Predicated region
      $region91: #{bert_forward.15} parent=5 // pred_check
        %p530 = pneg %p529
      $region92: #{bert_forward.15} parent=5 // pred_check_branch
        %532 = sbr.rel (%p530) target = $region94
      $region93: #{bert_forward.15} parent=5 // pred_region
        %s533 = ssub.s32 %s14, 2
        // Predicated region
        $region95: #{bert_forward.15} parent=93 // pred_check
          %p534 = pneg %p188
        $region96: #{bert_forward.15} parent=93 // pred_check_branch
          %536 = sbr.rel (%p534) target = $region98
        $region97: #{bert_forward.15} parent=93 // pred_region
          %s537 = sand.u32 %s173, 1
          %s538 = sand.u32 %s173, 1
          %s539 = smul.addr %s538, 16
          %s540 = scalar_lea.vmem [#allocation5], %s539
        $region98: #{bert_forward.15} parent=93 // pred_fallthru
          _
      $region94: #{bert_forward.15} parent=5 // pred_fallthru
        _
    $region6: #{bert_forward.15} parent=1 // loop_footer
      %s18 = sadd.s32 1, %s14
    $region7: #{bert_forward.15} parent=1 // loop_footer_branch
      %13 = sbr.rel target = $region3
    $region8: #{bert_forward.15} parent=1 // loop_exit
      _
    %541 = vsyncpa [#allocation4], 1
    %s542 = scalar_lea.sflag [#allocation4], 1
    %543 = vsyncpa %s542, 1

// kernel: bert_forward.18
$region0: #{bert_forward.18}
  #allocation0 [shape = 'u32[]', space=smem, size = 0x4, offset = 0x4, fixed_abs, tag = 'smem constant byte address 0x4 - core index']
  #allocation1 [shape = 'u32[72,128]{1,0:T(1,128)}', space=vmem, size = 0x9000, scoped, tag = 'internal scratch']
  #allocation2 [shape = 'f32[16,512]{1,0:T(8,128)}', space=vmem, size = 0x8000, scoped, tag = 'scratch operand']
  %s0 = inlined_call_operand.vmem [shape: f32[16,128], index: 0, kind: input, shape index: {}]
  %s1 = inlined_call_operand.hbm [shape: bf16[128,512], index: 1, kind: input, shape index: {}]
  %s2 = inlined_call_operand.vmem [shape: f32[1,512], index: 2, kind: input, shape index: {}]
  %s3 = inlined_call_operand.vmem [shape: f32[1,128], index: 3, kind: input, shape index: {}]
  %s4 = inlined_call_operand.vmem [shape: f32[1,128], index: 4, kind: input, shape index: {}]
  %s5 = inlined_call_operand.vmem [shape: f32[16,512], index: 5, kind: output, shape index: {}]
  %s6 = sld [smem:[#allocation0]]
  $region42: #{bert_forward.18} parent=0
    _
  %s8 = ssub.s32 1, %s6
  %s9 = scalar_select 0, %s8, %s6
  $region1: #{bert_forward.18} parent=0
    #allocation3 [shape = 'u8[131072]{0}', space=vmem, size = 0x20000, scoped, tag = 'input window, operand 1, single buffered']
    #allocation4 [shape = 's32[1]{0}', space=sflag, size = 0x4, scoped, tag = 'scoped memory for bert_forward.18']
    %10 = vsyncpa [#allocation4], 0
    // Predicated region
    $region2: #{bert_forward.18} parent=1 // pred_check
      _
    $region3: #{bert_forward.18} parent=1 // pred_check_branch
      %12 = sbr.rel (0) target = $region5
    $region4: #{bert_forward.18} parent=1 // pred_region
      _
    $region5: #{bert_forward.18} parent=1 // pred_fallthru
      _
    // Predicated region
    $region6: #{bert_forward.18} parent=1 // pred_check
      _
    $region7: #{bert_forward.18} parent=1 // pred_check_branch
      %14 = sbr.rel (0) target = $region9
    $region8: #{bert_forward.18} parent=1 // pred_region
      %16 = vsyncadd [#allocation4], 0
      %s17 = sshll.u32 %s1, 4
      %s18 = int_to_ptr.hbm [resolvable:$true] %s17
      %s19 = sshll.u32 [#allocation3], 4
      %s20 = int_to_ptr.vmem [resolvable:$true] %s19
      %25 = dma.hbm_to_vmem [thread:$0]  %s18, 4096, %s20, [#allocation4], 256, 256, 16
    $region9: #{bert_forward.18} parent=1 // pred_fallthru
      _
    // Predicated region
    $region10: #{bert_forward.18} parent=1 // pred_check
      _
    $region11: #{bert_forward.18} parent=1 // pred_check_branch
      %27 = sbr.rel (0) target = $region13
    $region12: #{bert_forward.18} parent=1 // pred_region
      _
    $region13: #{bert_forward.18} parent=1 // pred_fallthru
      _
    // Predicated region
    $region14: #{bert_forward.18} parent=1 // pred_check
      _
    $region15: #{bert_forward.18} parent=1 // pred_check_branch
      %29 = sbr.rel (0) target = $region17
    $region16: #{bert_forward.18} parent=1 // pred_region
      _
    $region17: #{bert_forward.18} parent=1 // pred_fallthru
      _
    // Predicated region
    $region18: #{bert_forward.18} parent=1 // pred_check
      _
    $region19: #{bert_forward.18} parent=1 // pred_check_branch
      %31 = sbr.rel (0) target = $region21
    $region20: #{bert_forward.18} parent=1 // pred_region
      _
    $region21: #{bert_forward.18} parent=1 // pred_fallthru
      _
    // Predicated region
    $region22: #{bert_forward.18} parent=1 // pred_check
      _
    $region23: #{bert_forward.18} parent=1 // pred_check_branch
      %33 = sbr.rel (0) target = $region25
    $region24: #{bert_forward.18} parent=1 // pred_region
      %35 = dma.done [#allocation4], 4096
    $region25: #{bert_forward.18} parent=1 // pred_fallthru
      _
    %p36 = scmp.eq.s32.totalorder 0, 0
    // Predicated region
    $region26: #{bert_forward.18} parent=1 // pred_check
      %p37 = pneg %p36
    $region27: #{bert_forward.18} parent=1 // pred_check_branch
      %39 = sbr.rel (%p37) target = $region29
    $region28: #{bert_forward.18} parent=1 // pred_region
      %40 = vst [vmem:[#allocation2] sm:$0xff] 0.0
      %41 = vst [vmem:[#allocation2 + $0x8] sm:$0xff] 0.0
      %42 = vst [vmem:[#allocation2 + $0x10] sm:$0xff] 0.0
      %43 = vst [vmem:[#allocation2 + $0x18] sm:$0xff] 0.0
      %44 = vst [vmem:[#allocation2 + $0x20] sm:$0xff] 0.0
      %45 = vst [vmem:[#allocation2 + $0x28] sm:$0xff] 0.0
      %46 = vst [vmem:[#allocation2 + $0x30] sm:$0xff] 0.0
      %47 = vst [vmem:[#allocation2 + $0x38] sm:$0xff] 0.0
    $region29: #{bert_forward.18} parent=1 // pred_fallthru
      _
    %v48 = vld [vmem:[%s0] sm:$0xff]
    %v49 = vld [vmem:[%s0 + $0x8] sm:$0xff]
    %50 = vadd.xlane.f32.xlu0 %v48
    %v51 = vpop.xlane.xlu0 %50
    %52 = vadd.xlane.f32.xlu0 %v49
    %v53 = vpop.xlane.xlu0 %52
    %v54 = vrcp.pop 128.0
    %v55 = vmul.f32 128.0, %v54
    %v56 = vsub.f32 1.0, %v55
    %v57 = vmul.f32 %v54, %v56
    %v58 = vadd.f32 %v54, %v57
    %vm59 = vweird.f32 %v54
    %v60 = vsel %vm59, %v54, %v58
    %v61 = vmul.f32 %v51, %v60
    %v62 = vmul.f32 %v53, %v60
    %v63 = vsub.f32 %v48, %v61
    %v64 = vsub.f32 %v49, %v62
    %v65 = vmul.f32 %v63, %v63
    %v66 = vmul.f32 %v64, %v64
    %67 = vadd.xlane.f32.xlu0 %v65
    %v68 = vpop.xlane.xlu0 %67
    %69 = vadd.xlane.f32.xlu0 %v66
    %v70 = vpop.xlane.xlu0 %69
    %v71 = vmul.f32 %v68, %v60
    %v72 = vmul.f32 %v70, %v60
    %v73 = vadd.f32 %v71, 1e-05
    %v74 = vadd.f32 %v72, 1e-05
    %v75 = vrsqrt.pop %v73
    %v76 = vmul.f32 %v75, %v73
    %v77 = vmul.f32 %v76, %v75
    %v78 = vmul.f32 0.5, %v77
    %v79 = vsub.f32 1.5, %v78
    %v80 = vmul.f32 %v75, %v79
    %vm81 = vweird.f32 %v73
    %vm82 = vweird.f32 %v75
    %vm83 = vmor %vm81, %vm82
    %v84 = vsel %vm83, %v75, %v80
    %v85 = vrsqrt.pop %v74
    %v86 = vmul.f32 %v85, %v74
    %v87 = vmul.f32 %v86, %v85
    %v88 = vmul.f32 0.5, %v87
    %v89 = vsub.f32 1.5, %v88
    %v90 = vmul.f32 %v85, %v89
    %vm91 = vweird.f32 %v74
    %vm92 = vweird.f32 %v85
    %vm93 = vmor %vm91, %vm92
    %v94 = vsel %vm93, %v85, %v90
    %v95 = vmul.f32 %v63, %v84
    %v96 = vmul.f32 %v64, %v94
    %v97 = vld [vmem:[%s3] sm:$0x1]
    %v99 = vperm.slane %v97, 0
    %v101 = vmul.f32 %v95, %v99
    %v102 = vmul.f32 %v96, %v99
    %v103 = vld [vmem:[%s4] sm:$0x1]
    %v105 = vperm.slane %v103, 0
    %v107 = vadd.f32 %v101, %v105
    %v108 = vadd.f32 %v102, %v105
    %v109 = vld [vmem:[#allocation2] sm:$0xff]
    %v110 = vld [vmem:[#allocation2 + $0x8] sm:$0xff]
    %v111 = vld [vmem:[#allocation2 + $0x10] sm:$0xff]
    %v112 = vld [vmem:[#allocation2 + $0x18] sm:$0xff]
    %v113 = vld [vmem:[#allocation2 + $0x20] sm:$0xff]
    %v114 = vld [vmem:[#allocation2 + $0x28] sm:$0xff]
    %v115 = vld [vmem:[#allocation2 + $0x30] sm:$0xff]
    %v116 = vld [vmem:[#allocation2 + $0x38] sm:$0xff]
    %v117 = vpack.c.bf16 %v108, %v107
    %v118 = vld [vmem:[#allocation3] sm:$0xff]
    %v119 = vld [vmem:[#allocation3 + $0x8] sm:$0xff]
    %v120 = vld [vmem:[#allocation3 + $0x10] sm:$0xff]
    %v121 = vld [vmem:[#allocation3 + $0x18] sm:$0xff]
    %v122 = vld [vmem:[#allocation3 + $0x20] sm:$0xff]
    %v123 = vld [vmem:[#allocation3 + $0x28] sm:$0xff]
    %v124 = vld [vmem:[#allocation3 + $0x30] sm:$0xff]
    %v125 = vld [vmem:[#allocation3 + $0x38] sm:$0xff]
    %v126 = vld [vmem:[#allocation3 + $0x40] sm:$0xff]
    %v127 = vld [vmem:[#allocation3 + $0x48] sm:$0xff]
    %v128 = vld [vmem:[#allocation3 + $0x50] sm:$0xff]
    %v129 = vld [vmem:[#allocation3 + $0x58] sm:$0xff]
    %v130 = vld [vmem:[#allocation3 + $0x60] sm:$0xff]
    %v131 = vld [vmem:[#allocation3 + $0x68] sm:$0xff]
    %v132 = vld [vmem:[#allocation3 + $0x70] sm:$0xff]
    %v133 = vld [vmem:[#allocation3 + $0x78] sm:$0xff]
    %v134 = vld [vmem:[#allocation3 + $0x80] sm:$0xff]
    %v135 = vld [vmem:[#allocation3 + $0x88] sm:$0xff]
    %v136 = vld [vmem:[#allocation3 + $0x90] sm:$0xff]
    %v137 = vld [vmem:[#allocation3 + $0x98] sm:$0xff]
    %v138 = vld [vmem:[#allocation3 + $0xa0] sm:$0xff]
    %v139 = vld [vmem:[#allocation3 + $0xa8] sm:$0xff]
    %v140 = vld [vmem:[#allocation3 + $0xb0] sm:$0xff]
    %v141 = vld [vmem:[#allocation3 + $0xb8] sm:$0xff]
    %v142 = vld [vmem:[#allocation3 + $0xc0] sm:$0xff]
    %v143 = vld [vmem:[#allocation3 + $0xc8] sm:$0xff]
    %v144 = vld [vmem:[#allocation3 + $0xd0] sm:$0xff]
    %v145 = vld [vmem:[#allocation3 + $0xd8] sm:$0xff]
    %v146 = vld [vmem:[#allocation3 + $0xe0] sm:$0xff]
    %v147 = vld [vmem:[#allocation3 + $0xe8] sm:$0xff]
    %v148 = vld [vmem:[#allocation3 + $0xf0] sm:$0xff]
    %v149 = vld [vmem:[#allocation3 + $0xf8] sm:$0xff]
    %v182 = vunpack.c.l.b16 %v118
    %v183 = vunpack.c.h.b16 %v118
    %v184 = vunpack.c.l.b16 %v119
    %v185 = vunpack.c.h.b16 %v119
    %v186 = vunpack.c.l.b16 %v120
    %v187 = vunpack.c.h.b16 %v120
    %v188 = vunpack.c.l.b16 %v121
    %v189 = vunpack.c.h.b16 %v121
    %v190 = vunpack.c.l.b16 %v122
    %v191 = vunpack.c.h.b16 %v122
    %v192 = vunpack.c.l.b16 %v123
    %v193 = vunpack.c.h.b16 %v123
    %v194 = vunpack.c.l.b16 %v124
    %v195 = vunpack.c.h.b16 %v124
    %v196 = vunpack.c.l.b16 %v125
    %v197 = vunpack.c.h.b16 %v125
    %v198 = vunpack.c.l.b16 %v126
    %v199 = vunpack.c.h.b16 %v126
    %v200 = vunpack.c.l.b16 %v127
    %v201 = vunpack.c.h.b16 %v127
    %v202 = vunpack.c.l.b16 %v128
    %v203 = vunpack.c.h.b16 %v128
    %v204 = vunpack.c.l.b16 %v129
    %v205 = vunpack.c.h.b16 %v129
    %v206 = vunpack.c.l.b16 %v130
    %v207 = vunpack.c.h.b16 %v130
    %v208 = vunpack.c.l.b16 %v131
    %v209 = vunpack.c.h.b16 %v131
    %v210 = vunpack.c.l.b16 %v132
    %v211 = vunpack.c.h.b16 %v132
    %v212 = vunpack.c.l.b16 %v133
    %v213 = vunpack.c.h.b16 %v133
    %v214 = vunpack.c.l.b16 %v134
    %v215 = vunpack.c.h.b16 %v134
    %v216 = vunpack.c.l.b16 %v135
    %v217 = vunpack.c.h.b16 %v135
    %v218 = vunpack.c.l.b16 %v136
    %v219 = vunpack.c.h.b16 %v136
    %v220 = vunpack.c.l.b16 %v137
    %v221 = vunpack.c.h.b16 %v137
    %v222 = vunpack.c.l.b16 %v138
    %v223 = vunpack.c.h.b16 %v138
    %v224 = vunpack.c.l.b16 %v139
    %v225 = vunpack.c.h.b16 %v139
    %v226 = vunpack.c.l.b16 %v140
    %v227 = vunpack.c.h.b16 %v140
    %v228 = vunpack.c.l.b16 %v141
    %v229 = vunpack.c.h.b16 %v141
    %v230 = vunpack.c.l.b16 %v142
    %v231 = vunpack.c.h.b16 %v142
    %v232 = vunpack.c.l.b16 %v143
    %v233 = vunpack.c.h.b16 %v143
    %v234 = vunpack.c.l.b16 %v144
    %v235 = vunpack.c.h.b16 %v144
    %v236 = vunpack.c.l.b16 %v145
    %v237 = vunpack.c.h.b16 %v145
    %v238 = vunpack.c.l.b16 %v146
    %v239 = vunpack.c.h.b16 %v146
    %v240 = vunpack.c.l.b16 %v147
    %v241 = vunpack.c.h.b16 %v147
    %v242 = vunpack.c.l.b16 %v148
    %v243 = vunpack.c.h.b16 %v148
    %v244 = vunpack.c.l.b16 %v149
    %v245 = vunpack.c.h.b16 %v149
    %v246 = vpack.c.b16 %v186, %v182
    %v247 = vpack.c.b16 %v187, %v183
    %v248 = vpack.c.b16 %v188, %v184
    %v249 = vpack.c.b16 %v189, %v185
    %v250 = vpack.c.b16 %v194, %v190
    %v251 = vpack.c.b16 %v195, %v191
    %v252 = vpack.c.b16 %v196, %v192
    %v253 = vpack.c.b16 %v197, %v193
    %v254 = vpack.c.b16 %v202, %v198
    %v255 = vpack.c.b16 %v203, %v199
    %v256 = vpack.c.b16 %v204, %v200
    %v257 = vpack.c.b16 %v205, %v201
    %v258 = vpack.c.b16 %v210, %v206
    %v259 = vpack.c.b16 %v211, %v207
    %v260 = vpack.c.b16 %v212, %v208
    %v261 = vpack.c.b16 %v213, %v209
    %v262 = vpack.c.b16 %v218, %v214
    %v263 = vpack.c.b16 %v219, %v215
    %v264 = vpack.c.b16 %v220, %v216
    %v265 = vpack.c.b16 %v221, %v217
    %v266 = vpack.c.b16 %v226, %v222
    %v267 = vpack.c.b16 %v227, %v223
    %v268 = vpack.c.b16 %v228, %v224
    %v269 = vpack.c.b16 %v229, %v225
    %v270 = vpack.c.b16 %v234, %v230
    %v271 = vpack.c.b16 %v235, %v231
    %v272 = vpack.c.b16 %v236, %v232
    %v273 = vpack.c.b16 %v237, %v233
    %v274 = vpack.c.b16 %v242, %v238
    %v275 = vpack.c.b16 %v243, %v239
    %v276 = vpack.c.b16 %v244, %v240
    %v277 = vpack.c.b16 %v245, %v241
    %310 = vmatpush.bf16.msra.mxu0 %v274
    %311 = vmatpush.bf16.msra.mxu0 %v270
    %312 = vmatpush.bf16.msra.mxu0 %v266
    %313 = vmatpush.bf16.msra.mxu0 %v262
    %314 = vmatpush.bf16.msra.mxu0 %v258
    %315 = vmatpush.bf16.msra.mxu0 %v254
    %316 = vmatpush.bf16.msra.mxu0 %v250
    %317 = vmatpush.bf16.msra.mxu0 %v246
    %318 = vmatmul.bf16.gmra.mxu0 %v117
    %v319 = vpop.f32.mrf.mxu0
    %v320 = vadd.f32 0.0, %v319
    %v321 = vpop.f32.mrf.mxu0
    %v322 = vadd.f32 0.0, %v321
    %323 = vdwg.mxu0
    %324 = vmatpush.bf16.msra.mxu0 %v275
    %325 = vmatpush.bf16.msra.mxu0 %v271
    %326 = vmatpush.bf16.msra.mxu0 %v267
    %327 = vmatpush.bf16.msra.mxu0 %v263
    %328 = vmatpush.bf16.msra.mxu0 %v259
    %329 = vmatpush.bf16.msra.mxu0 %v255
    %330 = vmatpush.bf16.msra.mxu0 %v251
    %331 = vmatpush.bf16.msra.mxu0 %v247
    %332 = vmatmul.bf16.gmra.mxu0 %v117
    %v333 = vpop.f32.mrf.mxu0
    %v334 = vadd.f32 0.0, %v333
    %v335 = vpop.f32.mrf.mxu0
    %v336 = vadd.f32 0.0, %v335
    %337 = vdwg.mxu0
    %338 = vmatpush.bf16.msra.mxu0 %v276
    %339 = vmatpush.bf16.msra.mxu0 %v272
    %340 = vmatpush.bf16.msra.mxu0 %v268
    %341 = vmatpush.bf16.msra.mxu0 %v264
    %342 = vmatpush.bf16.msra.mxu0 %v260
    %343 = vmatpush.bf16.msra.mxu0 %v256
    %344 = vmatpush.bf16.msra.mxu0 %v252
    %345 = vmatpush.bf16.msra.mxu0 %v248
    %346 = vmatmul.bf16.gmra.mxu0 %v117
    %v347 = vpop.f32.mrf.mxu0
    %v348 = vadd.f32 0.0, %v347
    %v349 = vpop.f32.mrf.mxu0
    %v350 = vadd.f32 0.0, %v349
    %351 = vdwg.mxu0
    %352 = vmatpush.bf16.msra.mxu0 %v277
    %353 = vmatpush.bf16.msra.mxu0 %v273
    %354 = vmatpush.bf16.msra.mxu0 %v269
    %355 = vmatpush.bf16.msra.mxu0 %v265
    %356 = vmatpush.bf16.msra.mxu0 %v261
    %357 = vmatpush.bf16.msra.mxu0 %v257
    %358 = vmatpush.bf16.msra.mxu0 %v253
    %359 = vmatpush.bf16.msra.mxu0 %v249
    %360 = vmatmul.bf16.gmra.mxu0 %v117
    %v361 = vpop.f32.mrf.mxu0
    %v362 = vadd.f32 0.0, %v361
    %v363 = vpop.f32.mrf.mxu0
    %v364 = vadd.f32 0.0, %v363
    %365 = vdwg.mxu0
    %v366 = vadd.f32 %v109, %v320
    %v367 = vadd.f32 %v110, %v334
    %v368 = vadd.f32 %v111, %v348
    %v369 = vadd.f32 %v112, %v362
    %v370 = vadd.f32 %v113, %v322
    %v371 = vadd.f32 %v114, %v336
    %v372 = vadd.f32 %v115, %v350
    %v373 = vadd.f32 %v116, %v364
    %374 = vst [vmem:[#allocation2] sm:$0xff] %v366
    %375 = vst [vmem:[#allocation2 + $0x8] sm:$0xff] %v367
    %376 = vst [vmem:[#allocation2 + $0x10] sm:$0xff] %v368
    %377 = vst [vmem:[#allocation2 + $0x18] sm:$0xff] %v369
    %378 = vst [vmem:[#allocation2 + $0x20] sm:$0xff] %v370
    %379 = vst [vmem:[#allocation2 + $0x28] sm:$0xff] %v371
    %380 = vst [vmem:[#allocation2 + $0x30] sm:$0xff] %v372
    %381 = vst [vmem:[#allocation2 + $0x38] sm:$0xff] %v373
    // Predicated region
    $region30: #{bert_forward.18} parent=1 // pred_check
      %p382 = pneg %p36
    $region31: #{bert_forward.18} parent=1 // pred_check_branch
      %384 = sbr.rel (%p382) target = $region33
    $region32: #{bert_forward.18} parent=1 // pred_region
      %v385 = vld [vmem:[#allocation2] sm:$0xff]
      %v386 = vld [vmem:[#allocation2 + $0x8] sm:$0xff]
      %v387 = vld [vmem:[#allocation2 + $0x10] sm:$0xff]
      %v388 = vld [vmem:[#allocation2 + $0x18] sm:$0xff]
      %v389 = vld [vmem:[#allocation2 + $0x20] sm:$0xff]
      %v390 = vld [vmem:[#allocation2 + $0x28] sm:$0xff]
      %v391 = vld [vmem:[#allocation2 + $0x30] sm:$0xff]
      %v392 = vld [vmem:[#allocation2 + $0x38] sm:$0xff]
      %v393 = vld [vmem:[%s2] sm:$0xf]
      %v395 = vperm.slane %v393, 0
      %v396 = vperm.slane %v393, 1
      %v397 = vperm.slane %v393, 2
      %v398 = vperm.slane %v393, 3
      %v403 = vadd.f32 %v385, %v395
      %v404 = vadd.f32 %v386, %v396
      %v405 = vadd.f32 %v387, %v397
      %v406 = vadd.f32 %v388, %v398
      %v407 = vadd.f32 %v389, %v395
      %v408 = vadd.f32 %v390, %v396
      %v409 = vadd.f32 %v391, %v397
      %v410 = vadd.f32 %v392, %v398
      %v411 = vmax.f32 %v403, 0.0
      %v412 = vmax.f32 %v404, 0.0
      %v413 = vmax.f32 %v405, 0.0
      %v414 = vmax.f32 %v406, 0.0
      %v415 = vmax.f32 %v407, 0.0
      %v416 = vmax.f32 %v408, 0.0
      %v417 = vmax.f32 %v409, 0.0
      %v418 = vmax.f32 %v410, 0.0
      %419 = vst [vmem:[%s5] sm:$0xff] %v411
      %420 = vst [vmem:[%s5 + $0x8] sm:$0xff] %v412
      %421 = vst [vmem:[%s5 + $0x10] sm:$0xff] %v413
      %422 = vst [vmem:[%s5 + $0x18] sm:$0xff] %v414
      %423 = vst [vmem:[%s5 + $0x20] sm:$0xff] %v415
      %424 = vst [vmem:[%s5 + $0x28] sm:$0xff] %v416
      %425 = vst [vmem:[%s5 + $0x30] sm:$0xff] %v417
      %426 = vst [vmem:[%s5 + $0x38] sm:$0xff] %v418
    $region33: #{bert_forward.18} parent=1 // pred_fallthru
      _
    // Predicated region
    $region34: #{bert_forward.18} parent=1 // pred_check
      _
    $region35: #{bert_forward.18} parent=1 // pred_check_branch
      %428 = sbr.rel (0) target = $region37
    $region36: #{bert_forward.18} parent=1 // pred_region
      _
    $region37: #{bert_forward.18} parent=1 // pred_fallthru
      _
    // Predicated region
    $region38: #{bert_forward.18} parent=1 // pred_check
      _
    $region39: #{bert_forward.18} parent=1 // pred_check_branch
      %430 = sbr.rel (0) target = $region41
    $region40: #{bert_forward.18} parent=1 // pred_region
      _
    $region41: #{bert_forward.18} parent=1 // pred_fallthru
      _
    %431 = vsyncpa [#allocation4], 1

// kernel: bert_forward.16
$region0: #{bert_forward.16}
  #allocation0 [shape = 'u32[]', space=smem, size = 0x4, offset = 0x4, fixed_abs, tag = 'smem constant byte address 0x4 - core index']
  #allocation1 [shape = 'u32[72,128]{1,0:T(1,128)}', space=vmem, size = 0x9000, scoped, tag = 'internal scratch']
  %s0 = inlined_call_operand.vmem [shape: f32[2,8,384], index: 0, kind: input, shape index: {}]
  %s1 = inlined_call_operand.vmem [shape: f32[2,1,8], index: 1, kind: input, shape index: {}]
  %s2 = inlined_call_operand.vmem [shape: f32[2,8,128], index: 2, kind: output, shape index: {}]
  %s3 = sld [smem:[#allocation0]]
  $region41: #{bert_forward.16} parent=0
    _
  %s5 = ssub.s32 1, %s3
  %s6 = scalar_select 0, %s5, %s3
  loop: start=0, step=1, limit=4
  $region2: #{bert_forward.16} parent=0 // loop_pre_header
    _
  $region3: #{bert_forward.16} parent=0 // loop_header
    %s8 = sphi 0, %s12
    %p9 = scmp.ge.s32.totalorder %s8, 4
    %s18 = sphi 0, %s20
    %s21 = sphi 0, %s18
    %s22 = sphi 0, %s21
    %s38 = sphi 0, %s22
    %s44 = sphi 0, %s46
    %s47 = sphi 0, %s44
    %s48 = sphi 0, %s47
    %s64 = sphi 0, %s48
    %s70 = sphi 0, %s72
    %s73 = sphi 0, %s70
    %s74 = sphi 0, %s73
    %s90 = sphi 0, %s74
  $region4: #{bert_forward.16} parent=0 // loop_header_branch
    %11 = sbr.rel (%p9) target = $region8
  $region5: #{bert_forward.16} parent=0 // loop_body
    %s13 = ssub.s32 %s8, 1
    %s14 = ssub.s32 %s8, 2
    %s15 = sadd.s32 %s8, 1
    %s16 = ssub.s32 %s8, %s15
    %p17 = scmp.eq.s32.totalorder %s16, 0
    %s19 = sadd.s32 %s18, 1
    %s20 = scalar_select %p17, %s18, %s19
    %p23 = pneg %p17
    %p24 = scmp.eq.s32.totalorder %s8, 1
    %p25 = por %p23, %p24
    %p26 = scmp.ne.s32.totalorder %s18, %s21
    %p27 = scmp.eq.s32.totalorder %s8, 0
    %p28 = por %p26, %p27
    %p29 = scmp.ne.s32.totalorder %s18, %s21
    %p30 = scmp.eq.s32.totalorder %s13, 1
    %p31 = por %p29, %p30
    %p32 = scmp.ne.s32.totalorder %s21, %s22
    %p33 = scmp.eq.s32.totalorder %s13, 0
    %p34 = por %p32, %p33
    %p35 = scmp.ne.s32.totalorder %s21, %s22
    %p36 = scmp.eq.s32.totalorder %s14, 1
    %p37 = por %p35, %p36
    %p39 = scmp.ne.s32.totalorder %s22, %s38
    %p40 = scmp.eq.s32.totalorder %s14, 0
    %p41 = por %p39, %p40
    %s42 = ssub.s32 %s8, %s15
    %p43 = scmp.eq.s32.totalorder %s42, 0
    %s45 = sadd.s32 %s44, 1
    %s46 = scalar_select %p43, %s44, %s45
    %p49 = pneg %p43
    %p50 = scmp.eq.s32.totalorder %s8, 1
    %p51 = por %p49, %p50
    %p52 = scmp.ne.s32.totalorder %s44, %s47
    %p53 = scmp.eq.s32.totalorder %s8, 0
    %p54 = por %p52, %p53
    %p55 = scmp.ne.s32.totalorder %s44, %s47
    %p56 = scmp.eq.s32.totalorder %s13, 1
    %p57 = por %p55, %p56
    %p58 = scmp.ne.s32.totalorder %s47, %s48
    %p59 = scmp.eq.s32.totalorder %s13, 0
    %p60 = por %p58, %p59
    %p61 = scmp.ne.s32.totalorder %s47, %s48
    %p62 = scmp.eq.s32.totalorder %s14, 1
    %p63 = por %p61, %p62
    %p65 = scmp.ne.s32.totalorder %s48, %s64
    %p66 = scmp.eq.s32.totalorder %s14, 0
    %p67 = por %p65, %p66
    %s68 = ssub.s32 %s8, %s15
    %p69 = scmp.eq.s32.totalorder %s68, 0
    %s71 = sadd.s32 %s70, 1
    %s72 = scalar_select %p69, %s70, %s71
    %p75 = pneg %p69
    %p76 = scmp.eq.s32.totalorder %s8, 1
    %p77 = por %p75, %p76
    %p78 = scmp.ne.s32.totalorder %s70, %s73
    %p79 = scmp.eq.s32.totalorder %s8, 0
    %p80 = por %p78, %p79
    %p81 = scmp.ne.s32.totalorder %s70, %s73
    %p82 = scmp.eq.s32.totalorder %s13, 1
    %p83 = por %p81, %p82
    %p84 = scmp.ne.s32.totalorder %s73, %s74
    %p85 = scmp.eq.s32.totalorder %s13, 0
    %p86 = por %p84, %p85
    %p87 = scmp.ne.s32.totalorder %s73, %s74
    %p88 = scmp.eq.s32.totalorder %s14, 1
    %p89 = por %p87, %p88
    %p91 = scmp.ne.s32.totalorder %s74, %s90
    %p92 = scmp.eq.s32.totalorder %s14, 0
    %p93 = por %p91, %p92
    %p94 = scmp.le.s32.totalorder 1, %s8
    %p95 = scmp.lt.s32.totalorder %s8, 3
    %p96 = pnand %p94, %p95
    %p97 = pneg %p96
    // Predicated region
    $region9: #{bert_forward.16} parent=5 // pred_check
      _
    $region10: #{bert_forward.16} parent=5 // pred_check_branch
      %99 = sbr.rel (%p96) target = $region12
    $region11: #{bert_forward.16} parent=5 // pred_region
      %s100 = ssub.s32 %s8, 1
    $region12: #{bert_forward.16} parent=5 // pred_fallthru
      _
    %p101 = scmp.lt.s32.totalorder %s8, 2
    // Predicated region
    $region13: #{bert_forward.16} parent=5 // pred_check
      %p102 = pneg %p101
    $region14: #{bert_forward.16} parent=5 // pred_check_branch
      %104 = sbr.rel (%p102) target = $region16
    $region15: #{bert_forward.16} parent=5 // pred_region
      // Predicated region
      $region17: #{bert_forward.16} parent=15 // pred_check
        %p105 = pneg %p28
      $region18: #{bert_forward.16} parent=15 // pred_check_branch
        %107 = sbr.rel (%p105) target = $region20
      $region19: #{bert_forward.16} parent=15 // pred_region
        %p108 = scmp.lt.s32.totalorder %s8, 1
        %s109 = scalar_select %p108, %s8, 1
        %s110 = smul.addr %s109, 3
        %s111 = smul.addr %s110, 8
        %s112 = scalar_lea.vmem %s0, %s111
      $region20: #{bert_forward.16} parent=15 // pred_fallthru
        _
      // Predicated region
      $region21: #{bert_forward.16} parent=15 // pred_check
        %p113 = pneg %p54
      $region22: #{bert_forward.16} parent=15 // pred_check_branch
        %115 = sbr.rel (%p113) target = $region24
      $region23: #{bert_forward.16} parent=15 // pred_region
        %p116 = scmp.lt.s32.totalorder %s8, 1
        %s117 = scalar_select %p116, %s8, 1
        %s118 = scalar_lea.vmem %s1, %s117
      $region24: #{bert_forward.16} parent=15 // pred_fallthru
        _
    $region16: #{bert_forward.16} parent=5 // pred_fallthru
      _
    %p119 = scmp.le.s32.totalorder 1, %s8
    %p120 = scmp.lt.s32.totalorder %s8, 3
    %p121 = pnand %p119, %p120
    %p122 = pneg %p121
    // Predicated region
    $region25: #{bert_forward.16} parent=5 // pred_check
      _
    $region26: #{bert_forward.16} parent=5 // pred_check_branch
      %124 = sbr.rel (%p121) target = $region28
    $region27: #{bert_forward.16} parent=5 // pred_region
      %s125 = ssub.s32 %s8, 1
      %p126 = scmp.lt.s32.totalorder %s13, 1
      %s127 = scalar_select %p126, %s13, 1
      %s128 = smul.addr %s127, 3
      %s129 = smul.addr %s128, 8
      %s130 = scalar_lea.vmem %s0, %s129
      %p131 = pneg %p34
      %p132 = pneg %p31
      %p133 = scmp.lt.s32.totalorder %s13, 1
      %s134 = scalar_select %p133, %s13, 1
      %s135 = scalar_lea.vmem %s1, %s134
      %p136 = pneg %p60
      %p137 = pneg %p57
      %p138 = pneg %p86
      %p139 = pneg %p83
      %p140 = scmp.lt.s32.totalorder %s13, 1
      %s141 = scalar_select %p140, %s13, 1
      %s142 = smul.addr %s141, 8
      %s143 = scalar_lea.vmem %s2, %s142
      %p144 = scmp.lt.s32.totalorder %s13, 1
      %s145 = scalar_select %p144, %s13, 1
      %s146 = smul.addr %s145, 3
      %s147 = smul.addr %s146, 8
      %s148 = scalar_lea.vmem %s0, %s147
      %p149 = scmp.lt.s32.totalorder %s13, 1
      %s150 = scalar_select %p149, %s13, 1
      %s151 = scalar_lea.vmem %s1, %s150
      %p152 = scmp.lt.s32.totalorder %s13, 1
      %s153 = scalar_select %p152, %s13, 1
      %s154 = smul.addr %s153, 8
      %s155 = scalar_lea.vmem %s2, %s154
      %v157 = vld [vmem:[%s148] sm:$0xff]
      %v158 = vld [vmem:[%s148 + $0x8] sm:$0xff]
      %v159 = vld [vmem:[%s148 + $0x10] sm:$0xff]
      %v160 = vld [vmem:[%s151] sm:$0x1]
      %v161 = vpack.c.bf16 %v157, %v157
      %v162 = vpack.c.bf16 %v158, %v158
      %v163 = vpack.c.bf16 %v159, %v159
      %vm164 = vcmask 261120
      %v166 = vsel %vm164, %v161, 0
      %v169 = vsel %vm164, %v162, 0
      %171 = vmatpush.bf16.xpose.msra.mxu0 0
      %172 = vmatpush.bf16.xpose.msra.mxu0 0
      %173 = vmatpush.bf16.xpose.msra.mxu0 0
      %174 = vmatpush.bf16.xpose.msra.mxu0 0
      %175 = vmatpush.bf16.xpose.msra.mxu0 0
      %176 = vmatpush.bf16.xpose.msra.mxu0 0
      %177 = vmatpush.bf16.xpose.msra.mxu0 0
      %178 = vmatpush.bf16.xpose.msra.mxu0 %v169
      %179 = vmatmul.bf16.gmra.mxu0 %v166
      %v180 = vpop.f32.mrf.mxu0
      %v181 = vadd.f32 0.0, %v180
      %v182 = vpop.f32.mrf.mxu0
      %183 = vdwg.mxu0
      %v184 = vmul.f32 %v181, 0.17677669
      %v186 = vperm.slane %v160, 0
      %v188 = vadd.f32 %v184, %v186
      %vm189 = vcmask 64512
      %v190 = vsel %vm189, %v188, -inf
      %191 = vmax.xlane.f32.xlu0 %v190
      %v192 = vpop.xlane.xlu0 %191
      %v193 = vsub.f32 %v188, %v192
      %v194 = vmul.f32 %v193, 1.442695
      %v195 = vpow.pop %v194
      %v196 = vsel %vm189, %v195, 0.0
      %197 = vadd.xlane.f32.xlu0 %v196
      %v198 = vpop.xlane.xlu0 %197
      %v199 = vrcp.pop %v198
      %v200 = vmul.f32 %v195, %v199
      %v201 = vpack.c.bf16 %v200, %v200
      %v203 = vsel %vm189, %v201, 0
      %vm205 = vcmask 1043456
      %v207 = vsel %vm205, %v163, 0
      %209 = vmatpush.bf16.msra.mxu0 0
      %210 = vmatpush.bf16.msra.mxu0 0
      %211 = vmatpush.bf16.msra.mxu0 0
      %212 = vmatpush.bf16.msra.mxu0 0
      %213 = vmatpush.bf16.msra.mxu0 0
      %214 = vmatpush.bf16.msra.mxu0 0
      %215 = vmatpush.bf16.msra.mxu0 0
      %216 = vmatpush.bf16.msra.mxu0 %v207
      %217 = vmatmul.bf16.gmra.mxu0 %v203
      %v218 = vpop.f32.mrf.mxu0
      %v219 = vadd.f32 0.0, %v218
      %v220 = vpop.f32.mrf.mxu0
      %221 = vdwg.mxu0
      %223 = vrot.lane.b32.xlu0 %v161, 96
      %v224 = vpop.permute.xlu0 %223
      %226 = vrot.lane.b32.xlu0 %v162, 96
      %v227 = vpop.permute.xlu0 %226
      %v229 = vsel %vm164, %v224, 0
      %v232 = vsel %vm164, %v227, 0
      %234 = vmatpush.bf16.xpose.msra.mxu0 0
      %235 = vmatpush.bf16.xpose.msra.mxu0 0
      %236 = vmatpush.bf16.xpose.msra.mxu0 0
      %237 = vmatpush.bf16.xpose.msra.mxu0 0
      %238 = vmatpush.bf16.xpose.msra.mxu0 0
      %239 = vmatpush.bf16.xpose.msra.mxu0 0
      %240 = vmatpush.bf16.xpose.msra.mxu0 0
      %241 = vmatpush.bf16.xpose.msra.mxu0 %v232
      %242 = vmatmul.bf16.gmra.mxu0 %v229
      %v243 = vpop.f32.mrf.mxu0
      %v244 = vadd.f32 0.0, %v243
      %v245 = vpop.f32.mrf.mxu0
      %246 = vdwg.mxu0
      %v247 = vmul.f32 %v244, 0.17677669
      %v248 = vadd.f32 %v247, %v186
      %v249 = vsel %vm189, %v248, -inf
      %250 = vmax.xlane.f32.xlu0 %v249
      %v251 = vpop.xlane.xlu0 %250
      %v252 = vsub.f32 %v248, %v251
      %v253 = vmul.f32 %v252, 1.442695
      %v254 = vpow.pop %v253
      %v255 = vsel %vm189, %v254, 0.0
      %256 = vadd.xlane.f32.xlu0 %v255
      %v257 = vpop.xlane.xlu0 %256
      %v258 = vrcp.pop %v257
      %v259 = vmul.f32 %v254, %v258
      %v260 = vpack.c.bf16 %v259, %v259
      %262 = vrot.lane.b32.xlu0 %v163, 96
      %v263 = vpop.permute.xlu0 %262
      %v265 = vsel %vm189, %v260, 0
      %v268 = vsel %vm205, %v263, 0
      %270 = vmatpush.bf16.msra.mxu0 0
      %271 = vmatpush.bf16.msra.mxu0 0
      %272 = vmatpush.bf16.msra.mxu0 0
      %273 = vmatpush.bf16.msra.mxu0 0
      %274 = vmatpush.bf16.msra.mxu0 0
      %275 = vmatpush.bf16.msra.mxu0 0
      %276 = vmatpush.bf16.msra.mxu0 0
      %277 = vmatpush.bf16.msra.mxu0 %v268
      %278 = vmatmul.bf16.gmra.mxu0 %v265
      %v279 = vpop.f32.mrf.mxu0
      %v280 = vadd.f32 0.0, %v279
      %v281 = vpop.f32.mrf.mxu0
      %282 = vdwg.mxu0
      %283 = vrot.lane.b32.xlu0 %v161, 64
      %v284 = vpop.permute.xlu0 %283
      %285 = vrot.lane.b32.xlu0 %v162, 64
      %v286 = vpop.permute.xlu0 %285
      %v288 = vsel %vm164, %v284, 0
      %v291 = vsel %vm164, %v286, 0
      %293 = vmatpush.bf16.xpose.msra.mxu0 0
      %294 = vmatpush.bf16.xpose.msra.mxu0 0
      %295 = vmatpush.bf16.xpose.msra.mxu0 0
      %296 = vmatpush.bf16.xpose.msra.mxu0 0
      %297 = vmatpush.bf16.xpose.msra.mxu0 0
      %298 = vmatpush.bf16.xpose.msra.mxu0 0
      %299 = vmatpush.bf16.xpose.msra.mxu0 0
      %300 = vmatpush.bf16.xpose.msra.mxu0 %v291
      %301 = vmatmul.bf16.gmra.mxu0 %v288
      %v302 = vpop.f32.mrf.mxu0
      %v303 = vadd.f32 0.0, %v302
      %v304 = vpop.f32.mrf.mxu0
      %305 = vdwg.mxu0
      %v306 = vmul.f32 %v303, 0.17677669
      %v307 = vadd.f32 %v306, %v186
      %v308 = vsel %vm189, %v307, -inf
      %309 = vmax.xlane.f32.xlu0 %v308
      %v310 = vpop.xlane.xlu0 %309
      %v311 = vsub.f32 %v307, %v310
      %v312 = vmul.f32 %v311, 1.442695
      %v313 = vpow.pop %v312
      %v314 = vsel %vm189, %v313, 0.0
      %315 = vadd.xlane.f32.xlu0 %v314
      %v316 = vpop.xlane.xlu0 %315
      %v317 = vrcp.pop %v316
      %v318 = vmul.f32 %v313, %v317
      %v319 = vpack.c.bf16 %v318, %v318
      %320 = vrot.lane.b32.xlu0 %v163, 64
      %v321 = vpop.permute.xlu0 %320
      %v323 = vsel %vm189, %v319, 0
      %v326 = vsel %vm205, %v321, 0
      %328 = vmatpush.bf16.msra.mxu0 0
      %329 = vmatpush.bf16.msra.mxu0 0
      %330 = vmatpush.bf16.msra.mxu0 0
      %331 = vmatpush.bf16.msra.mxu0 0
      %332 = vmatpush.bf16.msra.mxu0 0
      %333 = vmatpush.bf16.msra.mxu0 0
      %334 = vmatpush.bf16.msra.mxu0 0
      %335 = vmatpush.bf16.msra.mxu0 %v326
      %336 = vmatmul.bf16.gmra.mxu0 %v323
      %v337 = vpop.f32.mrf.mxu0
      %v338 = vadd.f32 0.0, %v337
      %v339 = vpop.f32.mrf.mxu0
      %340 = vdwg.mxu0
      %341 = vrot.lane.b32.xlu0 %v161, 32
      %v342 = vpop.permute.xlu0 %341
      %343 = vrot.lane.b32.xlu0 %v162, 32
      %v344 = vpop.permute.xlu0 %343
      %v346 = vsel %vm164, %v342, 0
      %v349 = vsel %vm164, %v344, 0
      %351 = vmatpush.bf16.xpose.msra.mxu0 0
      %352 = vmatpush.bf16.xpose.msra.mxu0 0
      %353 = vmatpush.bf16.xpose.msra.mxu0 0
      %354 = vmatpush.bf16.xpose.msra.mxu0 0
      %355 = vmatpush.bf16.xpose.msra.mxu0 0
      %356 = vmatpush.bf16.xpose.msra.mxu0 0
      %357 = vmatpush.bf16.xpose.msra.mxu0 0
      %358 = vmatpush.bf16.xpose.msra.mxu0 %v349
      %359 = vmatmul.bf16.gmra.mxu0 %v346
      %v360 = vpop.f32.mrf.mxu0
      %v361 = vadd.f32 0.0, %v360
      %v362 = vpop.f32.mrf.mxu0
      %363 = vdwg.mxu0
      %v364 = vmul.f32 %v361, 0.17677669
      %v365 = vadd.f32 %v364, %v186
      %v366 = vsel %vm189, %v365, -inf
      %367 = vmax.xlane.f32.xlu0 %v366
      %v368 = vpop.xlane.xlu0 %367
      %v369 = vsub.f32 %v365, %v368
      %v370 = vmul.f32 %v369, 1.442695
      %v371 = vpow.pop %v370
      %v372 = vsel %vm189, %v371, 0.0
      %373 = vadd.xlane.f32.xlu0 %v372
      %v374 = vpop.xlane.xlu0 %373
      %v375 = vrcp.pop %v374
      %v376 = vmul.f32 %v371, %v375
      %v377 = vpack.c.bf16 %v376, %v376
      %378 = vrot.lane.b32.xlu0 %v163, 32
      %v379 = vpop.permute.xlu0 %378
      %v381 = vsel %vm189, %v377, 0
      %v384 = vsel %vm205, %v379, 0
      %386 = vmatpush.bf16.msra.mxu0 0
      %387 = vmatpush.bf16.msra.mxu0 0
      %388 = vmatpush.bf16.msra.mxu0 0
      %389 = vmatpush.bf16.msra.mxu0 0
      %390 = vmatpush.bf16.msra.mxu0 0
      %391 = vmatpush.bf16.msra.mxu0 0
      %392 = vmatpush.bf16.msra.mxu0 0
      %393 = vmatpush.bf16.msra.mxu0 %v384
      %394 = vmatmul.bf16.gmra.mxu0 %v381
      %v395 = vpop.f32.mrf.mxu0
      %v396 = vadd.f32 0.0, %v395
      %v397 = vpop.f32.mrf.mxu0
      %398 = vdwg.mxu0
      %400 = vrot.lane.b32.xlu0 %v280, 32
      %v401 = vpop.permute.xlu0 %400
      %404 = vrot.lane.b32.xlu0 %v338, 64
      %v405 = vpop.permute.xlu0 %404
      %408 = vrot.lane.b32.xlu0 %v396, 96
      %v409 = vpop.permute.xlu0 %408
      %v411 = vsel %vm164, %v219, %v401
      %vm412 = vcmask 523264
      %v413 = vsel %vm412, %v411, %v405
      %vm414 = vcmask 785408
      %v415 = vsel %vm414, %v413, %v409
      %416 = vst [vmem:[%s155] sm:$0xff] %v415
      %p417 = scmp.lt.s32.totalorder %s13, 1
      %s418 = scalar_select %p417, %s13, 1
      %s419 = smul.addr %s418, 8
      %s420 = scalar_lea.vmem %s2, %s419
      // Predicated region
      $region29: #{bert_forward.16} parent=27 // pred_check
        %p421 = pneg %p83
      $region30: #{bert_forward.16} parent=27 // pred_check_branch
        %423 = sbr.rel (%p421) target = $region32
      $region31: #{bert_forward.16} parent=27 // pred_region
        _
      $region32: #{bert_forward.16} parent=27 // pred_fallthru
        _
    $region28: #{bert_forward.16} parent=5 // pred_fallthru
      _
    %p424 = scmp.le.s32.totalorder 2, %s8
    // Predicated region
    $region33: #{bert_forward.16} parent=5 // pred_check
      %p425 = pneg %p424
    $region34: #{bert_forward.16} parent=5 // pred_check_branch
      %427 = sbr.rel (%p425) target = $region36
    $region35: #{bert_forward.16} parent=5 // pred_region
      %s428 = ssub.s32 %s8, 2
      // Predicated region
      $region37: #{bert_forward.16} parent=35 // pred_check
        %p429 = pneg %p89
      $region38: #{bert_forward.16} parent=35 // pred_check_branch
        %431 = sbr.rel (%p429) target = $region40
      $region39: #{bert_forward.16} parent=35 // pred_region
        %p432 = scmp.lt.s32.totalorder %s14, 1
        %s433 = scalar_select %p432, %s14, 1
        %s434 = smul.addr %s433, 8
        %s435 = scalar_lea.vmem %s2, %s434
      $region40: #{bert_forward.16} parent=35 // pred_fallthru
        _
    $region36: #{bert_forward.16} parent=5 // pred_fallthru
      _
  $region6: #{bert_forward.16} parent=0 // loop_footer
    %s12 = sadd.s32 1, %s8
  $region7: #{bert_forward.16} parent=0 // loop_footer_branch
    %7 = sbr.rel target = $region3
  $region8: #{bert_forward.16} parent=0 // loop_exit
    _

// kernel: bert_forward.19
$region0: #{bert_forward.19}
  #allocation0 [shape = 'u32[]', space=smem, size = 0x4, offset = 0x4, fixed_abs, tag = 'smem constant byte address 0x4 - core index']
  #allocation1 [shape = 'u32[72,128]{1,0:T(1,128)}', space=vmem, size = 0x9000, scoped, tag = 'internal scratch']
  #allocation2 [shape = 'f32[16,128]{1,0:T(8,128)}', space=vmem, size = 0x2000, scoped, tag = 'scratch operand']
  %s0 = inlined_call_operand.vmem [shape: f32[16,512], index: 0, kind: input, shape index: {}]
  %s1 = inlined_call_operand.hbm [shape: bf16[512,128], index: 1, kind: input, shape index: {}]
  %s2 = inlined_call_operand.vmem [shape: f32[1,128], index: 2, kind: input, shape index: {}]
  %s3 = inlined_call_operand.vmem [shape: f32[16,128], index: 3, kind: input, shape index: {}]
  %s4 = inlined_call_operand.vmem [shape: f32[16,128], index: 4, kind: output, shape index: {}]
  %s5 = sld [smem:[#allocation0]]
  $region38: #{bert_forward.19} parent=0
    _
  %s7 = ssub.s32 1, %s5
  %s8 = scalar_select 0, %s7, %s5
  $region1: #{bert_forward.19} parent=0
    #allocation3 [shape = 'u8[131072]{0}', space=vmem, size = 0x20000, scoped, tag = 'input window, operand 1, single buffered']
    #allocation4 [shape = 's32[1]{0}', space=sflag, size = 0x4, scoped, tag = 'scoped memory for bert_forward.19']
    %9 = vsyncpa [#allocation4], 0
    // Predicated region
    $region2: #{bert_forward.19} parent=1 // pred_check
      _
    $region3: #{bert_forward.19} parent=1 // pred_check_branch
      %11 = sbr.rel (0) target = $region5
    $region4: #{bert_forward.19} parent=1 // pred_region
      _
    $region5: #{bert_forward.19} parent=1 // pred_fallthru
      _
    // Predicated region
    $region6: #{bert_forward.19} parent=1 // pred_check
      _
    $region7: #{bert_forward.19} parent=1 // pred_check_branch
      %13 = sbr.rel (0) target = $region9
    $region8: #{bert_forward.19} parent=1 // pred_region
      %15 = vsyncadd [#allocation4], 0
      %s16 = sshll.u32 %s1, 4
      %s17 = int_to_ptr.hbm [resolvable:$true] %s16
      %s18 = sshll.u32 [#allocation3], 4
      %s19 = int_to_ptr.vmem [resolvable:$true] %s18
      %24 = dma.hbm_to_vmem [thread:$0]  %s17, 4096, %s19, [#allocation4], 64, 64, 4
    $region9: #{bert_forward.19} parent=1 // pred_fallthru
      _
    // Predicated region
    $region10: #{bert_forward.19} parent=1 // pred_check
      _
    $region11: #{bert_forward.19} parent=1 // pred_check_branch
      %26 = sbr.rel (0) target = $region13
    $region12: #{bert_forward.19} parent=1 // pred_region
      _
    $region13: #{bert_forward.19} parent=1 // pred_fallthru
      _
    // Predicated region
    $region14: #{bert_forward.19} parent=1 // pred_check
      _
    $region15: #{bert_forward.19} parent=1 // pred_check_branch
      %28 = sbr.rel (0) target = $region17
    $region16: #{bert_forward.19} parent=1 // pred_region
      _
    $region17: #{bert_forward.19} parent=1 // pred_fallthru
      _
    // Predicated region
    $region18: #{bert_forward.19} parent=1 // pred_check
      _
    $region19: #{bert_forward.19} parent=1 // pred_check_branch
      %30 = sbr.rel (0) target = $region21
    $region20: #{bert_forward.19} parent=1 // pred_region
      %32 = dma.done [#allocation4], 4096
    $region21: #{bert_forward.19} parent=1 // pred_fallthru
      _
    %p33 = scmp.eq.s32.totalorder 0, 0
    // Predicated region
    $region22: #{bert_forward.19} parent=1 // pred_check
      %p34 = pneg %p33
    $region23: #{bert_forward.19} parent=1 // pred_check_branch
      %36 = sbr.rel (%p34) target = $region25
    $region24: #{bert_forward.19} parent=1 // pred_region
      %37 = vst [vmem:[#allocation2] sm:$0xff] 0.0
      %38 = vst [vmem:[#allocation2 + $0x8] sm:$0xff] 0.0
    $region25: #{bert_forward.19} parent=1 // pred_fallthru
      _
    %v39 = vld [vmem:[%s0] sm:$0xff]
    %v40 = vld [vmem:[%s0 + $0x8] sm:$0xff]
    %v41 = vld [vmem:[%s0 + $0x10] sm:$0xff]
    %v42 = vld [vmem:[%s0 + $0x18] sm:$0xff]
    %v43 = vld [vmem:[%s0 + $0x20] sm:$0xff]
    %v44 = vld [vmem:[%s0 + $0x28] sm:$0xff]
    %v45 = vld [vmem:[%s0 + $0x30] sm:$0xff]
    %v46 = vld [vmem:[%s0 + $0x38] sm:$0xff]
    %v47 = vld [vmem:[#allocation2] sm:$0xff]
    %v48 = vld [vmem:[#allocation2 + $0x8] sm:$0xff]
    %v49 = vpack.c.bf16 %v43, %v39
    %v50 = vpack.c.bf16 %v44, %v40
    %v51 = vpack.c.bf16 %v45, %v41
    %v52 = vpack.c.bf16 %v46, %v42
    %v53 = vld [vmem:[#allocation3] sm:$0xf]
    %v54 = vld [vmem:[#allocation3 + $0x4] sm:$0xf]
    %v55 = vld [vmem:[#allocation3 + $0x8] sm:$0xf]
    %v56 = vld [vmem:[#allocation3 + $0xc] sm:$0xf]
    %v57 = vld [vmem:[#allocation3 + $0x10] sm:$0xf]
    %v58 = vld [vmem:[#allocation3 + $0x14] sm:$0xf]
    %v59 = vld [vmem:[#allocation3 + $0x18] sm:$0xf]
    %v60 = vld [vmem:[#allocation3 + $0x1c] sm:$0xf]
    %v61 = vld [vmem:[#allocation3 + $0x20] sm:$0xf]
    %v62 = vld [vmem:[#allocation3 + $0x24] sm:$0xf]
    %v63 = vld [vmem:[#allocation3 + $0x28] sm:$0xf]
    %v64 = vld [vmem:[#allocation3 + $0x2c] sm:$0xf]
    %v65 = vld [vmem:[#allocation3 + $0x30] sm:$0xf]
    %v66 = vld [vmem:[#allocation3 + $0x34] sm:$0xf]
    %v67 = vld [vmem:[#allocation3 + $0x38] sm:$0xf]
    %v68 = vld [vmem:[#allocation3 + $0x3c] sm:$0xf]
    %v69 = vld [vmem:[#allocation3 + $0x40] sm:$0xf]
    %v70 = vld [vmem:[#allocation3 + $0x44] sm:$0xf]
    %v71 = vld [vmem:[#allocation3 + $0x48] sm:$0xf]
    %v72 = vld [vmem:[#allocation3 + $0x4c] sm:$0xf]
    %v73 = vld [vmem:[#allocation3 + $0x50] sm:$0xf]
    %v74 = vld [vmem:[#allocation3 + $0x54] sm:$0xf]
    %v75 = vld [vmem:[#allocation3 + $0x58] sm:$0xf]
    %v76 = vld [vmem:[#allocation3 + $0x5c] sm:$0xf]
    %v77 = vld [vmem:[#allocation3 + $0x60] sm:$0xf]
    %v78 = vld [vmem:[#allocation3 + $0x64] sm:$0xf]
    %v79 = vld [vmem:[#allocation3 + $0x68] sm:$0xf]
    %v80 = vld [vmem:[#allocation3 + $0x6c] sm:$0xf]
    %v81 = vld [vmem:[#allocation3 + $0x70] sm:$0xf]
    %v82 = vld [vmem:[#allocation3 + $0x74] sm:$0xf]
    %v83 = vld [vmem:[#allocation3 + $0x78] sm:$0xf]
    %v84 = vld [vmem:[#allocation3 + $0x7c] sm:$0xf]
    %v85 = vld [vmem:[#allocation3 + $0x80] sm:$0xf]
    %v86 = vld [vmem:[#allocation3 + $0x84] sm:$0xf]
    %v87 = vld [vmem:[#allocation3 + $0x88] sm:$0xf]
    %v88 = vld [vmem:[#allocation3 + $0x8c] sm:$0xf]
    %v89 = vld [vmem:[#allocation3 + $0x90] sm:$0xf]
    %v90 = vld [vmem:[#allocation3 + $0x94] sm:$0xf]
    %v91 = vld [vmem:[#allocation3 + $0x98] sm:$0xf]
    %v92 = vld [vmem:[#allocation3 + $0x9c] sm:$0xf]
    %v93 = vld [vmem:[#allocation3 + $0xa0] sm:$0xf]
    %v94 = vld [vmem:[#allocation3 + $0xa4] sm:$0xf]
    %v95 = vld [vmem:[#allocation3 + $0xa8] sm:$0xf]
    %v96 = vld [vmem:[#allocation3 + $0xac] sm:$0xf]
    %v97 = vld [vmem:[#allocation3 + $0xb0] sm:$0xf]
    %v98 = vld [vmem:[#allocation3 + $0xb4] sm:$0xf]
    %v99 = vld [vmem:[#allocation3 + $0xb8] sm:$0xf]
    %v100 = vld [vmem:[#allocation3 + $0xbc] sm:$0xf]
    %v101 = vld [vmem:[#allocation3 + $0xc0] sm:$0xf]
    %v102 = vld [vmem:[#allocation3 + $0xc4] sm:$0xf]
    %v103 = vld [vmem:[#allocation3 + $0xc8] sm:$0xf]
    %v104 = vld [vmem:[#allocation3 + $0xcc] sm:$0xf]
    %v105 = vld [vmem:[#allocation3 + $0xd0] sm:$0xf]
    %v106 = vld [vmem:[#allocation3 + $0xd4] sm:$0xf]
    %v107 = vld [vmem:[#allocation3 + $0xd8] sm:$0xf]
    %v108 = vld [vmem:[#allocation3 + $0xdc] sm:$0xf]
    %v109 = vld [vmem:[#allocation3 + $0xe0] sm:$0xf]
    %v110 = vld [vmem:[#allocation3 + $0xe4] sm:$0xf]
    %v111 = vld [vmem:[#allocation3 + $0xe8] sm:$0xf]
    %v112 = vld [vmem:[#allocation3 + $0xec] sm:$0xf]
    %v113 = vld [vmem:[#allocation3 + $0xf0] sm:$0xf]
    %v114 = vld [vmem:[#allocation3 + $0xf4] sm:$0xf]
    %v115 = vld [vmem:[#allocation3 + $0xf8] sm:$0xf]
    %v116 = vld [vmem:[#allocation3 + $0xfc] sm:$0xf]
    %v181 = vunpack.c.l.b16 %v53
    %v182 = vunpack.c.l.b16 %v54
    %v183 = vunpack.c.l.b16 %v55
    %v184 = vunpack.c.l.b16 %v56
    %v185 = vunpack.c.l.b16 %v57
    %v186 = vunpack.c.l.b16 %v58
    %v187 = vunpack.c.l.b16 %v59
    %v188 = vunpack.c.l.b16 %v60
    %v189 = vunpack.c.l.b16 %v61
    %v190 = vunpack.c.l.b16 %v62
    %v191 = vunpack.c.l.b16 %v63
    %v192 = vunpack.c.l.b16 %v64
    %v193 = vunpack.c.l.b16 %v65
    %v194 = vunpack.c.l.b16 %v66
    %v195 = vunpack.c.l.b16 %v67
    %v196 = vunpack.c.l.b16 %v68
    %v197 = vunpack.c.l.b16 %v69
    %v198 = vunpack.c.l.b16 %v70
    %v199 = vunpack.c.l.b16 %v71
    %v200 = vunpack.c.l.b16 %v72
    %v201 = vunpack.c.l.b16 %v73
    %v202 = vunpack.c.l.b16 %v74
    %v203 = vunpack.c.l.b16 %v75
    %v204 = vunpack.c.l.b16 %v76
    %v205 = vunpack.c.l.b16 %v77
    %v206 = vunpack.c.l.b16 %v78
    %v207 = vunpack.c.l.b16 %v79
    %v208 = vunpack.c.l.b16 %v80
    %v209 = vunpack.c.l.b16 %v81
    %v210 = vunpack.c.l.b16 %v82
    %v211 = vunpack.c.l.b16 %v83
    %v212 = vunpack.c.l.b16 %v84
    %v213 = vunpack.c.l.b16 %v85
    %v214 = vunpack.c.l.b16 %v86
    %v215 = vunpack.c.l.b16 %v87
    %v216 = vunpack.c.l.b16 %v88
    %v217 = vunpack.c.l.b16 %v89
    %v218 = vunpack.c.l.b16 %v90
    %v219 = vunpack.c.l.b16 %v91
    %v220 = vunpack.c.l.b16 %v92
    %v221 = vunpack.c.l.b16 %v93
    %v222 = vunpack.c.l.b16 %v94
    %v223 = vunpack.c.l.b16 %v95
    %v224 = vunpack.c.l.b16 %v96
    %v225 = vunpack.c.l.b16 %v97
    %v226 = vunpack.c.l.b16 %v98
    %v227 = vunpack.c.l.b16 %v99
    %v228 = vunpack.c.l.b16 %v100
    %v229 = vunpack.c.l.b16 %v101
    %v230 = vunpack.c.l.b16 %v102
    %v231 = vunpack.c.l.b16 %v103
    %v232 = vunpack.c.l.b16 %v104
    %v233 = vunpack.c.l.b16 %v105
    %v234 = vunpack.c.l.b16 %v106
    %v235 = vunpack.c.l.b16 %v107
    %v236 = vunpack.c.l.b16 %v108
    %v237 = vunpack.c.l.b16 %v109
    %v238 = vunpack.c.l.b16 %v110
    %v239 = vunpack.c.l.b16 %v111
    %v240 = vunpack.c.l.b16 %v112
    %v241 = vunpack.c.l.b16 %v113
    %v242 = vunpack.c.l.b16 %v114
    %v243 = vunpack.c.l.b16 %v115
    %v244 = vunpack.c.l.b16 %v116
    %v245 = vpack.c.b16 %v182, %v181
    %v246 = vpack.c.b16 %v184, %v183
    %v247 = vpack.c.b16 %v186, %v185
    %v248 = vpack.c.b16 %v188, %v187
    %v249 = vpack.c.b16 %v190, %v189
    %v250 = vpack.c.b16 %v192, %v191
    %v251 = vpack.c.b16 %v194, %v193
    %v252 = vpack.c.b16 %v196, %v195
    %v253 = vpack.c.b16 %v198, %v197
    %v254 = vpack.c.b16 %v200, %v199
    %v255 = vpack.c.b16 %v202, %v201
    %v256 = vpack.c.b16 %v204, %v203
    %v257 = vpack.c.b16 %v206, %v205
    %v258 = vpack.c.b16 %v208, %v207
    %v259 = vpack.c.b16 %v210, %v209
    %v260 = vpack.c.b16 %v212, %v211
    %v261 = vpack.c.b16 %v214, %v213
    %v262 = vpack.c.b16 %v216, %v215
    %v263 = vpack.c.b16 %v218, %v217
    %v264 = vpack.c.b16 %v220, %v219
    %v265 = vpack.c.b16 %v222, %v221
    %v266 = vpack.c.b16 %v224, %v223
    %v267 = vpack.c.b16 %v226, %v225
    %v268 = vpack.c.b16 %v228, %v227
    %v269 = vpack.c.b16 %v230, %v229
    %v270 = vpack.c.b16 %v232, %v231
    %v271 = vpack.c.b16 %v234, %v233
    %v272 = vpack.c.b16 %v236, %v235
    %v273 = vpack.c.b16 %v238, %v237
    %v274 = vpack.c.b16 %v240, %v239
    %v275 = vpack.c.b16 %v242, %v241
    %v276 = vpack.c.b16 %v244, %v243
    %309 = vmatpush.bf16.msra.mxu0 %v252
    %310 = vmatpush.bf16.msra.mxu0 %v251
    %311 = vmatpush.bf16.msra.mxu0 %v250
    %312 = vmatpush.bf16.msra.mxu0 %v249
    %313 = vmatpush.bf16.msra.mxu0 %v248
    %314 = vmatpush.bf16.msra.mxu0 %v247
    %315 = vmatpush.bf16.msra.mxu0 %v246
    %316 = vmatpush.bf16.msra.mxu0 %v245
    %317 = vmatmul.bf16.gmra.mxu0 %v49
    %v318 = vpop.f32.mrf.mxu0
    %v319 = vadd.f32 0.0, %v318
    %v320 = vpop.f32.mrf.mxu0
    %v321 = vadd.f32 0.0, %v320
    %322 = vdwg.mxu0
    %323 = vmatpush.bf16.msra.mxu0 %v260
    %324 = vmatpush.bf16.msra.mxu0 %v259
    %325 = vmatpush.bf16.msra.mxu0 %v258
    %326 = vmatpush.bf16.msra.mxu0 %v257
    %327 = vmatpush.bf16.msra.mxu0 %v256
    %328 = vmatpush.bf16.msra.mxu0 %v255
    %329 = vmatpush.bf16.msra.mxu0 %v254
    %330 = vmatpush.bf16.msra.mxu0 %v253
    %331 = vmatmul.bf16.gmra.mxu0 %v50
    %v332 = vpop.f32.mrf.mxu0
    %v333 = vadd.f32 %v319, %v332
    %v334 = vpop.f32.mrf.mxu0
    %v335 = vadd.f32 %v321, %v334
    %336 = vdwg.mxu0
    %337 = vmatpush.bf16.msra.mxu0 %v268
    %338 = vmatpush.bf16.msra.mxu0 %v267
    %339 = vmatpush.bf16.msra.mxu0 %v266
    %340 = vmatpush.bf16.msra.mxu0 %v265
    %341 = vmatpush.bf16.msra.mxu0 %v264
    %342 = vmatpush.bf16.msra.mxu0 %v263
    %343 = vmatpush.bf16.msra.mxu0 %v262
    %344 = vmatpush.bf16.msra.mxu0 %v261
    %345 = vmatmul.bf16.gmra.mxu0 %v51
    %v346 = vpop.f32.mrf.mxu0
    %v347 = vadd.f32 %v333, %v346
    %v348 = vpop.f32.mrf.mxu0
    %v349 = vadd.f32 %v335, %v348
    %350 = vdwg.mxu0
    %351 = vmatpush.bf16.msra.mxu0 %v276
    %352 = vmatpush.bf16.msra.mxu0 %v275
    %353 = vmatpush.bf16.msra.mxu0 %v274
    %354 = vmatpush.bf16.msra.mxu0 %v273
    %355 = vmatpush.bf16.msra.mxu0 %v272
    %356 = vmatpush.bf16.msra.mxu0 %v271
    %357 = vmatpush.bf16.msra.mxu0 %v270
    %358 = vmatpush.bf16.msra.mxu0 %v269
    %359 = vmatmul.bf16.gmra.mxu0 %v52
    %v360 = vpop.f32.mrf.mxu0
    %v361 = vadd.f32 %v347, %v360
    %v362 = vpop.f32.mrf.mxu0
    %v363 = vadd.f32 %v349, %v362
    %364 = vdwg.mxu0
    %v365 = vadd.f32 %v47, %v361
    %v366 = vadd.f32 %v48, %v363
    %367 = vst [vmem:[#allocation2] sm:$0xff] %v365
    %368 = vst [vmem:[#allocation2 + $0x8] sm:$0xff] %v366
    // Predicated region
    $region26: #{bert_forward.19} parent=1 // pred_check
      %p369 = pneg %p33
    $region27: #{bert_forward.19} parent=1 // pred_check_branch
      %371 = sbr.rel (%p369) target = $region29
    $region28: #{bert_forward.19} parent=1 // pred_region
      %v372 = vld [vmem:[#allocation2] sm:$0xff]
      %v373 = vld [vmem:[#allocation2 + $0x8] sm:$0xff]
      %v374 = vld [vmem:[%s2] sm:$0x1]
      %v376 = vperm.slane %v374, 0
      %v378 = vadd.f32 %v372, %v376
      %v379 = vadd.f32 %v373, %v376
      %v380 = vld [vmem:[%s3] sm:$0xff]
      %v381 = vld [vmem:[%s3 + $0x8] sm:$0xff]
      %v382 = vadd.f32 %v378, %v380
      %v383 = vadd.f32 %v379, %v381
      %384 = vst [vmem:[%s4] sm:$0xff] %v382
      %385 = vst [vmem:[%s4 + $0x8] sm:$0xff] %v383
    $region29: #{bert_forward.19} parent=1 // pred_fallthru
      _
    // Predicated region
    $region30: #{bert_forward.19} parent=1 // pred_check
      _
    $region31: #{bert_forward.19} parent=1 // pred_check_branch
      %387 = sbr.rel (0) target = $region33
    $region32: #{bert_forward.19} parent=1 // pred_region
      _
    $region33: #{bert_forward.19} parent=1 // pred_fallthru
      _
    // Predicated region
    $region34: #{bert_forward.19} parent=1 // pred_check
      _
    $region35: #{bert_forward.19} parent=1 // pred_check_branch
      %389 = sbr.rel (0) target = $region37
    $region36: #{bert_forward.19} parent=1 // pred_region
      _
    $region37: #{bert_forward.19} parent=1 // pred_fallthru
      _
    %390 = vsyncpa [#allocation4], 1

// kernel: bert_forward.25
$region0: #{bert_forward.25}
  #allocation0 [shape = 'u32[]', space=smem, size = 0x4, offset = 0x4, fixed_abs, tag = 'smem constant byte address 0x4 - core index']
  #allocation1 [shape = 'u32[72,128]{1,0:T(1,128)}', space=vmem, size = 0x9000, scoped, tag = 'internal scratch']
  %s0 = inlined_call_operand.vmem [shape: f32[16,128], index: 0, kind: input, shape index: {}]
  %s1 = inlined_call_operand.vmem [shape: f32[1,128], index: 1, kind: input, shape index: {}]
  %s2 = inlined_call_operand.vmem [shape: f32[1,128], index: 2, kind: input, shape index: {}]
  %s3 = inlined_call_operand.vmem [shape: f32[16,128], index: 3, kind: output, shape index: {}]
  %s4 = sld [smem:[#allocation0]]
  $region22: #{bert_forward.25} parent=0
    _
  %s6 = ssub.s32 1, %s4
  %s7 = scalar_select 0, %s6, %s4
  // Predicated region
  $region2: #{bert_forward.25} parent=0 // pred_check
    _
  $region3: #{bert_forward.25} parent=0 // pred_check_branch
    %9 = sbr.rel (0) target = $region5
  $region4: #{bert_forward.25} parent=0 // pred_region
    _
  $region5: #{bert_forward.25} parent=0 // pred_fallthru
    _
  // Predicated region
  $region6: #{bert_forward.25} parent=0 // pred_check
    _
  $region7: #{bert_forward.25} parent=0 // pred_check_branch
    %11 = sbr.rel (0) target = $region9
  $region8: #{bert_forward.25} parent=0 // pred_region
    _
  $region9: #{bert_forward.25} parent=0 // pred_fallthru
    _
  // Predicated region
  $region10: #{bert_forward.25} parent=0 // pred_check
    _
  $region11: #{bert_forward.25} parent=0 // pred_check_branch
    %13 = sbr.rel (0) target = $region13
  $region12: #{bert_forward.25} parent=0 // pred_region
    _
  $region13: #{bert_forward.25} parent=0 // pred_fallthru
    _
  %v14 = vld [vmem:[%s0] sm:$0xff]
  %v15 = vld [vmem:[%s0 + $0x8] sm:$0xff]
  %16 = vadd.xlane.f32.xlu0 %v14
  %v17 = vpop.xlane.xlu0 %16
  %18 = vadd.xlane.f32.xlu0 %v15
  %v19 = vpop.xlane.xlu0 %18
  %v20 = vrcp.pop 128.0
  %v21 = vmul.f32 128.0, %v20
  %v22 = vsub.f32 1.0, %v21
  %v23 = vmul.f32 %v20, %v22
  %v24 = vadd.f32 %v20, %v23
  %vm25 = vweird.f32 %v20
  %v26 = vsel %vm25, %v20, %v24
  %v27 = vmul.f32 %v17, %v26
  %v28 = vmul.f32 %v19, %v26
  %v29 = vsub.f32 %v14, %v27
  %v30 = vsub.f32 %v15, %v28
  %v31 = vmul.f32 %v29, %v29
  %v32 = vmul.f32 %v30, %v30
  %33 = vadd.xlane.f32.xlu0 %v31
  %v34 = vpop.xlane.xlu0 %33
  %35 = vadd.xlane.f32.xlu0 %v32
  %v36 = vpop.xlane.xlu0 %35
  %v37 = vmul.f32 %v34, %v26
  %v38 = vmul.f32 %v36, %v26
  %v39 = vadd.f32 %v37, 1e-05
  %v40 = vadd.f32 %v38, 1e-05
  %v41 = vrsqrt.pop %v39
  %v42 = vmul.f32 %v41, %v39
  %v43 = vmul.f32 %v42, %v41
  %v44 = vmul.f32 0.5, %v43
  %v45 = vsub.f32 1.5, %v44
  %v46 = vmul.f32 %v41, %v45
  %vm47 = vweird.f32 %v39
  %vm48 = vweird.f32 %v41
  %vm49 = vmor %vm47, %vm48
  %v50 = vsel %vm49, %v41, %v46
  %v51 = vrsqrt.pop %v40
  %v52 = vmul.f32 %v51, %v40
  %v53 = vmul.f32 %v52, %v51
  %v54 = vmul.f32 0.5, %v53
  %v55 = vsub.f32 1.5, %v54
  %v56 = vmul.f32 %v51, %v55
  %vm57 = vweird.f32 %v40
  %vm58 = vweird.f32 %v51
  %vm59 = vmor %vm57, %vm58
  %v60 = vsel %vm59, %v51, %v56
  %v61 = vmul.f32 %v29, %v50
  %v62 = vmul.f32 %v30, %v60
  %v63 = vld [vmem:[%s1] sm:$0x1]
  %v65 = vperm.slane %v63, 0
  %v67 = vmul.f32 %v61, %v65
  %v68 = vmul.f32 %v62, %v65
  %v69 = vld [vmem:[%s2] sm:$0x1]
  %v71 = vperm.slane %v69, 0
  %v73 = vadd.f32 %v67, %v71
  %v74 = vadd.f32 %v68, %v71
  %75 = vst [vmem:[%s3] sm:$0xff] %v73
  %76 = vst [vmem:[%s3 + $0x8] sm:$0xff] %v74
  // Predicated region
  $region14: #{bert_forward.25} parent=0 // pred_check
    _
  $region15: #{bert_forward.25} parent=0 // pred_check_branch
    %78 = sbr.rel (0) target = $region17
  $region16: #{bert_forward.25} parent=0 // pred_region
    _
  $region17: #{bert_forward.25} parent=0 // pred_fallthru
    _
  // Predicated region
  $region18: #{bert_forward.25} parent=0 // pred_check
    _
  $region19: #{bert_forward.25} parent=0 // pred_check_branch
    %80 = sbr.rel (0) target = $region21
  $region20: #{bert_forward.25} parent=0 // pred_region
    _
  $region21: #{bert_forward.25} parent=0 // pred_fallthru
    _

// kernel: bert_forward.26
$region0: #{bert_forward.26}
  #allocation0 [shape = 'u32[]', space=smem, size = 0x4, offset = 0x4, fixed_abs, tag = 'smem constant byte address 0x4 - core index']
  #allocation1 [shape = 'u32[72,128]{1,0:T(1,128)}', space=vmem, size = 0x9000, scoped, tag = 'internal scratch']
  #allocation2 [shape = 'f32[8,512]{1,0:T(8,128)}', space=vmem, size = 0x4000, scoped, tag = 'scratch operand']
  %s0 = inlined_call_operand.vmem [shape: f32[8,128], index: 0, kind: input, shape index: {}]
  %s1 = inlined_call_operand.hbm [shape: bf16[128,512], index: 1, kind: input, shape index: {}]
  %s2 = inlined_call_operand.vmem [shape: f32[1,512], index: 2, kind: input, shape index: {}]
  %s3 = inlined_call_operand.vmem [shape: f32[8,512], index: 3, kind: output, shape index: {}]
  %s4 = sld [smem:[#allocation0]]
  $region34: #{bert_forward.26} parent=0
    _
  %s6 = ssub.s32 1, %s4
  %s7 = scalar_select 0, %s6, %s4
  $region1: #{bert_forward.26} parent=0
    #allocation3 [shape = 'u8[131072]{0}', space=vmem, size = 0x20000, scoped, tag = 'input window, operand 1, single buffered']
    #allocation4 [shape = 's32[1]{0}', space=sflag, size = 0x4, scoped, tag = 'scoped memory for bert_forward.26']
    %8 = vsyncpa [#allocation4], 0
    // Predicated region
    $region2: #{bert_forward.26} parent=1 // pred_check
      _
    $region3: #{bert_forward.26} parent=1 // pred_check_branch
      %10 = sbr.rel (0) target = $region5
    $region4: #{bert_forward.26} parent=1 // pred_region
      _
    $region5: #{bert_forward.26} parent=1 // pred_fallthru
      _
    // Predicated region
    $region6: #{bert_forward.26} parent=1 // pred_check
      _
    $region7: #{bert_forward.26} parent=1 // pred_check_branch
      %12 = sbr.rel (0) target = $region9
    $region8: #{bert_forward.26} parent=1 // pred_region
      %14 = vsyncadd [#allocation4], 0
      %s15 = sshll.u32 %s1, 4
      %s16 = int_to_ptr.hbm [resolvable:$true] %s15
      %s17 = sshll.u32 [#allocation3], 4
      %s18 = int_to_ptr.vmem [resolvable:$true] %s17
      %23 = dma.hbm_to_vmem [thread:$0]  %s16, 4096, %s18, [#allocation4], 256, 256, 16
    $region9: #{bert_forward.26} parent=1 // pred_fallthru
      _
    // Predicated region
    $region10: #{bert_forward.26} parent=1 // pred_check
      _
    $region11: #{bert_forward.26} parent=1 // pred_check_branch
      %25 = sbr.rel (0) target = $region13
    $region12: #{bert_forward.26} parent=1 // pred_region
      _
    $region13: #{bert_forward.26} parent=1 // pred_fallthru
      _
    // Predicated region
    $region14: #{bert_forward.26} parent=1 // pred_check
      _
    $region15: #{bert_forward.26} parent=1 // pred_check_branch
      %27 = sbr.rel (0) target = $region17
    $region16: #{bert_forward.26} parent=1 // pred_region
      %29 = dma.done [#allocation4], 4096
    $region17: #{bert_forward.26} parent=1 // pred_fallthru
      _
    %p30 = scmp.eq.s32.totalorder 0, 0
    // Predicated region
    $region18: #{bert_forward.26} parent=1 // pred_check
      %p31 = pneg %p30
    $region19: #{bert_forward.26} parent=1 // pred_check_branch
      %33 = sbr.rel (%p31) target = $region21
    $region20: #{bert_forward.26} parent=1 // pred_region
      %34 = vst [vmem:[#allocation2] sm:$0xff] 0.0
      %35 = vst [vmem:[#allocation2 + $0x8] sm:$0xff] 0.0
      %36 = vst [vmem:[#allocation2 + $0x10] sm:$0xff] 0.0
      %37 = vst [vmem:[#allocation2 + $0x18] sm:$0xff] 0.0
    $region21: #{bert_forward.26} parent=1 // pred_fallthru
      _
    %v38 = vld [vmem:[%s0] sm:$0xff]
    %v39 = vld [vmem:[#allocation2] sm:$0xff]
    %v40 = vld [vmem:[#allocation2 + $0x8] sm:$0xff]
    %v41 = vld [vmem:[#allocation2 + $0x10] sm:$0xff]
    %v42 = vld [vmem:[#allocation2 + $0x18] sm:$0xff]
    %v43 = vpack.c.bf16 %v38, %v38
    %v44 = vld [vmem:[#allocation3] sm:$0xff]
    %v45 = vld [vmem:[#allocation3 + $0x8] sm:$0xff]
    %v46 = vld [vmem:[#allocation3 + $0x10] sm:$0xff]
    %v47 = vld [vmem:[#allocation3 + $0x18] sm:$0xff]
    %v48 = vld [vmem:[#allocation3 + $0x20] sm:$0xff]
    %v49 = vld [vmem:[#allocation3 + $0x28] sm:$0xff]
    %v50 = vld [vmem:[#allocation3 + $0x30] sm:$0xff]
    %v51 = vld [vmem:[#allocation3 + $0x38] sm:$0xff]
    %v52 = vld [vmem:[#allocation3 + $0x40] sm:$0xff]
    %v53 = vld [vmem:[#allocation3 + $0x48] sm:$0xff]
    %v54 = vld [vmem:[#allocation3 + $0x50] sm:$0xff]
    %v55 = vld [vmem:[#allocation3 + $0x58] sm:$0xff]
    %v56 = vld [vmem:[#allocation3 + $0x60] sm:$0xff]
    %v57 = vld [vmem:[#allocation3 + $0x68] sm:$0xff]
    %v58 = vld [vmem:[#allocation3 + $0x70] sm:$0xff]
    %v59 = vld [vmem:[#allocation3 + $0x78] sm:$0xff]
    %v60 = vld [vmem:[#allocation3 + $0x80] sm:$0xff]
    %v61 = vld [vmem:[#allocation3 + $0x88] sm:$0xff]
    %v62 = vld [vmem:[#allocation3 + $0x90] sm:$0xff]
    %v63 = vld [vmem:[#allocation3 + $0x98] sm:$0xff]
    %v64 = vld [vmem:[#allocation3 + $0xa0] sm:$0xff]
    %v65 = vld [vmem:[#allocation3 + $0xa8] sm:$0xff]
    %v66 = vld [vmem:[#allocation3 + $0xb0] sm:$0xff]
    %v67 = vld [vmem:[#allocation3 + $0xb8] sm:$0xff]
    %v68 = vld [vmem:[#allocation3 + $0xc0] sm:$0xff]
    %v69 = vld [vmem:[#allocation3 + $0xc8] sm:$0xff]
    %v70 = vld [vmem:[#allocation3 + $0xd0] sm:$0xff]
    %v71 = vld [vmem:[#allocation3 + $0xd8] sm:$0xff]
    %v72 = vld [vmem:[#allocation3 + $0xe0] sm:$0xff]
    %v73 = vld [vmem:[#allocation3 + $0xe8] sm:$0xff]
    %v74 = vld [vmem:[#allocation3 + $0xf0] sm:$0xff]
    %v75 = vld [vmem:[#allocation3 + $0xf8] sm:$0xff]
    %v108 = vunpack.c.l.b16 %v44
    %v109 = vunpack.c.h.b16 %v44
    %v110 = vunpack.c.l.b16 %v45
    %v111 = vunpack.c.h.b16 %v45
    %v112 = vunpack.c.l.b16 %v46
    %v113 = vunpack.c.h.b16 %v46
    %v114 = vunpack.c.l.b16 %v47
    %v115 = vunpack.c.h.b16 %v47
    %v116 = vunpack.c.l.b16 %v48
    %v117 = vunpack.c.h.b16 %v48
    %v118 = vunpack.c.l.b16 %v49
    %v119 = vunpack.c.h.b16 %v49
    %v120 = vunpack.c.l.b16 %v50
    %v121 = vunpack.c.h.b16 %v50
    %v122 = vunpack.c.l.b16 %v51
    %v123 = vunpack.c.h.b16 %v51
    %v124 = vunpack.c.l.b16 %v52
    %v125 = vunpack.c.h.b16 %v52
    %v126 = vunpack.c.l.b16 %v53
    %v127 = vunpack.c.h.b16 %v53
    %v128 = vunpack.c.l.b16 %v54
    %v129 = vunpack.c.h.b16 %v54
    %v130 = vunpack.c.l.b16 %v55
    %v131 = vunpack.c.h.b16 %v55
    %v132 = vunpack.c.l.b16 %v56
    %v133 = vunpack.c.h.b16 %v56
    %v134 = vunpack.c.l.b16 %v57
    %v135 = vunpack.c.h.b16 %v57
    %v136 = vunpack.c.l.b16 %v58
    %v137 = vunpack.c.h.b16 %v58
    %v138 = vunpack.c.l.b16 %v59
    %v139 = vunpack.c.h.b16 %v59
    %v140 = vunpack.c.l.b16 %v60
    %v141 = vunpack.c.h.b16 %v60
    %v142 = vunpack.c.l.b16 %v61
    %v143 = vunpack.c.h.b16 %v61
    %v144 = vunpack.c.l.b16 %v62
    %v145 = vunpack.c.h.b16 %v62
    %v146 = vunpack.c.l.b16 %v63
    %v147 = vunpack.c.h.b16 %v63
    %v148 = vunpack.c.l.b16 %v64
    %v149 = vunpack.c.h.b16 %v64
    %v150 = vunpack.c.l.b16 %v65
    %v151 = vunpack.c.h.b16 %v65
    %v152 = vunpack.c.l.b16 %v66
    %v153 = vunpack.c.h.b16 %v66
    %v154 = vunpack.c.l.b16 %v67
    %v155 = vunpack.c.h.b16 %v67
    %v156 = vunpack.c.l.b16 %v68
    %v157 = vunpack.c.h.b16 %v68
    %v158 = vunpack.c.l.b16 %v69
    %v159 = vunpack.c.h.b16 %v69
    %v160 = vunpack.c.l.b16 %v70
    %v161 = vunpack.c.h.b16 %v70
    %v162 = vunpack.c.l.b16 %v71
    %v163 = vunpack.c.h.b16 %v71
    %v164 = vunpack.c.l.b16 %v72
    %v165 = vunpack.c.h.b16 %v72
    %v166 = vunpack.c.l.b16 %v73
    %v167 = vunpack.c.h.b16 %v73
    %v168 = vunpack.c.l.b16 %v74
    %v169 = vunpack.c.h.b16 %v74
    %v170 = vunpack.c.l.b16 %v75
    %v171 = vunpack.c.h.b16 %v75
    %v172 = vpack.c.b16 %v112, %v108
    %v173 = vpack.c.b16 %v113, %v109
    %v174 = vpack.c.b16 %v114, %v110
    %v175 = vpack.c.b16 %v115, %v111
    %v176 = vpack.c.b16 %v120, %v116
    %v177 = vpack.c.b16 %v121, %v117
    %v178 = vpack.c.b16 %v122, %v118
    %v179 = vpack.c.b16 %v123, %v119
    %v180 = vpack.c.b16 %v128, %v124
    %v181 = vpack.c.b16 %v129, %v125
    %v182 = vpack.c.b16 %v130, %v126
    %v183 = vpack.c.b16 %v131, %v127
    %v184 = vpack.c.b16 %v136, %v132
    %v185 = vpack.c.b16 %v137, %v133
    %v186 = vpack.c.b16 %v138, %v134
    %v187 = vpack.c.b16 %v139, %v135
    %v188 = vpack.c.b16 %v144, %v140
    %v189 = vpack.c.b16 %v145, %v141
    %v190 = vpack.c.b16 %v146, %v142
    %v191 = vpack.c.b16 %v147, %v143
    %v192 = vpack.c.b16 %v152, %v148
    %v193 = vpack.c.b16 %v153, %v149
    %v194 = vpack.c.b16 %v154, %v150
    %v195 = vpack.c.b16 %v155, %v151
    %v196 = vpack.c.b16 %v160, %v156
    %v197 = vpack.c.b16 %v161, %v157
    %v198 = vpack.c.b16 %v162, %v158
    %v199 = vpack.c.b16 %v163, %v159
    %v200 = vpack.c.b16 %v168, %v164
    %v201 = vpack.c.b16 %v169, %v165
    %v202 = vpack.c.b16 %v170, %v166
    %v203 = vpack.c.b16 %v171, %v167
    %236 = vmatpush.bf16.msra.mxu0 %v200
    %237 = vmatpush.bf16.msra.mxu0 %v196
    %238 = vmatpush.bf16.msra.mxu0 %v192
    %239 = vmatpush.bf16.msra.mxu0 %v188
    %240 = vmatpush.bf16.msra.mxu0 %v184
    %241 = vmatpush.bf16.msra.mxu0 %v180
    %242 = vmatpush.bf16.msra.mxu0 %v176
    %243 = vmatpush.bf16.msra.mxu0 %v172
    %244 = vmatmul.bf16.gmra.mxu0 %v43
    %v245 = vpop.f32.mrf.mxu0
    %v246 = vadd.f32 0.0, %v245
    %v247 = vpop.f32.mrf.mxu0
    %248 = vdwg.mxu0
    %249 = vmatpush.bf16.msra.mxu0 %v201
    %250 = vmatpush.bf16.msra.mxu0 %v197
    %251 = vmatpush.bf16.msra.mxu0 %v193
    %252 = vmatpush.bf16.msra.mxu0 %v189
    %253 = vmatpush.bf16.msra.mxu0 %v185
    %254 = vmatpush.bf16.msra.mxu0 %v181
    %255 = vmatpush.bf16.msra.mxu0 %v177
    %256 = vmatpush.bf16.msra.mxu0 %v173
    %257 = vmatmul.bf16.gmra.mxu0 %v43
    %v258 = vpop.f32.mrf.mxu0
    %v259 = vadd.f32 0.0, %v258
    %v260 = vpop.f32.mrf.mxu0
    %261 = vdwg.mxu0
    %262 = vmatpush.bf16.msra.mxu0 %v202
    %263 = vmatpush.bf16.msra.mxu0 %v198
    %264 = vmatpush.bf16.msra.mxu0 %v194
    %265 = vmatpush.bf16.msra.mxu0 %v190
    %266 = vmatpush.bf16.msra.mxu0 %v186
    %267 = vmatpush.bf16.msra.mxu0 %v182
    %268 = vmatpush.bf16.msra.mxu0 %v178
    %269 = vmatpush.bf16.msra.mxu0 %v174
    %270 = vmatmul.bf16.gmra.mxu0 %v43
    %v271 = vpop.f32.mrf.mxu0
    %v272 = vadd.f32 0.0, %v271
    %v273 = vpop.f32.mrf.mxu0
    %274 = vdwg.mxu0
    %275 = vmatpush.bf16.msra.mxu0 %v203
    %276 = vmatpush.bf16.msra.mxu0 %v199
    %277 = vmatpush.bf16.msra.mxu0 %v195
    %278 = vmatpush.bf16.msra.mxu0 %v191
    %279 = vmatpush.bf16.msra.mxu0 %v187
    %280 = vmatpush.bf16.msra.mxu0 %v183
    %281 = vmatpush.bf16.msra.mxu0 %v179
    %282 = vmatpush.bf16.msra.mxu0 %v175
    %283 = vmatmul.bf16.gmra.mxu0 %v43
    %v284 = vpop.f32.mrf.mxu0
    %v285 = vadd.f32 0.0, %v284
    %v286 = vpop.f32.mrf.mxu0
    %287 = vdwg.mxu0
    %v288 = vadd.f32 %v39, %v246
    %v289 = vadd.f32 %v40, %v259
    %v290 = vadd.f32 %v41, %v272
    %v291 = vadd.f32 %v42, %v285
    %292 = vst [vmem:[#allocation2] sm:$0xff] %v288
    %293 = vst [vmem:[#allocation2 + $0x8] sm:$0xff] %v289
    %294 = vst [vmem:[#allocation2 + $0x10] sm:$0xff] %v290
    %295 = vst [vmem:[#allocation2 + $0x18] sm:$0xff] %v291
    // Predicated region
    $region22: #{bert_forward.26} parent=1 // pred_check
      %p296 = pneg %p30
    $region23: #{bert_forward.26} parent=1 // pred_check_branch
      %298 = sbr.rel (%p296) target = $region25
    $region24: #{bert_forward.26} parent=1 // pred_region
      %v299 = vld [vmem:[#allocation2] sm:$0xff]
      %v300 = vld [vmem:[#allocation2 + $0x8] sm:$0xff]
      %v301 = vld [vmem:[#allocation2 + $0x10] sm:$0xff]
      %v302 = vld [vmem:[#allocation2 + $0x18] sm:$0xff]
      %v303 = vld [vmem:[%s2] sm:$0xf]
      %v305 = vperm.slane %v303, 0
      %v306 = vperm.slane %v303, 1
      %v307 = vperm.slane %v303, 2
      %v308 = vperm.slane %v303, 3
      %v313 = vadd.f32 %v299, %v305
      %v314 = vadd.f32 %v300, %v306
      %v315 = vadd.f32 %v301, %v307
      %v316 = vadd.f32 %v302, %v308
      %v317 = vmax.f32 %v313, 0.0
      %v318 = vmax.f32 %v314, 0.0
      %v319 = vmax.f32 %v315, 0.0
      %v320 = vmax.f32 %v316, 0.0
      %321 = vst [vmem:[%s3] sm:$0xff] %v317
      %322 = vst [vmem:[%s3 + $0x8] sm:$0xff] %v318
      %323 = vst [vmem:[%s3 + $0x10] sm:$0xff] %v319
      %324 = vst [vmem:[%s3 + $0x18] sm:$0xff] %v320
    $region25: #{bert_forward.26} parent=1 // pred_fallthru
      _
    // Predicated region
    $region26: #{bert_forward.26} parent=1 // pred_check
      _
    $region27: #{bert_forward.26} parent=1 // pred_check_branch
      %326 = sbr.rel (0) target = $region29
    $region28: #{bert_forward.26} parent=1 // pred_region
      _
    $region29: #{bert_forward.26} parent=1 // pred_fallthru
      _
    // Predicated region
    $region30: #{bert_forward.26} parent=1 // pred_check
      _
    $region31: #{bert_forward.26} parent=1 // pred_check_branch
      %328 = sbr.rel (0) target = $region33
    $region32: #{bert_forward.26} parent=1 // pred_region
      _
    $region33: #{bert_forward.26} parent=1 // pred_fallthru
      _
    %329 = vsyncpa [#allocation4], 1

// kernel: bert_forward.27
$region0: #{bert_forward.27}
  #allocation0 [shape = 'u32[]', space=smem, size = 0x4, offset = 0x4, fixed_abs, tag = 'smem constant byte address 0x4 - core index']
  #allocation1 [shape = 'u32[72,128]{1,0:T(1,128)}', space=vmem, size = 0x9000, scoped, tag = 'internal scratch']
  #allocation2 [shape = 'f32[8,256]{1,0:T(8,128)}', space=vmem, size = 0x2000, scoped, tag = 'scratch operand']
  %s0 = inlined_call_operand.vmem [shape: f32[8,512], index: 0, kind: input, shape index: {}]
  %s1 = inlined_call_operand.hbm [shape: bf16[512,256], index: 1, kind: input, shape index: {}]
  %s2 = inlined_call_operand.vmem [shape: f32[1,256], index: 2, kind: input, shape index: {}]
  %s3 = inlined_call_operand.vmem [shape: f32[1,512], index: 3, kind: input, shape index: {}]
  %s4 = inlined_call_operand.vmem [shape: f32[1,512], index: 4, kind: input, shape index: {}]
  %s5 = inlined_call_operand.vmem [shape: f32[8,256], index: 5, kind: output, shape index: {}]
  %s6 = sld [smem:[#allocation0]]
  $region42: #{bert_forward.27} parent=0
    _
  %s8 = ssub.s32 1, %s6
  %s9 = scalar_select 0, %s8, %s6
  $region1: #{bert_forward.27} parent=0
    #allocation3 [shape = 'u8[262144]{0}', space=vmem, size = 0x40000, scoped, tag = 'input window, operand 1, single buffered']
    #allocation4 [shape = 's32[1]{0}', space=sflag, size = 0x4, scoped, tag = 'scoped memory for bert_forward.27']
    %10 = vsyncpa [#allocation4], 0
    // Predicated region
    $region2: #{bert_forward.27} parent=1 // pred_check
      _
    $region3: #{bert_forward.27} parent=1 // pred_check_branch
      %12 = sbr.rel (0) target = $region5
    $region4: #{bert_forward.27} parent=1 // pred_region
      _
    $region5: #{bert_forward.27} parent=1 // pred_fallthru
      _
    // Predicated region
    $region6: #{bert_forward.27} parent=1 // pred_check
      _
    $region7: #{bert_forward.27} parent=1 // pred_check_branch
      %14 = sbr.rel (0) target = $region9
    $region8: #{bert_forward.27} parent=1 // pred_region
      %16 = vsyncadd [#allocation4], 0
      %s17 = sshll.u32 %s1, 4
      %s18 = int_to_ptr.hbm [resolvable:$true] %s17
      %s19 = sshll.u32 [#allocation3], 4
      %s20 = int_to_ptr.vmem [resolvable:$true] %s19
      %25 = dma.hbm_to_vmem [thread:$0]  %s18, 8192, %s20, [#allocation4], 128, 128, 8
    $region9: #{bert_forward.27} parent=1 // pred_fallthru
      _
    // Predicated region
    $region10: #{bert_forward.27} parent=1 // pred_check
      _
    $region11: #{bert_forward.27} parent=1 // pred_check_branch
      %27 = sbr.rel (0) target = $region13
    $region12: #{bert_forward.27} parent=1 // pred_region
      _
    $region13: #{bert_forward.27} parent=1 // pred_fallthru
      _
    // Predicated region
    $region14: #{bert_forward.27} parent=1 // pred_check
      _
    $region15: #{bert_forward.27} parent=1 // pred_check_branch
      %29 = sbr.rel (0) target = $region17
    $region16: #{bert_forward.27} parent=1 // pred_region
      _
    $region17: #{bert_forward.27} parent=1 // pred_fallthru
      _
    // Predicated region
    $region18: #{bert_forward.27} parent=1 // pred_check
      _
    $region19: #{bert_forward.27} parent=1 // pred_check_branch
      %31 = sbr.rel (0) target = $region21
    $region20: #{bert_forward.27} parent=1 // pred_region
      _
    $region21: #{bert_forward.27} parent=1 // pred_fallthru
      _
    // Predicated region
    $region22: #{bert_forward.27} parent=1 // pred_check
      _
    $region23: #{bert_forward.27} parent=1 // pred_check_branch
      %33 = sbr.rel (0) target = $region25
    $region24: #{bert_forward.27} parent=1 // pred_region
      %35 = dma.done [#allocation4], 8192
    $region25: #{bert_forward.27} parent=1 // pred_fallthru
      _
    %p36 = scmp.eq.s32.totalorder 0, 0
    // Predicated region
    $region26: #{bert_forward.27} parent=1 // pred_check
      %p37 = pneg %p36
    $region27: #{bert_forward.27} parent=1 // pred_check_branch
      %39 = sbr.rel (%p37) target = $region29
    $region28: #{bert_forward.27} parent=1 // pred_region
      %40 = vst [vmem:[#allocation2] sm:$0xff] 0.0
      %41 = vst [vmem:[#allocation2 + $0x8] sm:$0xff] 0.0
    $region29: #{bert_forward.27} parent=1 // pred_fallthru
      _
    %v42 = vld [vmem:[%s0] sm:$0xff]
    %v43 = vld [vmem:[%s0 + $0x8] sm:$0xff]
    %v44 = vld [vmem:[%s0 + $0x10] sm:$0xff]
    %v45 = vld [vmem:[%s0 + $0x18] sm:$0xff]
    %v46 = vadd.f32 %v42, %v43
    %v47 = vadd.f32 %v46, %v44
    %v48 = vadd.f32 %v47, %v45
    %49 = vadd.xlane.f32.xlu0 %v48
    %v50 = vpop.xlane.xlu0 %49
    %v51 = vrcp.pop 512.0
    %v52 = vmul.f32 512.0, %v51
    %v53 = vsub.f32 1.0, %v52
    %v54 = vmul.f32 %v51, %v53
    %v55 = vadd.f32 %v51, %v54
    %vm56 = vweird.f32 %v51
    %v57 = vsel %vm56, %v51, %v55
    %v58 = vmul.f32 %v50, %v57
    %v59 = vsub.f32 %v42, %v58
    %v60 = vsub.f32 %v43, %v58
    %v61 = vsub.f32 %v44, %v58
    %v62 = vsub.f32 %v45, %v58
    %v63 = vmul.f32 %v59, %v59
    %v64 = vmul.f32 %v60, %v60
    %v65 = vmul.f32 %v61, %v61
    %v66 = vmul.f32 %v62, %v62
    %v67 = vadd.f32 %v63, %v64
    %v68 = vadd.f32 %v67, %v65
    %v69 = vadd.f32 %v68, %v66
    %70 = vadd.xlane.f32.xlu0 %v69
    %v71 = vpop.xlane.xlu0 %70
    %v72 = vmul.f32 %v71, %v57
    %v73 = vadd.f32 %v72, 1e-05
    %v74 = vrsqrt.pop %v73
    %v75 = vmul.f32 %v74, %v73
    %v76 = vmul.f32 %v75, %v74
    %v77 = vmul.f32 0.5, %v76
    %v78 = vsub.f32 1.5, %v77
    %v79 = vmul.f32 %v74, %v78
    %vm80 = vweird.f32 %v73
    %vm81 = vweird.f32 %v74
    %vm82 = vmor %vm80, %vm81
    %v83 = vsel %vm82, %v74, %v79
    %v84 = vmul.f32 %v59, %v83
    %v85 = vmul.f32 %v60, %v83
    %v86 = vmul.f32 %v61, %v83
    %v87 = vmul.f32 %v62, %v83
    %v88 = vld [vmem:[%s3] sm:$0xf]
    %v90 = vperm.slane %v88, 0
    %v91 = vperm.slane %v88, 1
    %v92 = vperm.slane %v88, 2
    %v93 = vperm.slane %v88, 3
    %v98 = vmul.f32 %v84, %v90
    %v99 = vmul.f32 %v85, %v91
    %v100 = vmul.f32 %v86, %v92
    %v101 = vmul.f32 %v87, %v93
    %v102 = vld [vmem:[%s4] sm:$0xf]
    %v104 = vperm.slane %v102, 0
    %v105 = vperm.slane %v102, 1
    %v106 = vperm.slane %v102, 2
    %v107 = vperm.slane %v102, 3
    %v112 = vadd.f32 %v98, %v104
    %v113 = vadd.f32 %v99, %v105
    %v114 = vadd.f32 %v100, %v106
    %v115 = vadd.f32 %v101, %v107
    %v116 = vld [vmem:[#allocation2] sm:$0xff]
    %v117 = vld [vmem:[#allocation2 + $0x8] sm:$0xff]
    %v118 = vpack.c.bf16 %v112, %v112
    %v119 = vpack.c.bf16 %v113, %v113
    %v120 = vpack.c.bf16 %v114, %v114
    %v121 = vpack.c.bf16 %v115, %v115
    %v122 = vld [vmem:[#allocation3] sm:$0xff]
    %v123 = vld [vmem:[#allocation3 + $0x8] sm:$0xff]
    %v124 = vld [vmem:[#allocation3 + $0x10] sm:$0xff]
    %v125 = vld [vmem:[#allocation3 + $0x18] sm:$0xff]
    %v126 = vld [vmem:[#allocation3 + $0x20] sm:$0xff]
    %v127 = vld [vmem:[#allocation3 + $0x28] sm:$0xff]
    %v128 = vld [vmem:[#allocation3 + $0x30] sm:$0xff]
    %v129 = vld [vmem:[#allocation3 + $0x38] sm:$0xff]
    %v130 = vld [vmem:[#allocation3 + $0x40] sm:$0xff]
    %v131 = vld [vmem:[#allocation3 + $0x48] sm:$0xff]
    %v132 = vld [vmem:[#allocation3 + $0x50] sm:$0xff]
    %v133 = vld [vmem:[#allocation3 + $0x58] sm:$0xff]
    %v134 = vld [vmem:[#allocation3 + $0x60] sm:$0xff]
    %v135 = vld [vmem:[#allocation3 + $0x68] sm:$0xff]
    %v136 = vld [vmem:[#allocation3 + $0x70] sm:$0xff]
    %v137 = vld [vmem:[#allocation3 + $0x78] sm:$0xff]
    %v138 = vld [vmem:[#allocation3 + $0x80] sm:$0xff]
    %v139 = vld [vmem:[#allocation3 + $0x88] sm:$0xff]
    %v140 = vld [vmem:[#allocation3 + $0x90] sm:$0xff]
    %v141 = vld [vmem:[#allocation3 + $0x98] sm:$0xff]
    %v142 = vld [vmem:[#allocation3 + $0xa0] sm:$0xff]
    %v143 = vld [vmem:[#allocation3 + $0xa8] sm:$0xff]
    %v144 = vld [vmem:[#allocation3 + $0xb0] sm:$0xff]
    %v145 = vld [vmem:[#allocation3 + $0xb8] sm:$0xff]
    %v146 = vld [vmem:[#allocation3 + $0xc0] sm:$0xff]
    %v147 = vld [vmem:[#allocation3 + $0xc8] sm:$0xff]
    %v148 = vld [vmem:[#allocation3 + $0xd0] sm:$0xff]
    %v149 = vld [vmem:[#allocation3 + $0xd8] sm:$0xff]
    %v150 = vld [vmem:[#allocation3 + $0xe0] sm:$0xff]
    %v151 = vld [vmem:[#allocation3 + $0xe8] sm:$0xff]
    %v152 = vld [vmem:[#allocation3 + $0xf0] sm:$0xff]
    %v153 = vld [vmem:[#allocation3 + $0xf8] sm:$0xff]
    %v154 = vld [vmem:[#allocation3 + $0x100] sm:$0xff]
    %v155 = vld [vmem:[#allocation3 + $0x108] sm:$0xff]
    %v156 = vld [vmem:[#allocation3 + $0x110] sm:$0xff]
    %v157 = vld [vmem:[#allocation3 + $0x118] sm:$0xff]
    %v158 = vld [vmem:[#allocation3 + $0x120] sm:$0xff]
    %v159 = vld [vmem:[#allocation3 + $0x128] sm:$0xff]
    %v160 = vld [vmem:[#allocation3 + $0x130] sm:$0xff]
    %v161 = vld [vmem:[#allocation3 + $0x138] sm:$0xff]
    %v162 = vld [vmem:[#allocation3 + $0x140] sm:$0xff]
    %v163 = vld [vmem:[#allocation3 + $0x148] sm:$0xff]
    %v164 = vld [vmem:[#allocation3 + $0x150] sm:$0xff]
    %v165 = vld [vmem:[#allocation3 + $0x158] sm:$0xff]
    %v166 = vld [vmem:[#allocation3 + $0x160] sm:$0xff]
    %v167 = vld [vmem:[#allocation3 + $0x168] sm:$0xff]
    %v168 = vld [vmem:[#allocation3 + $0x170] sm:$0xff]
    %v169 = vld [vmem:[#allocation3 + $0x178] sm:$0xff]
    %v170 = vld [vmem:[#allocation3 + $0x180] sm:$0xff]
    %v171 = vld [vmem:[#allocation3 + $0x188] sm:$0xff]
    %v172 = vld [vmem:[#allocation3 + $0x190] sm:$0xff]
    %v173 = vld [vmem:[#allocation3 + $0x198] sm:$0xff]
    %v174 = vld [vmem:[#allocation3 + $0x1a0] sm:$0xff]
    %v175 = vld [vmem:[#allocation3 + $0x1a8] sm:$0xff]
    %v176 = vld [vmem:[#allocation3 + $0x1b0] sm:$0xff]
    %v177 = vld [vmem:[#allocation3 + $0x1b8] sm:$0xff]
    %v178 = vld [vmem:[#allocation3 + $0x1c0] sm:$0xff]
    %v179 = vld [vmem:[#allocation3 + $0x1c8] sm:$0xff]
    %v180 = vld [vmem:[#allocation3 + $0x1d0] sm:$0xff]
    %v181 = vld [vmem:[#allocation3 + $0x1d8] sm:$0xff]
    %v182 = vld [vmem:[#allocation3 + $0x1e0] sm:$0xff]
    %v183 = vld [vmem:[#allocation3 + $0x1e8] sm:$0xff]
    %v184 = vld [vmem:[#allocation3 + $0x1f0] sm:$0xff]
    %v185 = vld [vmem:[#allocation3 + $0x1f8] sm:$0xff]
    %v250 = vunpack.c.l.b16 %v122
    %v251 = vunpack.c.h.b16 %v122
    %v252 = vunpack.c.l.b16 %v123
    %v253 = vunpack.c.h.b16 %v123
    %v254 = vunpack.c.l.b16 %v124
    %v255 = vunpack.c.h.b16 %v124
    %v256 = vunpack.c.l.b16 %v125
    %v257 = vunpack.c.h.b16 %v125
    %v258 = vunpack.c.l.b16 %v126
    %v259 = vunpack.c.h.b16 %v126
    %v260 = vunpack.c.l.b16 %v127
    %v261 = vunpack.c.h.b16 %v127
    %v262 = vunpack.c.l.b16 %v128
    %v263 = vunpack.c.h.b16 %v128
    %v264 = vunpack.c.l.b16 %v129
    %v265 = vunpack.c.h.b16 %v129
    %v266 = vunpack.c.l.b16 %v130
    %v267 = vunpack.c.h.b16 %v130
    %v268 = vunpack.c.l.b16 %v131
    %v269 = vunpack.c.h.b16 %v131
    %v270 = vunpack.c.l.b16 %v132
    %v271 = vunpack.c.h.b16 %v132
    %v272 = vunpack.c.l.b16 %v133
    %v273 = vunpack.c.h.b16 %v133
    %v274 = vunpack.c.l.b16 %v134
    %v275 = vunpack.c.h.b16 %v134
    %v276 = vunpack.c.l.b16 %v135
    %v277 = vunpack.c.h.b16 %v135
    %v278 = vunpack.c.l.b16 %v136
    %v279 = vunpack.c.h.b16 %v136
    %v280 = vunpack.c.l.b16 %v137
    %v281 = vunpack.c.h.b16 %v137
    %v282 = vunpack.c.l.b16 %v138
    %v283 = vunpack.c.h.b16 %v138
    %v284 = vunpack.c.l.b16 %v139
    %v285 = vunpack.c.h.b16 %v139
    %v286 = vunpack.c.l.b16 %v140
    %v287 = vunpack.c.h.b16 %v140
    %v288 = vunpack.c.l.b16 %v141
    %v289 = vunpack.c.h.b16 %v141
    %v290 = vunpack.c.l.b16 %v142
    %v291 = vunpack.c.h.b16 %v142
    %v292 = vunpack.c.l.b16 %v143
    %v293 = vunpack.c.h.b16 %v143
    %v294 = vunpack.c.l.b16 %v144
    %v295 = vunpack.c.h.b16 %v144
    %v296 = vunpack.c.l.b16 %v145
    %v297 = vunpack.c.h.b16 %v145
    %v298 = vunpack.c.l.b16 %v146
    %v299 = vunpack.c.h.b16 %v146
    %v300 = vunpack.c.l.b16 %v147
    %v301 = vunpack.c.h.b16 %v147
    %v302 = vunpack.c.l.b16 %v148
    %v303 = vunpack.c.h.b16 %v148
    %v304 = vunpack.c.l.b16 %v149
    %v305 = vunpack.c.h.b16 %v149
    %v306 = vunpack.c.l.b16 %v150
    %v307 = vunpack.c.h.b16 %v150
    %v308 = vunpack.c.l.b16 %v151
    %v309 = vunpack.c.h.b16 %v151
    %v310 = vunpack.c.l.b16 %v152
    %v311 = vunpack.c.h.b16 %v152
    %v312 = vunpack.c.l.b16 %v153
    %v313 = vunpack.c.h.b16 %v153
    %v314 = vunpack.c.l.b16 %v154
    %v315 = vunpack.c.h.b16 %v154
    %v316 = vunpack.c.l.b16 %v155
    %v317 = vunpack.c.h.b16 %v155
    %v318 = vunpack.c.l.b16 %v156
    %v319 = vunpack.c.h.b16 %v156
    %v320 = vunpack.c.l.b16 %v157
    %v321 = vunpack.c.h.b16 %v157
    %v322 = vunpack.c.l.b16 %v158
    %v323 = vunpack.c.h.b16 %v158
    %v324 = vunpack.c.l.b16 %v159
    %v325 = vunpack.c.h.b16 %v159
    %v326 = vunpack.c.l.b16 %v160
    %v327 = vunpack.c.h.b16 %v160
    %v328 = vunpack.c.l.b16 %v161
    %v329 = vunpack.c.h.b16 %v161
    %v330 = vunpack.c.l.b16 %v162
    %v331 = vunpack.c.h.b16 %v162
    %v332 = vunpack.c.l.b16 %v163
    %v333 = vunpack.c.h.b16 %v163
    %v334 = vunpack.c.l.b16 %v164
    %v335 = vunpack.c.h.b16 %v164
    %v336 = vunpack.c.l.b16 %v165
    %v337 = vunpack.c.h.b16 %v165
    %v338 = vunpack.c.l.b16 %v166
    %v339 = vunpack.c.h.b16 %v166
    %v340 = vunpack.c.l.b16 %v167
    %v341 = vunpack.c.h.b16 %v167
    %v342 = vunpack.c.l.b16 %v168
    %v343 = vunpack.c.h.b16 %v168
    %v344 = vunpack.c.l.b16 %v169
    %v345 = vunpack.c.h.b16 %v169
    %v346 = vunpack.c.l.b16 %v170
    %v347 = vunpack.c.h.b16 %v170
    %v348 = vunpack.c.l.b16 %v171
    %v349 = vunpack.c.h.b16 %v171
    %v350 = vunpack.c.l.b16 %v172
    %v351 = vunpack.c.h.b16 %v172
    %v352 = vunpack.c.l.b16 %v173
    %v353 = vunpack.c.h.b16 %v173
    %v354 = vunpack.c.l.b16 %v174
    %v355 = vunpack.c.h.b16 %v174
    %v356 = vunpack.c.l.b16 %v175
    %v357 = vunpack.c.h.b16 %v175
    %v358 = vunpack.c.l.b16 %v176
    %v359 = vunpack.c.h.b16 %v176
    %v360 = vunpack.c.l.b16 %v177
    %v361 = vunpack.c.h.b16 %v177
    %v362 = vunpack.c.l.b16 %v178
    %v363 = vunpack.c.h.b16 %v178
    %v364 = vunpack.c.l.b16 %v179
    %v365 = vunpack.c.h.b16 %v179
    %v366 = vunpack.c.l.b16 %v180
    %v367 = vunpack.c.h.b16 %v180
    %v368 = vunpack.c.l.b16 %v181
    %v369 = vunpack.c.h.b16 %v181
    %v370 = vunpack.c.l.b16 %v182
    %v371 = vunpack.c.h.b16 %v182
    %v372 = vunpack.c.l.b16 %v183
    %v373 = vunpack.c.h.b16 %v183
    %v374 = vunpack.c.l.b16 %v184
    %v375 = vunpack.c.h.b16 %v184
    %v376 = vunpack.c.l.b16 %v185
    %v377 = vunpack.c.h.b16 %v185
    %v378 = vpack.c.b16 %v252, %v250
    %v379 = vpack.c.b16 %v253, %v251
    %v380 = vpack.c.b16 %v256, %v254
    %v381 = vpack.c.b16 %v257, %v255
    %v382 = vpack.c.b16 %v260, %v258
    %v383 = vpack.c.b16 %v261, %v259
    %v384 = vpack.c.b16 %v264, %v262
    %v385 = vpack.c.b16 %v265, %v263
    %v386 = vpack.c.b16 %v268, %v266
    %v387 = vpack.c.b16 %v269, %v267
    %v388 = vpack.c.b16 %v272, %v270
    %v389 = vpack.c.b16 %v273, %v271
    %v390 = vpack.c.b16 %v276, %v274
    %v391 = vpack.c.b16 %v277, %v275
    %v392 = vpack.c.b16 %v280, %v278
    %v393 = vpack.c.b16 %v281, %v279
    %v394 = vpack.c.b16 %v284, %v282
    %v395 = vpack.c.b16 %v285, %v283
    %v396 = vpack.c.b16 %v288, %v286
    %v397 = vpack.c.b16 %v289, %v287
    %v398 = vpack.c.b16 %v292, %v290
    %v399 = vpack.c.b16 %v293, %v291
    %v400 = vpack.c.b16 %v296, %v294
    %v401 = vpack.c.b16 %v297, %v295
    %v402 = vpack.c.b16 %v300, %v298
    %v403 = vpack.c.b16 %v301, %v299
    %v404 = vpack.c.b16 %v304, %v302
    %v405 = vpack.c.b16 %v305, %v303
    %v406 = vpack.c.b16 %v308, %v306
    %v407 = vpack.c.b16 %v309, %v307
    %v408 = vpack.c.b16 %v312, %v310
    %v409 = vpack.c.b16 %v313, %v311
    %v410 = vpack.c.b16 %v316, %v314
    %v411 = vpack.c.b16 %v317, %v315
    %v412 = vpack.c.b16 %v320, %v318
    %v413 = vpack.c.b16 %v321, %v319
    %v414 = vpack.c.b16 %v324, %v322
    %v415 = vpack.c.b16 %v325, %v323
    %v416 = vpack.c.b16 %v328, %v326
    %v417 = vpack.c.b16 %v329, %v327
    %v418 = vpack.c.b16 %v332, %v330
    %v419 = vpack.c.b16 %v333, %v331
    %v420 = vpack.c.b16 %v336, %v334
    %v421 = vpack.c.b16 %v337, %v335
    %v422 = vpack.c.b16 %v340, %v338
    %v423 = vpack.c.b16 %v341, %v339
    %v424 = vpack.c.b16 %v344, %v342
    %v425 = vpack.c.b16 %v345, %v343
    %v426 = vpack.c.b16 %v348, %v346
    %v427 = vpack.c.b16 %v349, %v347
    %v428 = vpack.c.b16 %v352, %v350
    %v429 = vpack.c.b16 %v353, %v351
    %v430 = vpack.c.b16 %v356, %v354
    %v431 = vpack.c.b16 %v357, %v355
    %v432 = vpack.c.b16 %v360, %v358
    %v433 = vpack.c.b16 %v361, %v359
    %v434 = vpack.c.b16 %v364, %v362
    %v435 = vpack.c.b16 %v365, %v363
    %v436 = vpack.c.b16 %v368, %v366
    %v437 = vpack.c.b16 %v369, %v367
    %v438 = vpack.c.b16 %v372, %v370
    %v439 = vpack.c.b16 %v373, %v371
    %v440 = vpack.c.b16 %v376, %v374
    %v441 = vpack.c.b16 %v377, %v375
    %506 = vmatpush.bf16.msra.mxu0 %v392
    %507 = vmatpush.bf16.msra.mxu0 %v390
    %508 = vmatpush.bf16.msra.mxu0 %v388
    %509 = vmatpush.bf16.msra.mxu0 %v386
    %510 = vmatpush.bf16.msra.mxu0 %v384
    %511 = vmatpush.bf16.msra.mxu0 %v382
    %512 = vmatpush.bf16.msra.mxu0 %v380
    %513 = vmatpush.bf16.msra.mxu0 %v378
    %514 = vmatmul.bf16.gmra.mxu0 %v118
    %v515 = vpop.f32.mrf.mxu0
    %v516 = vadd.f32 0.0, %v515
    %v517 = vpop.f32.mrf.mxu0
    %518 = vdwg.mxu0
    %519 = vmatpush.bf16.msra.mxu0 %v408
    %520 = vmatpush.bf16.msra.mxu0 %v406
    %521 = vmatpush.bf16.msra.mxu0 %v404
    %522 = vmatpush.bf16.msra.mxu0 %v402
    %523 = vmatpush.bf16.msra.mxu0 %v400
    %524 = vmatpush.bf16.msra.mxu0 %v398
    %525 = vmatpush.bf16.msra.mxu0 %v396
    %526 = vmatpush.bf16.msra.mxu0 %v394
    %527 = vmatmul.bf16.gmra.mxu0 %v119
    %v528 = vpop.f32.mrf.mxu0
    %v529 = vadd.f32 %v516, %v528
    %v530 = vpop.f32.mrf.mxu0
    %531 = vdwg.mxu0
    %532 = vmatpush.bf16.msra.mxu0 %v424
    %533 = vmatpush.bf16.msra.mxu0 %v422
    %534 = vmatpush.bf16.msra.mxu0 %v420
    %535 = vmatpush.bf16.msra.mxu0 %v418
    %536 = vmatpush.bf16.msra.mxu0 %v416
    %537 = vmatpush.bf16.msra.mxu0 %v414
    %538 = vmatpush.bf16.msra.mxu0 %v412
    %539 = vmatpush.bf16.msra.mxu0 %v410
    %540 = vmatmul.bf16.gmra.mxu0 %v120
    %v541 = vpop.f32.mrf.mxu0
    %v542 = vadd.f32 %v529, %v541
    %v543 = vpop.f32.mrf.mxu0
    %544 = vdwg.mxu0
    %545 = vmatpush.bf16.msra.mxu0 %v440
    %546 = vmatpush.bf16.msra.mxu0 %v438
    %547 = vmatpush.bf16.msra.mxu0 %v436
    %548 = vmatpush.bf16.msra.mxu0 %v434
    %549 = vmatpush.bf16.msra.mxu0 %v432
    %550 = vmatpush.bf16.msra.mxu0 %v430
    %551 = vmatpush.bf16.msra.mxu0 %v428
    %552 = vmatpush.bf16.msra.mxu0 %v426
    %553 = vmatmul.bf16.gmra.mxu0 %v121
    %v554 = vpop.f32.mrf.mxu0
    %v555 = vadd.f32 %v542, %v554
    %v556 = vpop.f32.mrf.mxu0
    %557 = vdwg.mxu0
    %558 = vmatpush.bf16.msra.mxu0 %v393
    %559 = vmatpush.bf16.msra.mxu0 %v391
    %560 = vmatpush.bf16.msra.mxu0 %v389
    %561 = vmatpush.bf16.msra.mxu0 %v387
    %562 = vmatpush.bf16.msra.mxu0 %v385
    %563 = vmatpush.bf16.msra.mxu0 %v383
    %564 = vmatpush.bf16.msra.mxu0 %v381
    %565 = vmatpush.bf16.msra.mxu0 %v379
    %566 = vmatmul.bf16.gmra.mxu0 %v118
    %v567 = vpop.f32.mrf.mxu0
    %v568 = vadd.f32 0.0, %v567
    %v569 = vpop.f32.mrf.mxu0
    %570 = vdwg.mxu0
    %571 = vmatpush.bf16.msra.mxu0 %v409
    %572 = vmatpush.bf16.msra.mxu0 %v407
    %573 = vmatpush.bf16.msra.mxu0 %v405
    %574 = vmatpush.bf16.msra.mxu0 %v403
    %575 = vmatpush.bf16.msra.mxu0 %v401
    %576 = vmatpush.bf16.msra.mxu0 %v399
    %577 = vmatpush.bf16.msra.mxu0 %v397
    %578 = vmatpush.bf16.msra.mxu0 %v395
    %579 = vmatmul.bf16.gmra.mxu0 %v119
    %v580 = vpop.f32.mrf.mxu0
    %v581 = vadd.f32 %v568, %v580
    %v582 = vpop.f32.mrf.mxu0
    %583 = vdwg.mxu0
    %584 = vmatpush.bf16.msra.mxu0 %v425
    %585 = vmatpush.bf16.msra.mxu0 %v423
    %586 = vmatpush.bf16.msra.mxu0 %v421
    %587 = vmatpush.bf16.msra.mxu0 %v419
    %588 = vmatpush.bf16.msra.mxu0 %v417
    %589 = vmatpush.bf16.msra.mxu0 %v415
    %590 = vmatpush.bf16.msra.mxu0 %v413
    %591 = vmatpush.bf16.msra.mxu0 %v411
    %592 = vmatmul.bf16.gmra.mxu0 %v120
    %v593 = vpop.f32.mrf.mxu0
    %v594 = vadd.f32 %v581, %v593
    %v595 = vpop.f32.mrf.mxu0
    %596 = vdwg.mxu0
    %597 = vmatpush.bf16.msra.mxu0 %v441
    %598 = vmatpush.bf16.msra.mxu0 %v439
    %599 = vmatpush.bf16.msra.mxu0 %v437
    %600 = vmatpush.bf16.msra.mxu0 %v435
    %601 = vmatpush.bf16.msra.mxu0 %v433
    %602 = vmatpush.bf16.msra.mxu0 %v431
    %603 = vmatpush.bf16.msra.mxu0 %v429
    %604 = vmatpush.bf16.msra.mxu0 %v427
    %605 = vmatmul.bf16.gmra.mxu0 %v121
    %v606 = vpop.f32.mrf.mxu0
    %v607 = vadd.f32 %v594, %v606
    %v608 = vpop.f32.mrf.mxu0
    %609 = vdwg.mxu0
    %v610 = vadd.f32 %v116, %v555
    %v611 = vadd.f32 %v117, %v607
    %612 = vst [vmem:[#allocation2] sm:$0xff] %v610
    %613 = vst [vmem:[#allocation2 + $0x8] sm:$0xff] %v611
    // Predicated region
    $region30: #{bert_forward.27} parent=1 // pred_check
      %p614 = pneg %p36
    $region31: #{bert_forward.27} parent=1 // pred_check_branch
      %616 = sbr.rel (%p614) target = $region33
    $region32: #{bert_forward.27} parent=1 // pred_region
      %v617 = vld [vmem:[#allocation2] sm:$0xff]
      %v618 = vld [vmem:[#allocation2 + $0x8] sm:$0xff]
      %v619 = vld [vmem:[%s2] sm:$0x3]
      %v621 = vperm.slane %v619, 0
      %v622 = vperm.slane %v619, 1
      %v625 = vadd.f32 %v617, %v621
      %v626 = vadd.f32 %v618, %v622
      %627 = vst [vmem:[%s5] sm:$0xff] %v625
      %628 = vst [vmem:[%s5 + $0x8] sm:$0xff] %v626
    $region33: #{bert_forward.27} parent=1 // pred_fallthru
      _
    // Predicated region
    $region34: #{bert_forward.27} parent=1 // pred_check
      _
    $region35: #{bert_forward.27} parent=1 // pred_check_branch
      %630 = sbr.rel (0) target = $region37
    $region36: #{bert_forward.27} parent=1 // pred_region
      _
    $region37: #{bert_forward.27} parent=1 // pred_fallthru
      _
    // Predicated region
    $region38: #{bert_forward.27} parent=1 // pred_check
      _
    $region39: #{bert_forward.27} parent=1 // pred_check_branch
      %632 = sbr.rel (0) target = $region41
    $region40: #{bert_forward.27} parent=1 // pred_region
      _
    $region41: #{bert_forward.27} parent=1 // pred_fallthru
      _
    %633 = vsyncpa [#allocation4], 1

// kernel: bert_forward.28
$region0: #{bert_forward.28}
  #allocation0 [shape = 'u32[]', space=smem, size = 0x4, offset = 0x4, fixed_abs, tag = 'smem constant byte address 0x4 - core index']
  #allocation1 [shape = 'u32[72,128]{1,0:T(1,128)}', space=vmem, size = 0x9000, scoped, tag = 'internal scratch']
  #allocation2 [shape = 'f32[2,128]{1,0:T(2,128)}', space=vmem, size = 0x400, scoped, tag = 'scratch operand']
  %s0 = inlined_call_operand.vmem [shape: f32[2,128], index: 0, kind: input, shape index: {}]
  %s1 = inlined_call_operand.vmem [shape: bf16[128,128], index: 1, kind: input, shape index: {}]
  %s2 = inlined_call_operand.vmem [shape: f32[1,128], index: 2, kind: input, shape index: {}]
  %s3 = inlined_call_operand.vmem [shape: f32[2,128], index: 3, kind: output, shape index: {}]
  %s4 = sld [smem:[#allocation0]]
  $region30: #{bert_forward.28} parent=0
    _
  %s6 = ssub.s32 1, %s4
  %s7 = scalar_select 0, %s6, %s4
  // Predicated region
  $region2: #{bert_forward.28} parent=0 // pred_check
    _
  $region3: #{bert_forward.28} parent=0 // pred_check_branch
    %9 = sbr.rel (0) target = $region5
  $region4: #{bert_forward.28} parent=0 // pred_region
    _
  $region5: #{bert_forward.28} parent=0 // pred_fallthru
    _
  // Predicated region
  $region6: #{bert_forward.28} parent=0 // pred_check
    _
  $region7: #{bert_forward.28} parent=0 // pred_check_branch
    %11 = sbr.rel (0) target = $region9
  $region8: #{bert_forward.28} parent=0 // pred_region
    _
  $region9: #{bert_forward.28} parent=0 // pred_fallthru
    _
  // Predicated region
  $region10: #{bert_forward.28} parent=0 // pred_check
    _
  $region11: #{bert_forward.28} parent=0 // pred_check_branch
    %13 = sbr.rel (0) target = $region13
  $region12: #{bert_forward.28} parent=0 // pred_region
    _
  $region13: #{bert_forward.28} parent=0 // pred_fallthru
    _
  %p14 = scmp.eq.s32.totalorder 0, 0
  // Predicated region
  $region14: #{bert_forward.28} parent=0 // pred_check
    %p15 = pneg %p14
  $region15: #{bert_forward.28} parent=0 // pred_check_branch
    %17 = sbr.rel (%p15) target = $region17
  $region16: #{bert_forward.28} parent=0 // pred_region
    %18 = vst [vmem:[#allocation2] sm:$0x3] 0.0
  $region17: #{bert_forward.28} parent=0 // pred_fallthru
    _
  %v19 = vld [vmem:[%s0] sm:$0x3]
  %v20 = vld [vmem:[#allocation2] sm:$0x3]
  %v21 = vpack.c.bf16 %v19, %v19
  %v22 = vld [vmem:[%s1] sm:$0xf]
  %v23 = vld [vmem:[%s1 + $0x4] sm:$0xf]
  %v24 = vld [vmem:[%s1 + $0x8] sm:$0xf]
  %v25 = vld [vmem:[%s1 + $0xc] sm:$0xf]
  %v26 = vld [vmem:[%s1 + $0x10] sm:$0xf]
  %v27 = vld [vmem:[%s1 + $0x14] sm:$0xf]
  %v28 = vld [vmem:[%s1 + $0x18] sm:$0xf]
  %v29 = vld [vmem:[%s1 + $0x1c] sm:$0xf]
  %v30 = vld [vmem:[%s1 + $0x20] sm:$0xf]
  %v31 = vld [vmem:[%s1 + $0x24] sm:$0xf]
  %v32 = vld [vmem:[%s1 + $0x28] sm:$0xf]
  %v33 = vld [vmem:[%s1 + $0x2c] sm:$0xf]
  %v34 = vld [vmem:[%s1 + $0x30] sm:$0xf]
  %v35 = vld [vmem:[%s1 + $0x34] sm:$0xf]
  %v36 = vld [vmem:[%s1 + $0x38] sm:$0xf]
  %v37 = vld [vmem:[%s1 + $0x3c] sm:$0xf]
  %v54 = vunpack.c.l.b16 %v22
  %v55 = vunpack.c.l.b16 %v23
  %v56 = vunpack.c.l.b16 %v24
  %v57 = vunpack.c.l.b16 %v25
  %v58 = vunpack.c.l.b16 %v26
  %v59 = vunpack.c.l.b16 %v27
  %v60 = vunpack.c.l.b16 %v28
  %v61 = vunpack.c.l.b16 %v29
  %v62 = vunpack.c.l.b16 %v30
  %v63 = vunpack.c.l.b16 %v31
  %v64 = vunpack.c.l.b16 %v32
  %v65 = vunpack.c.l.b16 %v33
  %v66 = vunpack.c.l.b16 %v34
  %v67 = vunpack.c.l.b16 %v35
  %v68 = vunpack.c.l.b16 %v36
  %v69 = vunpack.c.l.b16 %v37
  %v70 = vpack.c.b16 %v55, %v54
  %v71 = vpack.c.b16 %v57, %v56
  %v72 = vpack.c.b16 %v59, %v58
  %v73 = vpack.c.b16 %v61, %v60
  %v74 = vpack.c.b16 %v63, %v62
  %v75 = vpack.c.b16 %v65, %v64
  %v76 = vpack.c.b16 %v67, %v66
  %v77 = vpack.c.b16 %v69, %v68
  %86 = vmatpush.bf16.msra.mxu0 %v77
  %87 = vmatpush.bf16.msra.mxu0 %v76
  %88 = vmatpush.bf16.msra.mxu0 %v75
  %89 = vmatpush.bf16.msra.mxu0 %v74
  %90 = vmatpush.bf16.msra.mxu0 %v73
  %91 = vmatpush.bf16.msra.mxu0 %v72
  %92 = vmatpush.bf16.msra.mxu0 %v71
  %93 = vmatpush.bf16.msra.mxu0 %v70
  %94 = vmatmul.bf16.gmra.mxu0 %v21
  %v95 = vpop.f32.mrf.mxu0
  %v96 = vadd.f32 0.0, %v95
  %v97 = vpop.f32.mrf.mxu0
  %98 = vdwg.mxu0
  %v99 = vadd.f32 %v20, %v96
  %100 = vst [vmem:[#allocation2] sm:$0x3] %v99
  // Predicated region
  $region18: #{bert_forward.28} parent=0 // pred_check
    %p101 = pneg %p14
  $region19: #{bert_forward.28} parent=0 // pred_check_branch
    %103 = sbr.rel (%p101) target = $region21
  $region20: #{bert_forward.28} parent=0 // pred_region
    %v104 = vld [vmem:[#allocation2] sm:$0x3]
    %v105 = vld [vmem:[%s2] sm:$0x1]
    %v107 = vperm.slane %v105, 0
    %v109 = vadd.f32 %v104, %v107
    %v110 = vtanh.pop %v109
    %111 = vst [vmem:[%s3] sm:$0x3] %v110
  $region21: #{bert_forward.28} parent=0 // pred_fallthru
    _
  // Predicated region
  $region22: #{bert_forward.28} parent=0 // pred_check
    _
  $region23: #{bert_forward.28} parent=0 // pred_check_branch
    %113 = sbr.rel (0) target = $region25
  $region24: #{bert_forward.28} parent=0 // pred_region
    _
  $region25: #{bert_forward.28} parent=0 // pred_fallthru
    _
  // Predicated region
  $region26: #{bert_forward.28} parent=0 // pred_check
    _
  $region27: #{bert_forward.28} parent=0 // pred_check_branch
    %115 = sbr.rel (0) target = $region29
  $region28: #{bert_forward.28} parent=0 // pred_region
    _
  $region29: #{bert_forward.28} parent=0 // pred_fallthru
    _

// kernel: bert_forward.29
$region0: #{bert_forward.29}
  #allocation0 [shape = 'u32[]', space=smem, size = 0x4, offset = 0x4, fixed_abs, tag = 'smem constant byte address 0x4 - core index']
  #allocation1 [shape = 'u32[72,128]{1,0:T(1,128)}', space=vmem, size = 0x9000, scoped, tag = 'internal scratch']
  #allocation2 [shape = 'f32[2,2]{1,0:T(2,128)}', space=vmem, size = 0x400, scoped, tag = 'scratch operand']
  %s0 = inlined_call_operand.vmem [shape: f32[2,128], index: 0, kind: input, shape index: {}]
  %s1 = inlined_call_operand.vmem [shape: bf16[128,2], index: 1, kind: input, shape index: {}]
  %s2 = inlined_call_operand.vmem [shape: f32[1,2], index: 2, kind: input, shape index: {}]
  %s3 = inlined_call_operand.hbm [shape: f32[2,2], index: 3, kind: output, shape index: {}]
  %s4 = sld [smem:[#allocation0]]
  $region30: #{bert_forward.29} parent=0
    _
  %s6 = ssub.s32 1, %s4
  %s7 = scalar_select 0, %s6, %s4
  $region1: #{bert_forward.29} parent=0
    #allocation3 [shape = 'u8[1024]{0}', space=vmem, size = 0x400, scoped, tag = 'output window, operand 0, single buffered']
    #allocation4 [shape = 's32[1]{0}', space=sflag, size = 0x4, scoped, tag = 'scoped memory for bert_forward.29']
    %8 = vsyncpa [#allocation4], 0
    // Predicated region
    $region2: #{bert_forward.29} parent=1 // pred_check
      _
    $region3: #{bert_forward.29} parent=1 // pred_check_branch
      %10 = sbr.rel (0) target = $region5
    $region4: #{bert_forward.29} parent=1 // pred_region
      _
    $region5: #{bert_forward.29} parent=1 // pred_fallthru
      _
    // Predicated region
    $region6: #{bert_forward.29} parent=1 // pred_check
      _
    $region7: #{bert_forward.29} parent=1 // pred_check_branch
      %12 = sbr.rel (0) target = $region9
    $region8: #{bert_forward.29} parent=1 // pred_region
      _
    $region9: #{bert_forward.29} parent=1 // pred_fallthru
      _
    // Predicated region
    $region10: #{bert_forward.29} parent=1 // pred_check
      _
    $region11: #{bert_forward.29} parent=1 // pred_check_branch
      %14 = sbr.rel (0) target = $region13
    $region12: #{bert_forward.29} parent=1 // pred_region
      _
    $region13: #{bert_forward.29} parent=1 // pred_fallthru
      _
    %p15 = scmp.eq.s32.totalorder 0, 0
    // Predicated region
    $region14: #{bert_forward.29} parent=1 // pred_check
      %p16 = pneg %p15
    $region15: #{bert_forward.29} parent=1 // pred_check_branch
      %18 = sbr.rel (%p16) target = $region17
    $region16: #{bert_forward.29} parent=1 // pred_region
      %vm19 = vcmask 9216
      %20 = vst.msk [vmem:[#allocation2] sm:$0x3] %vm19, 0.0
    $region17: #{bert_forward.29} parent=1 // pred_fallthru
      _
    %v21 = vld [vmem:[%s0] sm:$0x3]
    %v22 = vld [vmem:[#allocation2] sm:$0x3]
    %v23 = vpack.c.bf16 %v21, %v21
    %v24 = vld [vmem:[%s1] sm:$0xf]
    %v25 = vld [vmem:[%s1 + $0x4] sm:$0xf]
    %v26 = vld [vmem:[%s1 + $0x8] sm:$0xf]
    %v27 = vld [vmem:[%s1 + $0xc] sm:$0xf]
    %v28 = vld [vmem:[%s1 + $0x10] sm:$0xf]
    %v29 = vld [vmem:[%s1 + $0x14] sm:$0xf]
    %v30 = vld [vmem:[%s1 + $0x18] sm:$0xf]
    %v31 = vld [vmem:[%s1 + $0x1c] sm:$0xf]
    %v32 = vld [vmem:[%s1 + $0x20] sm:$0xf]
    %v33 = vld [vmem:[%s1 + $0x24] sm:$0xf]
    %v34 = vld [vmem:[%s1 + $0x28] sm:$0xf]
    %v35 = vld [vmem:[%s1 + $0x2c] sm:$0xf]
    %v36 = vld [vmem:[%s1 + $0x30] sm:$0xf]
    %v37 = vld [vmem:[%s1 + $0x34] sm:$0xf]
    %v38 = vld [vmem:[%s1 + $0x38] sm:$0xf]
    %v39 = vld [vmem:[%s1 + $0x3c] sm:$0xf]
    %v56 = vunpack.c.l.b16 %v24
    %v57 = vunpack.c.l.b16 %v25
    %v58 = vunpack.c.l.b16 %v26
    %v59 = vunpack.c.l.b16 %v27
    %v60 = vunpack.c.l.b16 %v28
    %v61 = vunpack.c.l.b16 %v29
    %v62 = vunpack.c.l.b16 %v30
    %v63 = vunpack.c.l.b16 %v31
    %v64 = vunpack.c.l.b16 %v32
    %v65 = vunpack.c.l.b16 %v33
    %v66 = vunpack.c.l.b16 %v34
    %v67 = vunpack.c.l.b16 %v35
    %v68 = vunpack.c.l.b16 %v36
    %v69 = vunpack.c.l.b16 %v37
    %v70 = vunpack.c.l.b16 %v38
    %v71 = vunpack.c.l.b16 %v39
    %v72 = vpack.c.b16 %v57, %v56
    %v73 = vpack.c.b16 %v59, %v58
    %v74 = vpack.c.b16 %v61, %v60
    %v75 = vpack.c.b16 %v63, %v62
    %v76 = vpack.c.b16 %v65, %v64
    %v77 = vpack.c.b16 %v67, %v66
    %v78 = vpack.c.b16 %v69, %v68
    %v79 = vpack.c.b16 %v71, %v70
    %88 = vmatpush.bf16.msra.mxu0 %v79
    %89 = vmatpush.bf16.msra.mxu0 %v78
    %90 = vmatpush.bf16.msra.mxu0 %v77
    %91 = vmatpush.bf16.msra.mxu0 %v76
    %92 = vmatpush.bf16.msra.mxu0 %v75
    %93 = vmatpush.bf16.msra.mxu0 %v74
    %94 = vmatpush.bf16.msra.mxu0 %v73
    %95 = vmatpush.bf16.msra.mxu0 %v72
    %96 = vmatmul.bf16.gmra.mxu0 %v23
    %v97 = vpop.f32.mrf.mxu0
    %v98 = vadd.f32 0.0, %v97
    %v99 = vpop.f32.mrf.mxu0
    %100 = vdwg.mxu0
    %v101 = vadd.f32 %v22, %v98
    %vm102 = vcmask 9216
    %103 = vst.msk [vmem:[#allocation2] sm:$0x3] %vm102, %v101
    // Predicated region
    $region18: #{bert_forward.29} parent=1 // pred_check
      %p104 = pneg %p15
    $region19: #{bert_forward.29} parent=1 // pred_check_branch
      %106 = sbr.rel (%p104) target = $region21
    $region20: #{bert_forward.29} parent=1 // pred_region
      %v107 = vld [vmem:[#allocation2] sm:$0x3]
      %v108 = vld [vmem:[%s2] sm:$0x1]
      %v110 = vperm.slane %v108, 0
      %v112 = vadd.f32 %v107, %v110
      %113 = vst.msk [vmem:[#allocation3] sm:$0x3] %vm102, %v112
    $region21: #{bert_forward.29} parent=1 // pred_fallthru
      _
    // Predicated region
    $region22: #{bert_forward.29} parent=1 // pred_check
      _
    $region23: #{bert_forward.29} parent=1 // pred_check_branch
      %115 = sbr.rel (0) target = $region25
    $region24: #{bert_forward.29} parent=1 // pred_region
      %117 = vsyncadd [#allocation4], 0
      %s119 = sshll.u32 [#allocation3], 4
      %s120 = int_to_ptr.vmem [resolvable:$true] %s119
      %s121 = sshll.u32 %s3, 4
      %s122 = int_to_ptr.hbm [resolvable:$true] %s121
      %124 = dma.vmem_to_hbm [thread:$0]  %s120, 32, %s122, [#allocation4]
    $region25: #{bert_forward.29} parent=1 // pred_fallthru
      _
    // Predicated region
    $region26: #{bert_forward.29} parent=1 // pred_check
      _
    $region27: #{bert_forward.29} parent=1 // pred_check_branch
      %126 = sbr.rel (0) target = $region29
    $region28: #{bert_forward.29} parent=1 // pred_region
      %128 = dma.done [#allocation4], 32
    $region29: #{bert_forward.29} parent=1 // pred_fallthru
      _
    %129 = vsyncpa [#allocation4], 1

</llo_original>
